<compile_context>
chip_gen: v5e
topology: v5e:2x2
jax: 0.10.0
libtpu: 0.0.40
codegen_flags: <defaults>
</compile_context>

<pallas_src>
import jax
import jax.numpy as jnp
from jax.experimental import pallas as pl
from jax.experimental.pallas import tpu as pltpu

IN_CH = 3       # RGB input
BB_CH = 512     # backbone output channels == conv_out in_channels
OUT_CH = 128    # conv_out out_channels
PATCH = 2       # synthetic backbone downsamples spatially by 2x


# ----------------------------------------------------------------- helpers ---

def _pick_row_tile(dim, target):
    """Largest divisor of `dim` that is <= target and (multiple of 8 or == dim)."""
    for t in range(min(dim, target), 0, -1):
        if dim % t == 0 and (t % 8 == 0 or t == dim):
            return t
    return dim


def _bilinear_matrix(out_size, in_size):
    """Row interpolation matrix matching F.interpolate(mode='bilinear',
    align_corners=False): src = (dst+0.5)*scale - 0.5, clamped.  (reference only)"""
    scale = in_size / out_size
    src = (jnp.arange(out_size, dtype=jnp.float32) + 0.5) * scale - 0.5
    src = jnp.maximum(src, 0.0)
    x0 = jnp.minimum(jnp.floor(src).astype(jnp.int32), in_size - 1)
    x1 = jnp.minimum(x0 + 1, in_size - 1)
    lam = src - x0.astype(jnp.float32)
    return ((1.0 - lam)[:, None] * jax.nn.one_hot(x0, in_size, dtype=jnp.float32)
            + lam[:, None] * jax.nn.one_hot(x1, in_size, dtype=jnp.float32))


def _l2_normalize(v):
    """F.normalize(dim=channels), eps=1e-12 on the norm == clamp ssq at 1e-24."""
    ssq = jnp.sum(v * v, axis=-1, keepdims=True)
    return v * jax.lax.rsqrt(jnp.maximum(ssq, 1e-24))


# ----------------------------------------------------------------- kernels ---

def _backbone_conv3x3_kernel(xw_ref, wbb_ref, bbb_ref, wcv_ref, bcv_ref, o_ref):
    """Fused synthetic backbone (patchify matmul + bias + ReLU) and
    Conv2d(512, 128, 3, 1, 1) for one (batch, row-tile) block.

    xw_ref : (1, 1, tr+2, wfp, K) bf16  overlapping, zero-padded patch window
    wbb_ref: (K, 512)  bf16            bbb_ref: (1, 512) f32
    wcv_ref: (3, 3*512, 128) bf16 (dx taps folded into K)
    bcv_ref: (1, 128) f32
    o_ref  : (1, tr, wf, 128) bf16
    """
    r = pl.program_id(1)
    last_r = pl.num_programs(1) - 1

    x = xw_ref[0, 0]                                    # (tr+2, wfp, K) bf16
    trp2, wfp, kdim = x.shape
    tr = trp2 - 2
    wf = o_ref.shape[2]
    cout = o_ref.shape[3]
    cin = wbb_ref.shape[1]

    # Synthetic backbone: patchified conv == one matmul (+bias, ReLU), f32 acc.
    feats = jnp.dot(x.reshape(trp2 * wfp, kdim), wbb_ref[...],
                    preferred_element_type=jnp.float32)
    feats = jnp.maximum(feats + bbb_ref[...], 0.0).reshape(trp2, wfp, cin)

    # Fused conv padding: pad positions must hold zero *features*, but the
    # backbone maps zero patches to relu(b_bb) != 0 -> mask them out.
    rows = jax.lax.broadcasted_iota(jnp.int32, (trp2, 1, 1), 0)
    cols = jax.lax.broadcasted_iota(jnp.int32, (1, wfp, 1), 1)
    row_ok = jnp.logical_and(jnp.logical_or(rows > 0, r > 0),
                             jnp.logical_or(rows < trp2 - 1, r < last_r))
    col_ok = jnp.logical_and(cols >= 1, cols <= wf)
    feats = jnp.where(jnp.logical_and(row_ok, col_ok), feats, 0.0)
    feats = feats.astype(jnp.bfloat16)                  # conv MXU inputs

    # 3x3 conv: fold the 3 dx taps into one K=3*512 matmul per dy -> 3 matmuls
    # and 3 (not 9) f32 accumulator passes; bias added once per tile.
    acc = jnp.zeros((tr * wf, cout), jnp.float32)
    for dy in range(3):
        rows_dy = feats[dy:dy + tr]                     # (tr, wfp, 512)
        lhs = jnp.concatenate(
            [rows_dy[:, 0:wf], rows_dy[:, 1:wf + 1], rows_dy[:, 2:wf + 2]],
            axis=-1)                                    # (tr, wf, 1536)
        acc = acc + jnp.dot(lhs.reshape(tr * wf, 3 * cin), wcv_ref[dy],
                            preferred_element_type=jnp.float32)
    acc = acc + bcv_ref[...]
    o_ref[0] = acc.reshape(tr, wf, cout).astype(o_ref.dtype)


def _upsample2x_l2norm_kernel(top_ref, body_ref, bot_ref, o_ref):
    """Exact 2x bilinear upsample (align_corners=False) fused with channel-wise
    L2 normalization.  Pure 2-tap VPU lerps -- no matmuls, no reshapes.

    top_ref : (1, 1, wf, C) bf16  source row max(r*half-1, 0)     (clamped halo)
    body_ref: (1, half, wf, C) bf16 source rows [r*half, r*half+half)
    bot_ref : (1, 1, wf, C) bf16  source row min(r*half+half, hf-1) (clamped)
    o_ref   : (1, 4, half, wf, C) bf16, phase-separated:
              o[0, 2*py+px, i, j] == output pixel (2*(r*half+i)+py, 2*j+px)
    """
    top = top_ref[0].astype(jnp.float32)                # (1, wf, C)
    body = body_ref[0].astype(jnp.float32)              # (half, wf, C)
    bot = bot_ref[0].astype(jnp.float32)                # (1, wf, C)
    half = body.shape[0]

    # H pass: out_row(2i) = 0.25*d[i-1] + 0.75*d[i]
    #         out_row(2i+1) = 0.75*d[i] + 0.25*d[i+1]   (edges clamped via halos)
    d_up = jnp.concatenate([top, body[:half - 1]], axis=0)      # d[i-1]
    d_dn = jnp.concatenate([body[1:], bot], axis=0)             # d[i+1]
    even_r = 0.25 * d_up + 0.75 * body
    odd_r = 0.75 * body + 0.25 * d_dn

    def wpass_norm(xrow):
        xl = jnp.concatenate([xrow[:, :1], xrow[:, :-1]], axis=1)   # x[j-1] clamped
        xr = jnp.concatenate([xrow[:, 1:], xrow[:, -1:]], axis=1)   # x[j+1] clamped
        pe = 0.25 * xl + 0.75 * xrow
        po = 0.75 * xrow + 0.25 * xr
        return _l2_normalize(pe), _l2_normalize(po)

    p00, p01 = wpass_norm(even_r)                       # output rows 2i
    p10, p11 = wpass_norm(odd_r)                        # output rows 2i+1
    o_ref[0, 0] = p00.astype(o_ref.dtype)
    o_ref[0, 1] = p01.astype(o_ref.dtype)
    o_ref[0, 2] = p10.astype(o_ref.dtype)
    o_ref[0, 3] = p11.astype(o_ref.dtype)


# -------------------------------------------------------------------- glue ---

@jax.jit
def feature_extractor_forward(images, params):
    """images: [N, 3, H, W] (NCHW).  Returns descriptors [N, 128, H, W]."""
    n, c, h, w = images.shape
    hf, wf = h // PATCH, w // PATCH
    kdim = PATCH * PATCH * c

    # ---- patchify in the wrapper (tiny 12-channel tensor, cheap XLA pass) ---
    x = jnp.transpose(images, (0, 2, 3, 1))                       # NHWC
    xp = x.reshape(n, hf, PATCH, wf, PATCH, c)
    xp = jnp.transpose(xp, (0, 1, 3, 2, 4, 5)).reshape(n, hf, wf, kdim)
    xp = xp.astype(jnp.bfloat16)

    # ---- fused backbone + conv_out (Conv2d(512,128,3,1,1)), row-tiled -------
    tr = _pick_row_tile(hf, 16)
    ntr = hf // tr
    wfp = ((wf + 2 + 7) // 8) * 8          # width + 3x3 halo, sublane-aligned
    xpp = jnp.pad(xp, ((0, 0), (1, 1), (1, wfp - wf - 1), (0, 0)))
    # Overlapping (tr+2)-row windows so the kernel needs no manual halo DMA;
    # the window tensor is tiny (12 channels) and rides the BlockSpec pipeline.
    xwin = jnp.stack([xpp[:, i * tr:i * tr + tr + 2] for i in range(ntr)], axis=1)

    w_bb = params["w_bb"].astype(jnp.bfloat16)                       # (12, 512)
    w_cv = params["w_conv"].reshape(3, 3 * BB_CH, OUT_CH).astype(jnp.bfloat16)

    descrs = pl.pallas_call(
        _backbone_conv3x3_kernel,
        out_shape=jax.ShapeDtypeStruct((n, hf, wf, OUT_CH), jnp.bfloat16),
        grid=(n, ntr),
        in_specs=[
            pl.BlockSpec((1, 1, tr + 2, wfp, kdim), lambda b, r: (b, r, 0, 0, 0)),
            pl.BlockSpec((kdim, BB_CH), lambda b, r: (0, 0)),
            pl.BlockSpec((1, BB_CH), lambda b, r: (0, 0)),
            pl.BlockSpec((3, 3 * BB_CH, OUT_CH), lambda b, r: (0, 0, 0)),
            pl.BlockSpec((1, OUT_CH), lambda b, r: (0, 0)),
        ],
        out_specs=pl.BlockSpec((1, tr, wf, OUT_CH), lambda b, r: (b, r, 0, 0)),
        compiler_params=pltpu.CompilerParams(
            dimension_semantics=("parallel", "parallel"),
            vmem_limit_bytes=64 * 1024 * 1024),
    )(xwin, w_bb, params["b_bb"], w_cv, params["b_conv"])

    # ---- F.normalize(F.interpolate(descrs, (h, w), 'bilinear'), dim=1) ------
    # Row-windowed (body + 2 clamped halo rows) 2-tap lerp upsample + L2 norm.
    half = _pick_row_tile(hf, 8)
    out_ph = pl.pallas_call(
        _upsample2x_l2norm_kernel,
        out_shape=jax.ShapeDtypeStruct((n, 4, hf, wf, OUT_CH), jnp.bfloat16),
        grid=(n, hf // half),
        in_specs=[
            pl.BlockSpec((1, 1, wf, OUT_CH),
                         lambda b, r: (b, jnp.maximum(r * half - 1, 0), 0, 0)),
            pl.BlockSpec((1, half, wf, OUT_CH), lambda b, r: (b, r, 0, 0)),
            pl.BlockSpec((1, 1, wf, OUT_CH),
                         lambda b, r: (b, jnp.minimum(r * half + half, hf - 1), 0, 0)),
        ],
        out_specs=pl.BlockSpec((1, 4, half, wf, OUT_CH),
                               lambda b, r: (b, 0, r, 0, 0)),
        compiler_params=pltpu.CompilerParams(
            dimension_semantics=("parallel", "parallel"),
            vmem_limit_bytes=64 * 1024 * 1024),
    )(descrs, descrs, descrs)

    # Phase-separated (N,4,hf,wf,C) bf16 -> NCHW f32.  The pixel interleave is
    # folded into the NCHW transpose XLA performs anyway, on bf16 data.
    out_ph = out_ph.reshape(n, 2, 2, hf, wf, OUT_CH)
    out = jnp.transpose(out_ph, (0, 5, 3, 1, 4, 2)).reshape(n, OUT_CH, h, w)
    return out.astype(jnp.float32)


def init_params(key):
    k1, k2, k3, k4 = jax.random.split(key, 4)
    fan_bb = PATCH * PATCH * IN_CH
    fan_conv = 3 * 3 * BB_CH
    return {
        "w_bb": jax.random.normal(k1, (fan_bb, BB_CH), jnp.float32)
                * (2.0 / fan_bb) ** 0.5,
        "b_bb": jax.random.normal(k2, (1, BB_CH), jnp.float32) * 0.01,
        "w_conv": jax.random.normal(k3, (3, 3, BB_CH, OUT_CH), jnp.float32)
                  * (2.0 / fan_conv) ** 0.5,
        "b_conv": jax.random.normal(k4, (1, OUT_CH), jnp.float32) * 0.01,
    }


def _reference_forward(images, params):
    """Pure-JAX reference mirroring the kernels' bf16 quantization points."""
    n, c, h, w = images.shape
    hf, wf = h // PATCH, w // PATCH
    x = jnp.transpose(images, (0, 2, 3, 1))
    patches = x.reshape(n, hf, PATCH, wf, PATCH, c)
    patches = jnp.transpose(patches, (0, 1, 3, 2, 4, 5)).reshape(-1, PATCH * PATCH * c)
    pb = patches.astype(jnp.bfloat16).astype(jnp.float32)
    wb = params["w_bb"].astype(jnp.bfloat16).astype(jnp.float32)
    feats = jnp.maximum(pb @ wb + params["b_bb"], 0.0)
    feats = feats.astype(jnp.bfloat16).astype(jnp.float32).reshape(n, hf, wf, BB_CH)
    wc = params["w_conv"].astype(jnp.bfloat16).astype(jnp.float32)
    fp = jnp.pad(feats, ((0, 0), (1, 1), (1, 1), (0, 0)))
    descrs = jnp.zeros((n, hf, wf, OUT_CH), jnp.float32) + params["b_conv"]
    for dy in range(3):
        for dx in range(3):
            descrs = descrs + jnp.einsum(
                'nhwc,cd->nhwd', fp[:, dy:dy + hf, dx:dx + wf, :], wc[dy, dx])
    descrs = descrs.astype(jnp.bfloat16).astype(jnp.float32)   # kernel emits bf16
    a_h = _bilinear_matrix(h, hf)
    a_w = _bilinear_matrix(w, wf)
    up = jnp.einsum('Hh,nhwc->nHwc', a_h, descrs)
    up = jnp.einsum('Ww,nHwc->nHWc', a_w, up)
    nrm = jnp.sqrt(jnp.sum(up * up, axis=-1, keepdims=True))
    out = up / jnp.maximum(nrm, 1e-12)
    return jnp.transpose(out, (0, 3, 1, 2))


if __name__ == "__main__":
    key = jax.random.PRNGKey(0)
    pkey, xkey = jax.random.split(key)
    params = init_params(pkey)
    images = jax.random.normal(xkey, (2, IN_CH, 16, 16), jnp.float32)   # NCHW
    out = jax.block_until_ready(feature_extractor_forward(images, params))
    assert out.shape == (2, OUT_CH, 16, 16), out.shape
    assert bool(jnp.all(jnp.isfinite(out)))
    ref = jax.block_until_ready(_reference_forward(images, params))
    err = float(jnp.max(jnp.abs(out - ref)))
    assert err < 3e-2, f"max abs err {err}"
    print("KERNEL_OK")
</pallas_src>

<mosaic_0001>
module attributes {stable_mosaic.version = 11 : i64} {
  func.func @_backbone_conv3x3_kernel(%arg0: i32, %arg1: i32, %arg2: memref<1x1x10x16x12xbf16, #tpu.memory_space<vmem>>, %arg3: memref<12x512xbf16, #tpu.memory_space<vmem>>, %arg4: memref<1x512xf32, #tpu.memory_space<vmem>>, %arg5: memref<3x1536x128xbf16, #tpu.memory_space<vmem>>, %arg6: memref<1x128xf32, #tpu.memory_space<vmem>>, %arg7: memref<1x8x8x128xbf16, #tpu.memory_space<vmem>>) attributes {dimension_semantics = [#tpu.dimension_semantics<parallel>, #tpu.dimension_semantics<parallel>], iteration_bounds = array<i64: 2, 1>, scalar_prefetch = 0 : i64, scratch_operands = 0 : i64, tpu.core_type = #tpu.core_type<tc>, window_params = [{transform_indices = @transform_0, window_bounds = array<i64: 1, 1, 10, 16, 12>}, {pipeline_mode = #tpu.pipeline_mode<synchronous>, transform_indices = @transform_1, window_bounds = array<i64: 12, 512>}, {pipeline_mode = #tpu.pipeline_mode<synchronous>, transform_indices = @transform_2, window_bounds = array<i64: 1, 512>}, {pipeline_mode = #tpu.pipeline_mode<synchronous>, transform_indices = @transform_3, window_bounds = array<i64: 3, 1536, 128>}, {pipeline_mode = #tpu.pipeline_mode<synchronous>, transform_indices = @transform_4, window_bounds = array<i64: 1, 128>}, {transform_indices = @transform_5, window_bounds = array<i64: 1, 8, 8, 128>}]} {
    %c0 = arith.constant 0 : index
    %c0_0 = arith.constant 0 : index
    %c0_1 = arith.constant 0 : index
    %c0_2 = arith.constant 0 : index
    %c0_3 = arith.constant 0 : index
    %0 = vector.load %arg2[%c0, %c0_0, %c0_1, %c0_2, %c0_3] : memref<1x1x10x16x12xbf16, #tpu.memory_space<vmem>>, vector<1x1x10x16x12xbf16>
    %1 = vector.shape_cast %0 : vector<1x1x10x16x12xbf16> to vector<10x16x12xbf16>
    %2 = vector.shape_cast %1 : vector<10x16x12xbf16> to vector<160x12xbf16>
    %c0_4 = arith.constant 0 : index
    %c0_5 = arith.constant 0 : index
    %3 = vector.load %arg3[%c0_4, %c0_5] : memref<12x512xbf16, #tpu.memory_space<vmem>>, vector<12x512xbf16>
    %cst = arith.constant dense<0.000000e+00> : vector<160x512xf32>
    %4 = tpu.matmul %2, %3, %cst {dimension_numbers = #tpu.dot_dimension_numbers<[1], [0], [0], [1], [0, 0, 1, 1], [], []>} : vector<160x12xbf16>, vector<12x512xbf16>, vector<160x512xf32> -> vector<160x512xf32>
    %c0_6 = arith.constant 0 : index
    %c0_7 = arith.constant 0 : index
    %5 = vector.load %arg4[%c0_6, %c0_7] : memref<1x512xf32, #tpu.memory_space<vmem>>, vector<1x512xf32>
    %6 = vector.broadcast %5 : vector<1x512xf32> to vector<160x512xf32>
    %7 = arith.addf %4, %6 : vector<160x512xf32>
    %cst_8 = arith.constant 0.000000e+00 : f32
    %8 = vector.broadcast %cst_8 : f32 to vector<160x512xf32>
    %9 = arith.maximumf %7, %8 : vector<160x512xf32>
    %10 = vector.shape_cast %9 : vector<160x512xf32> to vector<10x16x512xf32>
    %11 = tpu.iota {dimensions = array<i32: 0>} : vector<10x1x1xi32>
    %12 = tpu.iota {dimensions = array<i32: 1>} : vector<1x16x1xi32>
    %c0_i32 = arith.constant 0 : i32
    %13 = vector.broadcast %c0_i32 : i32 to vector<10x1x1xi32>
    %14 = arith.cmpi sgt, %11, %13 : vector<10x1x1xi32>
    %c0_i32_9 = arith.constant 0 : i32
    %15 = arith.cmpi sgt, %arg1, %c0_i32_9 : i32
    %16 = vector.broadcast %15 : i1 to vector<10x1x1xi1>
    %17 = arith.ori %14, %16 : vector<10x1x1xi1>
    %c9_i32 = arith.constant 9 : i32
    %18 = vector.broadcast %c9_i32 : i32 to vector<10x1x1xi32>
    %19 = arith.cmpi slt, %11, %18 : vector<10x1x1xi32>
    %c0_i32_10 = arith.constant 0 : i32
    %20 = arith.cmpi slt, %arg1, %c0_i32_10 : i32
    %21 = vector.broadcast %20 : i1 to vector<10x1x1xi1>
    %22 = arith.ori %19, %21 : vector<10x1x1xi1>
    %23 = arith.andi %17, %22 : vector<10x1x1xi1>
    %c1_i32 = arith.constant 1 : i32
    %24 = vector.broadcast %c1_i32 : i32 to vector<1x16x1xi32>
    %25 = arith.cmpi sge, %12, %24 : vector<1x16x1xi32>
    %c8_i32 = arith.constant 8 : i32
    %26 = vector.broadcast %c8_i32 : i32 to vector<1x16x1xi32>
    %27 = arith.cmpi sle, %12, %26 : vector<1x16x1xi32>
    %28 = arith.andi %25, %27 : vector<1x16x1xi1>
    %29 = vector.broadcast %23 : vector<10x1x1xi1> to vector<10x16x1xi1>
    %30 = vector.broadcast %28 : vector<1x16x1xi1> to vector<10x16x1xi1>
    %31 = arith.andi %29, %30 : vector<10x16x1xi1>
    %cst_11 = arith.constant 0.000000e+00 : f32
    %32 = vector.shape_cast %31 : vector<10x16x1xi1> to vector<10x16x1xi1>
    %33 = vector.broadcast %32 : vector<10x16x1xi1> to vector<10x16x512xi1>
    %34 = vector.broadcast %cst_11 : f32 to vector<10x16x512xf32>
    %35 = arith.select %33, %10, %34 : vector<10x16x512xi1>, vector<10x16x512xf32>
    %36 = arith.truncf %35 : vector<10x16x512xf32> to vector<10x16x512xbf16>
    %cst_12 = arith.constant 0.000000e+00 : f32
    %37 = vector.broadcast %cst_12 : f32 to vector<64x128xf32>
    %38 = vector.extract_strided_slice %36 {offsets = [0, 0, 0], sizes = [8, 16, 512], strides = [1, 1, 1]} : vector<10x16x512xbf16> to vector<8x16x512xbf16>
    %39 = vector.extract_strided_slice %38 {offsets = [0, 0, 0], sizes = [8, 8, 512], strides = [1, 1, 1]} : vector<8x16x512xbf16> to vector<8x8x512xbf16>
    %40 = vector.extract_strided_slice %38 {offsets = [0, 1, 0], sizes = [8, 8, 512], strides = [1, 1, 1]} : vector<8x16x512xbf16> to vector<8x8x512xbf16>
    %41 = vector.extract_strided_slice %38 {offsets = [0, 2, 0], sizes = [8, 8, 512], strides = [1, 1, 1]} : vector<8x16x512xbf16> to vector<8x8x512xbf16>
    %42 = tpu.concatenate %39, %40, %41 in 2 : vector<8x8x512xbf16>, vector<8x8x512xbf16>, vector<8x8x512xbf16> -> vector<8x8x1536xbf16>
    %43 = vector.shape_cast %42 : vector<8x8x1536xbf16> to vector<64x1536xbf16>
    %c0_13 = arith.constant 0 : index
    %c0_14 = arith.constant 0 : index
    %c0_15 = arith.constant 0 : index
    %44 = vector.load %arg5[%c0_13, %c0_14, %c0_15] : memref<3x1536x128xbf16, #tpu.memory_space<vmem>>, vector<1x1536x128xbf16>
    %45 = vector.shape_cast %44 : vector<1x1536x128xbf16> to vector<1536x128xbf16>
    %cst_16 = arith.constant dense<0.000000e+00> : vector<64x128xf32>
    %46 = tpu.matmul %43, %45, %cst_16 {dimension_numbers = #tpu.dot_dimension_numbers<[1], [0], [0], [1], [0, 0, 1, 1], [], []>} : vector<64x1536xbf16>, vector<1536x128xbf16>, vector<64x128xf32> -> vector<64x128xf32>
    %47 = arith.addf %37, %46 : vector<64x128xf32>
    %48 = vector.extract_strided_slice %36 {offsets = [1, 0, 0], sizes = [8, 16, 512], strides = [1, 1, 1]} : vector<10x16x512xbf16> to vector<8x16x512xbf16>
    %49 = vector.extract_strided_slice %48 {offsets = [0, 0, 0], sizes = [8, 8, 512], strides = [1, 1, 1]} : vector<8x16x512xbf16> to vector<8x8x512xbf16>
    %50 = vector.extract_strided_slice %48 {offsets = [0, 1, 0], sizes = [8, 8, 512], strides = [1, 1, 1]} : vector<8x16x512xbf16> to vector<8x8x512xbf16>
    %51 = vector.extract_strided_slice %48 {offsets = [0, 2, 0], sizes = [8, 8, 512], strides = [1, 1, 1]} : vector<8x16x512xbf16> to vector<8x8x512xbf16>
    %52 = tpu.concatenate %49, %50, %51 in 2 : vector<8x8x512xbf16>, vector<8x8x512xbf16>, vector<8x8x512xbf16> -> vector<8x8x1536xbf16>
    %53 = vector.shape_cast %52 : vector<8x8x1536xbf16> to vector<64x1536xbf16>
    %c1 = arith.constant 1 : index
    %c0_17 = arith.constant 0 : index
    %c0_18 = arith.constant 0 : index
    %54 = vector.load %arg5[%c1, %c0_17, %c0_18] : memref<3x1536x128xbf16, #tpu.memory_space<vmem>>, vector<1x1536x128xbf16>
    %55 = vector.shape_cast %54 : vector<1x1536x128xbf16> to vector<1536x128xbf16>
    %cst_19 = arith.constant dense<0.000000e+00> : vector<64x128xf32>
    %56 = tpu.matmul %53, %55, %cst_19 {dimension_numbers = #tpu.dot_dimension_numbers<[1], [0], [0], [1], [0, 0, 1, 1], [], []>} : vector<64x1536xbf16>, vector<1536x128xbf16>, vector<64x128xf32> -> vector<64x128xf32>
    %57 = arith.addf %47, %56 : vector<64x128xf32>
    %58 = vector.extract_strided_slice %36 {offsets = [2, 0, 0], sizes = [8, 16, 512], strides = [1, 1, 1]} : vector<10x16x512xbf16> to vector<8x16x512xbf16>
    %59 = vector.extract_strided_slice %58 {offsets = [0, 0, 0], sizes = [8, 8, 512], strides = [1, 1, 1]} : vector<8x16x512xbf16> to vector<8x8x512xbf16>
    %60 = vector.extract_strided_slice %58 {offsets = [0, 1, 0], sizes = [8, 8, 512], strides = [1, 1, 1]} : vector<8x16x512xbf16> to vector<8x8x512xbf16>
    %61 = vector.extract_strided_slice %58 {offsets = [0, 2, 0], sizes = [8, 8, 512], strides = [1, 1, 1]} : vector<8x16x512xbf16> to vector<8x8x512xbf16>
    %62 = tpu.concatenate %59, %60, %61 in 2 : vector<8x8x512xbf16>, vector<8x8x512xbf16>, vector<8x8x512xbf16> -> vector<8x8x1536xbf16>
    %63 = vector.shape_cast %62 : vector<8x8x1536xbf16> to vector<64x1536xbf16>
    %c2 = arith.constant 2 : index
    %c0_20 = arith.constant 0 : index
    %c0_21 = arith.constant 0 : index
    %64 = vector.load %arg5[%c2, %c0_20, %c0_21] : memref<3x1536x128xbf16, #tpu.memory_space<vmem>>, vector<1x1536x128xbf16>
    %65 = vector.shape_cast %64 : vector<1x1536x128xbf16> to vector<1536x128xbf16>
    %cst_22 = arith.constant dense<0.000000e+00> : vector<64x128xf32>
    %66 = tpu.matmul %63, %65, %cst_22 {dimension_numbers = #tpu.dot_dimension_numbers<[1], [0], [0], [1], [0, 0, 1, 1], [], []>} : vector<64x1536xbf16>, vector<1536x128xbf16>, vector<64x128xf32> -> vector<64x128xf32>
    %67 = arith.addf %57, %66 : vector<64x128xf32>
    %c0_23 = arith.constant 0 : index
    %c0_24 = arith.constant 0 : index
    %68 = vector.load %arg6[%c0_23, %c0_24] : memref<1x128xf32, #tpu.memory_space<vmem>>, vector<1x128xf32>
    %69 = vector.broadcast %68 : vector<1x128xf32> to vector<64x128xf32>
    %70 = arith.addf %67, %69 : vector<64x128xf32>
    %71 = vector.shape_cast %70 : vector<64x128xf32> to vector<8x8x128xf32>
    %72 = arith.truncf %71 : vector<8x8x128xf32> to vector<8x8x128xbf16>
    %c0_25 = arith.constant 0 : index
    %c0_26 = arith.constant 0 : index
    %c0_27 = arith.constant 0 : index
    %c0_28 = arith.constant 0 : index
    %73 = vector.load %arg7[%c0_25, %c0_26, %c0_27, %c0_28] : memref<1x8x8x128xbf16, #tpu.memory_space<vmem>>, vector<1x8x8x128xbf16>
    %74 = vector.shape_cast %73 : vector<1x8x8x128xbf16> to vector<8x8x128xbf16>
    %75 = vector.shape_cast %72 : vector<8x8x128xbf16> to vector<1x8x8x128xbf16>
    tpu.vector_store %arg7[%c0_25, %c0_26, %c0_27, %c0_28], %75 {strides = array<i32>} : memref<1x8x8x128xbf16, #tpu.memory_space<vmem>>, vector<1x8x8x128xbf16>,
    return
  }
  func.func @transform_0(%arg0: i32, %arg1: i32) -> (i32, i32, i32, i32, i32) {
    %c0_i32 = arith.constant 0 : i32
    %c0_i32_0 = arith.constant 0 : i32
    %c0_i32_1 = arith.constant 0 : i32
    %c0_i32_2 = arith.constant 0 : i32
    return %arg0, %arg1, %c0_i32, %c0_i32_0, %c0_i32_1 : i32, i32, i32, i32, i32
  }
  func.func @transform_1(%arg0: i32, %arg1: i32) -> (i32, i32) {
    %c0_i32 = arith.constant 0 : i32
    %c0_i32_0 = arith.constant 0 : i32
    %c0_i32_1 = arith.constant 0 : i32
    return %c0_i32, %c0_i32_0 : i32, i32
  }
  func.func @transform_2(%arg0: i32, %arg1: i32) -> (i32, i32) {
    %c0_i32 = arith.constant 0 : i32
    %c0_i32_0 = arith.constant 0 : i32
    %c0_i32_1 = arith.constant 0 : i32
    return %c0_i32, %c0_i32_0 : i32, i32
  }
  func.func @transform_3(%arg0: i32, %arg1: i32) -> (i32, i32, i32) {
    %c0_i32 = arith.constant 0 : i32
    %c0_i32_0 = arith.constant 0 : i32
    %c0_i32_1 = arith.constant 0 : i32
    %c0_i32_2 = arith.constant 0 : i32
    return %c0_i32, %c0_i32_0, %c0_i32_1 : i32, i32, i32
  }
  func.func @transform_4(%arg0: i32, %arg1: i32) -> (i32, i32) {
    %c0_i32 = arith.constant 0 : i32
    %c0_i32_0 = arith.constant 0 : i32
    %c0_i32_1 = arith.constant 0 : i32
    return %c0_i32, %c0_i32_0 : i32, i32
  }
  func.func @transform_5(%arg0: i32, %arg1: i32) -> (i32, i32, i32, i32) {
    %c0_i32 = arith.constant 0 : i32
    %c0_i32_0 = arith.constant 0 : i32
    %c0_i32_1 = arith.constant 0 : i32
    return %arg0, %arg1, %c0_i32, %c0_i32_0 : i32, i32, i32, i32
  }
}

module attributes {stable_mosaic.version = 11 : i64} {
  func.func @_upsample2x_l2norm_kernel(%arg0: i32, %arg1: i32, %arg2: memref<1x1x8x128xbf16, #tpu.memory_space<vmem>>, %arg3: memref<1x8x8x128xbf16, #tpu.memory_space<vmem>>, %arg4: memref<1x1x8x128xbf16, #tpu.memory_space<vmem>>, %arg5: memref<1x4x8x8x128xbf16, #tpu.memory_space<vmem>>) attributes {dimension_semantics = [#tpu.dimension_semantics<parallel>, #tpu.dimension_semantics<parallel>], iteration_bounds = array<i64: 2, 1>, scalar_prefetch = 0 : i64, scratch_operands = 0 : i64, tpu.core_type = #tpu.core_type<tc>, window_params = [{transform_indices = @transform_0, window_bounds = array<i64: 1, 1, 8, 128>}, {transform_indices = @transform_1, window_bounds = array<i64: 1, 8, 8, 128>}, {transform_indices = @transform_2, window_bounds = array<i64: 1, 1, 8, 128>}, {transform_indices = @transform_3, window_bounds = array<i64: 1, 4, 8, 8, 128>}]} {
    %c0 = arith.constant 0 : index
    %c0_0 = arith.constant 0 : index
    %c0_1 = arith.constant 0 : index
    %c0_2 = arith.constant 0 : index
    %0 = vector.load %arg2[%c0, %c0_0, %c0_1, %c0_2] : memref<1x1x8x128xbf16, #tpu.memory_space<vmem>>, vector<1x1x8x128xbf16>
    %1 = vector.shape_cast %0 : vector<1x1x8x128xbf16> to vector<1x8x128xbf16>
    %2 = arith.extf %1 : vector<1x8x128xbf16> to vector<1x8x128xf32>
    %c0_3 = arith.constant 0 : index
    %c0_4 = arith.constant 0 : index
    %c0_5 = arith.constant 0 : index
    %c0_6 = arith.constant 0 : index
    %3 = vector.load %arg3[%c0_3, %c0_4, %c0_5, %c0_6] : memref<1x8x8x128xbf16, #tpu.memory_space<vmem>>, vector<1x8x8x128xbf16>
    %4 = vector.shape_cast %3 : vector<1x8x8x128xbf16> to vector<8x8x128xbf16>
    %5 = arith.extf %4 : vector<8x8x128xbf16> to vector<8x8x128xf32>
    %c0_7 = arith.constant 0 : index
    %c0_8 = arith.constant 0 : index
    %c0_9 = arith.constant 0 : index
    %c0_10 = arith.constant 0 : index
    %6 = vector.load %arg4[%c0_7, %c0_8, %c0_9, %c0_10] : memref<1x1x8x128xbf16, #tpu.memory_space<vmem>>, vector<1x1x8x128xbf16>
    %7 = vector.shape_cast %6 : vector<1x1x8x128xbf16> to vector<1x8x128xbf16>
    %8 = arith.extf %7 : vector<1x8x128xbf16> to vector<1x8x128xf32>
    %9 = vector.extract_strided_slice %5 {offsets = [0, 0, 0], sizes = [7, 8, 128], strides = [1, 1, 1]} : vector<8x8x128xf32> to vector<7x8x128xf32>
    %10 = tpu.concatenate %2, %9 in 0 : vector<1x8x128xf32>, vector<7x8x128xf32> -> vector<8x8x128xf32>
    %11 = vector.extract_strided_slice %5 {offsets = [1, 0, 0], sizes = [7, 8, 128], strides = [1, 1, 1]} : vector<8x8x128xf32> to vector<7x8x128xf32>
    %12 = tpu.concatenate %11, %8 in 0 : vector<7x8x128xf32>, vector<1x8x128xf32> -> vector<8x8x128xf32>
    %cst = arith.constant 2.500000e-01 : f32
    %13 = vector.broadcast %cst : f32 to vector<8x8x128xf32>
    %14 = arith.mulf %13, %10 : vector<8x8x128xf32>
    %cst_11 = arith.constant 7.500000e-01 : f32
    %15 = vector.broadcast %cst_11 : f32 to vector<8x8x128xf32>
    %16 = arith.mulf %15, %5 : vector<8x8x128xf32>
    %17 = arith.addf %14, %16 : vector<8x8x128xf32>
    %cst_12 = arith.constant 7.500000e-01 : f32
    %18 = vector.broadcast %cst_12 : f32 to vector<8x8x128xf32>
    %19 = arith.mulf %18, %5 : vector<8x8x128xf32>
    %cst_13 = arith.constant 2.500000e-01 : f32
    %20 = vector.broadcast %cst_13 : f32 to vector<8x8x128xf32>
    %21 = arith.mulf %20, %12 : vector<8x8x128xf32>
    %22 = arith.addf %19, %21 : vector<8x8x128xf32>
    %23 = vector.extract_strided_slice %17 {offsets = [0, 0, 0], sizes = [8, 1, 128], strides = [1, 1, 1]} : vector<8x8x128xf32> to vector<8x1x128xf32>
    %24 = vector.extract_strided_slice %17 {offsets = [0, 0, 0], sizes = [8, 7, 128], strides = [1, 1, 1]} : vector<8x8x128xf32> to vector<8x7x128xf32>
    %25 = tpu.concatenate %23, %24 in 1 : vector<8x1x128xf32>, vector<8x7x128xf32> -> vector<8x8x128xf32>
    %26 = vector.extract_strided_slice %17 {offsets = [0, 1, 0], sizes = [8, 7, 128], strides = [1, 1, 1]} : vector<8x8x128xf32> to vector<8x7x128xf32>
    %27 = vector.extract_strided_slice %17 {offsets = [0, 7, 0], sizes = [8, 1, 128], strides = [1, 1, 1]} : vector<8x8x128xf32> to vector<8x1x128xf32>
    %28 = tpu.concatenate %26, %27 in 1 : vector<8x7x128xf32>, vector<8x1x128xf32> -> vector<8x8x128xf32>
    %cst_14 = arith.constant 2.500000e-01 : f32
    %29 = vector.broadcast %cst_14 : f32 to vector<8x8x128xf32>
    %30 = arith.mulf %29, %25 : vector<8x8x128xf32>
    %cst_15 = arith.constant 7.500000e-01 : f32
    %31 = vector.broadcast %cst_15 : f32 to vector<8x8x128xf32>
    %32 = arith.mulf %31, %17 : vector<8x8x128xf32>
    %33 = arith.addf %30, %32 : vector<8x8x128xf32>
    %cst_16 = arith.constant 7.500000e-01 : f32
    %34 = vector.broadcast %cst_16 : f32 to vector<8x8x128xf32>
    %35 = arith.mulf %34, %17 : vector<8x8x128xf32>
    %cst_17 = arith.constant 2.500000e-01 : f32
    %36 = vector.broadcast %cst_17 : f32 to vector<8x8x128xf32>
    %37 = arith.mulf %36, %28 : vector<8x8x128xf32>
    %38 = arith.addf %35, %37 : vector<8x8x128xf32>
    %39 = arith.mulf %33, %33 : vector<8x8x128xf32>
    %cst_18 = arith.constant dense<0.000000e+00> : vector<8x8xf32>
    %40 = vector.multi_reduction <add>, %39, %cst_18 [2] : vector<8x8x128xf32> to vector<8x8xf32>
    %41 = vector.shape_cast %40 : vector<8x8xf32> to vector<8x8x1xf32>
    %cst_19 = arith.constant 1.000000e-24 : f32
    %42 = vector.broadcast %cst_19 : f32 to vector<8x8x1xf32>
    %43 = arith.maximumf %41, %42 : vector<8x8x1xf32>
    %44 = math.rsqrt %43 : vector<8x8x1xf32>
    %45 = vector.broadcast %44 : vector<8x8x1xf32> to vector<8x8x128xf32>
    %46 = arith.mulf %33, %45 : vector<8x8x128xf32>
    %47 = arith.mulf %38, %38 : vector<8x8x128xf32>
    %cst_20 = arith.constant dense<0.000000e+00> : vector<8x8xf32>
    %48 = vector.multi_reduction <add>, %47, %cst_20 [2] : vector<8x8x128xf32> to vector<8x8xf32>
    %49 = vector.shape_cast %48 : vector<8x8xf32> to vector<8x8x1xf32>
    %cst_21 = arith.constant 1.000000e-24 : f32
    %50 = vector.broadcast %cst_21 : f32 to vector<8x8x1xf32>
    %51 = arith.maximumf %49, %50 : vector<8x8x1xf32>
    %52 = math.rsqrt %51 : vector<8x8x1xf32>
    %53 = vector.broadcast %52 : vector<8x8x1xf32> to vector<8x8x128xf32>
    %54 = arith.mulf %38, %53 : vector<8x8x128xf32>
    %55 = vector.extract_strided_slice %22 {offsets = [0, 0, 0], sizes = [8, 1, 128], strides = [1, 1, 1]} : vector<8x8x128xf32> to vector<8x1x128xf32>
    %56 = vector.extract_strided_slice %22 {offsets = [0, 0, 0], sizes = [8, 7, 128], strides = [1, 1, 1]} : vector<8x8x128xf32> to vector<8x7x128xf32>
    %57 = tpu.concatenate %55, %56 in 1 : vector<8x1x128xf32>, vector<8x7x128xf32> -> vector<8x8x128xf32>
    %58 = vector.extract_strided_slice %22 {offsets = [0, 1, 0], sizes = [8, 7, 128], strides = [1, 1, 1]} : vector<8x8x128xf32> to vector<8x7x128xf32>
    %59 = vector.extract_strided_slice %22 {offsets = [0, 7, 0], sizes = [8, 1, 128], strides = [1, 1, 1]} : vector<8x8x128xf32> to vector<8x1x128xf32>
    %60 = tpu.concatenate %58, %59 in 1 : vector<8x7x128xf32>, vector<8x1x128xf32> -> vector<8x8x128xf32>
    %cst_22 = arith.constant 2.500000e-01 : f32
    %61 = vector.broadcast %cst_22 : f32 to vector<8x8x128xf32>
    %62 = arith.mulf %61, %57 : vector<8x8x128xf32>
    %cst_23 = arith.constant 7.500000e-01 : f32
    %63 = vector.broadcast %cst_23 : f32 to vector<8x8x128xf32>
    %64 = arith.mulf %63, %22 : vector<8x8x128xf32>
    %65 = arith.addf %62, %64 : vector<8x8x128xf32>
    %cst_24 = arith.constant 7.500000e-01 : f32
    %66 = vector.broadcast %cst_24 : f32 to vector<8x8x128xf32>
    %67 = arith.mulf %66, %22 : vector<8x8x128xf32>
    %cst_25 = arith.constant 2.500000e-01 : f32
    %68 = vector.broadcast %cst_25 : f32 to vector<8x8x128xf32>
    %69 = arith.mulf %68, %60 : vector<8x8x128xf32>
    %70 = arith.addf %67, %69 : vector<8x8x128xf32>
    %71 = arith.mulf %65, %65 : vector<8x8x128xf32>
    %cst_26 = arith.constant dense<0.000000e+00> : vector<8x8xf32>
    %72 = vector.multi_reduction <add>, %71, %cst_26 [2] : vector<8x8x128xf32> to vector<8x8xf32>
    %73 = vector.shape_cast %72 : vector<8x8xf32> to vector<8x8x1xf32>
    %cst_27 = arith.constant 1.000000e-24 : f32
    %74 = vector.broadcast %cst_27 : f32 to vector<8x8x1xf32>
    %75 = arith.maximumf %73, %74 : vector<8x8x1xf32>
    %76 = math.rsqrt %75 : vector<8x8x1xf32>
    %77 = vector.broadcast %76 : vector<8x8x1xf32> to vector<8x8x128xf32>
    %78 = arith.mulf %65, %77 : vector<8x8x128xf32>
    %79 = arith.mulf %70, %70 : vector<8x8x128xf32>
    %cst_28 = arith.constant dense<0.000000e+00> : vector<8x8xf32>
    %80 = vector.multi_reduction <add>, %79, %cst_28 [2] : vector<8x8x128xf32> to vector<8x8xf32>
    %81 = vector.shape_cast %80 : vector<8x8xf32> to vector<8x8x1xf32>
    %cst_29 = arith.constant 1.000000e-24 : f32
    %82 = vector.broadcast %cst_29 : f32 to vector<8x8x1xf32>
    %83 = arith.maximumf %81, %82 : vector<8x8x1xf32>
    %84 = math.rsqrt %83 : vector<8x8x1xf32>
    %85 = vector.broadcast %84 : vector<8x8x1xf32> to vector<8x8x128xf32>
    %86 = arith.mulf %70, %85 : vector<8x8x128xf32>
    %87 = arith.truncf %46 : vector<8x8x128xf32> to vector<8x8x128xbf16>
    %c0_30 = arith.constant 0 : index
    %c0_31 = arith.constant 0 : index
    %c0_32 = arith.constant 0 : index
    %c0_33 = arith.constant 0 : index
    %c0_34 = arith.constant 0 : index
    %88 = vector.load %arg5[%c0_30, %c0_31, %c0_32, %c0_33, %c0_34] : memref<1x4x8x8x128xbf16, #tpu.memory_space<vmem>>, vector<1x1x8x8x128xbf16>
    %89 = vector.shape_cast %88 : vector<1x1x8x8x128xbf16> to vector<8x8x128xbf16>
    %90 = vector.shape_cast %87 : vector<8x8x128xbf16> to vector<1x1x8x8x128xbf16>
    tpu.vector_store %arg5[%c0_30, %c0_31, %c0_32, %c0_33, %c0_34], %90 {strides = array<i32>} : memref<1x4x8x8x128xbf16, #tpu.memory_space<vmem>>, vector<1x1x8x8x128xbf16>,
    %91 = arith.truncf %54 : vector<8x8x128xf32> to vector<8x8x128xbf16>
    %c0_35 = arith.constant 0 : index
    %c1 = arith.constant 1 : index
    %c0_36 = arith.constant 0 : index
    %c0_37 = arith.constant 0 : index
    %c0_38 = arith.constant 0 : index
    %92 = vector.load %arg5[%c0_35, %c1, %c0_36, %c0_37, %c0_38] : memref<1x4x8x8x128xbf16, #tpu.memory_space<vmem>>, vector<1x1x8x8x128xbf16>
    %93 = vector.shape_cast %92 : vector<1x1x8x8x128xbf16> to vector<8x8x128xbf16>
    %94 = vector.shape_cast %91 : vector<8x8x128xbf16> to vector<1x1x8x8x128xbf16>
    tpu.vector_store %arg5[%c0_35, %c1, %c0_36, %c0_37, %c0_38], %94 {strides = array<i32>} : memref<1x4x8x8x128xbf16, #tpu.memory_space<vmem>>, vector<1x1x8x8x128xbf16>,
    %95 = arith.truncf %78 : vector<8x8x128xf32> to vector<8x8x128xbf16>
    %c0_39 = arith.constant 0 : index
    %c2 = arith.constant 2 : index
    %c0_40 = arith.constant 0 : index
    %c0_41 = arith.constant 0 : index
    %c0_42 = arith.constant 0 : index
    %96 = vector.load %arg5[%c0_39, %c2, %c0_40, %c0_41, %c0_42] : memref<1x4x8x8x128xbf16, #tpu.memory_space<vmem>>, vector<1x1x8x8x128xbf16>
    %97 = vector.shape_cast %96 : vector<1x1x8x8x128xbf16> to vector<8x8x128xbf16>
    %98 = vector.shape_cast %95 : vector<8x8x128xbf16> to vector<1x1x8x8x128xbf16>
    tpu.vector_store %arg5[%c0_39, %c2, %c0_40, %c0_41, %c0_42], %98 {strides = array<i32>} : memref<1x4x8x8x128xbf16, #tpu.memory_space<vmem>>, vector<1x1x8x8x128xbf16>,
    %99 = arith.truncf %86 : vector<8x8x128xf32> to vector<8x8x128xbf16>
    %c0_43 = arith.constant 0 : index
    %c3 = arith.constant 3 : index
    %c0_44 = arith.constant 0 : index
    %c0_45 = arith.constant 0 : index
    %c0_46 = arith.constant 0 : index
    %100 = vector.load %arg5[%c0_43, %c3, %c0_44, %c0_45, %c0_46] : memref<1x4x8x8x128xbf16, #tpu.memory_space<vmem>>, vector<1x1x8x8x128xbf16>
    %101 = vector.shape_cast %100 : vector<1x1x8x8x128xbf16> to vector<8x8x128xbf16>
    %102 = vector.shape_cast %99 : vector<8x8x128xbf16> to vector<1x1x8x8x128xbf16>
    tpu.vector_store %arg5[%c0_43, %c3, %c0_44, %c0_45, %c0_46], %102 {strides = array<i32>} : memref<1x4x8x8x128xbf16, #tpu.memory_space<vmem>>, vector<1x1x8x8x128xbf16>,
    return
  }
  func.func @transform_0(%arg0: i32, %arg1: i32) -> (i32, i32, i32, i32) {
    %c8_i32 = arith.constant 8 : i32
    %0 = arith.muli %arg1, %c8_i32 : i32
    %c1_i32 = arith.constant 1 : i32
    %1 = arith.subi %0, %c1_i32 : i32
    %c0_i32 = arith.constant 0 : i32
    %2 = arith.maxsi %1, %c0_i32 : i32
    %c0_i32_0 = arith.constant 0 : i32
    %c0_i32_1 = arith.constant 0 : i32
    %c0_i32_2 = arith.constant 0 : i32
    return %arg0, %2, %c0_i32_0, %c0_i32_1 : i32, i32, i32, i32
  }
  func.func @transform_1(%arg0: i32, %arg1: i32) -> (i32, i32, i32, i32) {
    %c0_i32 = arith.constant 0 : i32
    %c0_i32_0 = arith.constant 0 : i32
    %c0_i32_1 = arith.constant 0 : i32
    return %arg0, %arg1, %c0_i32, %c0_i32_0 : i32, i32, i32, i32
  }
  func.func @transform_2(%arg0: i32, %arg1: i32) -> (i32, i32, i32, i32) {
    %c8_i32 = arith.constant 8 : i32
    %0 = arith.muli %arg1, %c8_i32 : i32
    %c8_i32_0 = arith.constant 8 : i32
    %1 = arith.addi %0, %c8_i32_0 : i32
    %c7_i32 = arith.constant 7 : i32
    %2 = arith.minsi %1, %c7_i32 : i32
    %c0_i32 = arith.constant 0 : i32
    %c0_i32_1 = arith.constant 0 : i32
    %c0_i32_2 = arith.constant 0 : i32
    return %arg0, %2, %c0_i32, %c0_i32_1 : i32, i32, i32, i32
  }
  func.func @transform_3(%arg0: i32, %arg1: i32) -> (i32, i32, i32, i32, i32) {
    %c0_i32 = arith.constant 0 : i32
    %c0_i32_0 = arith.constant 0 : i32
    %c0_i32_1 = arith.constant 0 : i32
    %c0_i32_2 = arith.constant 0 : i32
    return %arg0, %c0_i32, %arg1, %c0_i32_0, %c0_i32_1 : i32, i32, i32, i32, i32
  }
}

</mosaic_0001>

<llo_original>
// kernel: feature_extractor_forward.3
$region0: #{feature_extractor_forward.3}
  #allocation0 [shape = 'u32[]', space=smem, size = 0x4, offset = 0x4, fixed_abs, tag = 'smem constant byte address 0x4 - core index']
  #allocation1 [shape = 'u32[72,128]{1,0:T(1,128)}', space=vmem, size = 0x9000, scoped, tag = 'internal scratch']
  %s0 = inlined_call_operand.vmem [shape: bf16[2,8,8,128], index: 0, kind: input, shape index: {}, may-alias: {0,1,2}]
  %s1 = inlined_call_operand.vmem [shape: bf16[2,8,8,128], index: 1, kind: input, shape index: {}, may-alias: {0,1,2}]
  %s2 = inlined_call_operand.vmem [shape: bf16[2,8,8,128], index: 2, kind: input, shape index: {}, may-alias: {0,1,2}]
  %s3 = inlined_call_operand.vmem [shape: bf16[2,4,8,8,128], index: 3, kind: output, shape index: {}]
  %s4 = sld [smem:[#allocation0]]
  $region45: #{feature_extractor_forward.3} parent=0
    _
  %s6 = ssub.s32 1, %s4
  %s7 = scalar_select 0, %s6, %s4
  loop: start=0, step=1, limit=4
  $region2: #{feature_extractor_forward.3} parent=0 // loop_pre_header
    _
  $region3: #{feature_extractor_forward.3} parent=0 // loop_header
    %s9 = sphi 0, %s13
    %p10 = scmp.ge.s32.totalorder %s9, 4
    %s16 = sphi 0, %s28
    %s17 = sphi 0, %s24
    %s18 = sphi 0, %s16
    %s19 = sphi 0, %s17
    %s20 = sphi 0, %s18
    %s21 = sphi 0, %s19
    %s41 = sphi 0, %s43
    %s44 = sphi 0, %s41
    %s45 = sphi 0, %s44
    %s61 = sphi 0, %s45
    %s69 = sphi 0, %s71
    %s72 = sphi 0, %s69
    %s73 = sphi 0, %s72
    %s89 = sphi 0, %s73
    %s105 = sphi 0, %s107
    %s108 = sphi 0, %s105
    %s109 = sphi 0, %s108
    %s125 = sphi 0, %s109
    %s133 = sphi 0, %s135
    %s136 = sphi 0, %s133
    %s137 = sphi 0, %s136
    %s153 = sphi 0, %s137
  $region4: #{feature_extractor_forward.3} parent=0 // loop_header_branch
    %12 = sbr.rel (%p10) target = $region8
  $region5: #{feature_extractor_forward.3} parent=0 // loop_body
    %s14 = ssub.s32 %s9, 1
    %s15 = ssub.s32 %s9, 2
    %s22 = sadd.s32 1, %s17
    %p23 = scmp.ge.s32.totalorder %s22, 1
    %s24 = scalar_select %p23, 0, %s22
    %s25 = sadd.s32 1, %s16
    %s26 = scalar_select %p23, %s25, %s16
    %p27 = scmp.ge.s32.totalorder %s26, 2
    %s28 = scalar_select %p27, 0, %s26
    %s29 = smul.u32 %s17, 8
    %s30 = ssub.s32 %s29, 1
    %p31 = scmp.gt.s32.totalorder %s30, 0
    %s32 = scalar_select %p31, %s30, 0
    %s33 = smul.u32 %s24, 8
    %s34 = ssub.s32 %s33, 1
    %p35 = scmp.gt.s32.totalorder %s34, 0
    %s36 = scalar_select %p35, %s34, 0
    %s37 = ssub.s32 %s16, %s28
    %s38 = ssub.s32 %s32, %s36
    %s39 = sor.u32 %s37, %s38
    %p40 = scmp.eq.s32.totalorder %s39, 0
    %s42 = sadd.s32 %s41, 1
    %s43 = scalar_select %p40, %s41, %s42
    %p46 = pneg %p40
    %p47 = scmp.eq.s32.totalorder %s9, 1
    %p48 = por %p46, %p47
    %p49 = scmp.ne.s32.totalorder %s41, %s44
    %p50 = scmp.eq.s32.totalorder %s9, 0
    %p51 = por %p49, %p50
    %p52 = scmp.ne.s32.totalorder %s41, %s44
    %p53 = scmp.eq.s32.totalorder %s14, 1
    %p54 = por %p52, %p53
    %p55 = scmp.ne.s32.totalorder %s44, %s45
    %p56 = scmp.eq.s32.totalorder %s14, 0
    %p57 = por %p55, %p56
    %p58 = scmp.ne.s32.totalorder %s44, %s45
    %p59 = scmp.eq.s32.totalorder %s15, 1
    %p60 = por %p58, %p59
    %p62 = scmp.ne.s32.totalorder %s45, %s61
    %p63 = scmp.eq.s32.totalorder %s15, 0
    %p64 = por %p62, %p63
    %s65 = ssub.s32 %s16, %s28
    %s66 = ssub.s32 %s17, %s24
    %s67 = sor.u32 %s65, %s66
    %p68 = scmp.eq.s32.totalorder %s67, 0
    %s70 = sadd.s32 %s69, 1
    %s71 = scalar_select %p68, %s69, %s70
    %p74 = pneg %p68
    %p75 = scmp.eq.s32.totalorder %s9, 1
    %p76 = por %p74, %p75
    %p77 = scmp.ne.s32.totalorder %s69, %s72
    %p78 = scmp.eq.s32.totalorder %s9, 0
    %p79 = por %p77, %p78
    %p80 = scmp.ne.s32.totalorder %s69, %s72
    %p81 = scmp.eq.s32.totalorder %s14, 1
    %p82 = por %p80, %p81
    %p83 = scmp.ne.s32.totalorder %s72, %s73
    %p84 = scmp.eq.s32.totalorder %s14, 0
    %p85 = por %p83, %p84
    %p86 = scmp.ne.s32.totalorder %s72, %s73
    %p87 = scmp.eq.s32.totalorder %s15, 1
    %p88 = por %p86, %p87
    %p90 = scmp.ne.s32.totalorder %s73, %s89
    %p91 = scmp.eq.s32.totalorder %s15, 0
    %p92 = por %p90, %p91
    %s93 = smul.u32 %s17, 8
    %s94 = sadd.s32 %s93, 8
    %p95 = scmp.lt.s32.totalorder %s94, 7
    %s96 = scalar_select %p95, %s94, 7
    %s97 = smul.u32 %s24, 8
    %s98 = sadd.s32 %s97, 8
    %p99 = scmp.lt.s32.totalorder %s98, 7
    %s100 = scalar_select %p99, %s98, 7
    %s101 = ssub.s32 %s16, %s28
    %s102 = ssub.s32 %s96, %s100
    %s103 = sor.u32 %s101, %s102
    %p104 = scmp.eq.s32.totalorder %s103, 0
    %s106 = sadd.s32 %s105, 1
    %s107 = scalar_select %p104, %s105, %s106
    %p110 = pneg %p104
    %p111 = scmp.eq.s32.totalorder %s9, 1
    %p112 = por %p110, %p111
    %p113 = scmp.ne.s32.totalorder %s105, %s108
    %p114 = scmp.eq.s32.totalorder %s9, 0
    %p115 = por %p113, %p114
    %p116 = scmp.ne.s32.totalorder %s105, %s108
    %p117 = scmp.eq.s32.totalorder %s14, 1
    %p118 = por %p116, %p117
    %p119 = scmp.ne.s32.totalorder %s108, %s109
    %p120 = scmp.eq.s32.totalorder %s14, 0
    %p121 = por %p119, %p120
    %p122 = scmp.ne.s32.totalorder %s108, %s109
    %p123 = scmp.eq.s32.totalorder %s15, 1
    %p124 = por %p122, %p123
    %p126 = scmp.ne.s32.totalorder %s109, %s125
    %p127 = scmp.eq.s32.totalorder %s15, 0
    %p128 = por %p126, %p127
    %s129 = ssub.s32 %s16, %s28
    %s130 = ssub.s32 %s17, %s24
    %s131 = sor.u32 %s129, %s130
    %p132 = scmp.eq.s32.totalorder %s131, 0
    %s134 = sadd.s32 %s133, 1
    %s135 = scalar_select %p132, %s133, %s134
    %p138 = pneg %p132
    %p139 = scmp.eq.s32.totalorder %s9, 1
    %p140 = por %p138, %p139
    %p141 = scmp.ne.s32.totalorder %s133, %s136
    %p142 = scmp.eq.s32.totalorder %s9, 0
    %p143 = por %p141, %p142
    %p144 = scmp.ne.s32.totalorder %s133, %s136
    %p145 = scmp.eq.s32.totalorder %s14, 1
    %p146 = por %p144, %p145
    %p147 = scmp.ne.s32.totalorder %s136, %s137
    %p148 = scmp.eq.s32.totalorder %s14, 0
    %p149 = por %p147, %p148
    %p150 = scmp.ne.s32.totalorder %s136, %s137
    %p151 = scmp.eq.s32.totalorder %s15, 1
    %p152 = por %p150, %p151
    %p154 = scmp.ne.s32.totalorder %s137, %s153
    %p155 = scmp.eq.s32.totalorder %s15, 0
    %p156 = por %p154, %p155
    %p157 = scmp.le.s32.totalorder 1, %s9
    %p158 = scmp.lt.s32.totalorder %s9, 3
    %p159 = pnand %p157, %p158
    %p160 = pneg %p159
    // Predicated region
    $region9: #{feature_extractor_forward.3} parent=5 // pred_check
      _
    $region10: #{feature_extractor_forward.3} parent=5 // pred_check_branch
      %162 = sbr.rel (%p159) target = $region12
    $region11: #{feature_extractor_forward.3} parent=5 // pred_region
      %s163 = ssub.s32 %s9, 1
    $region12: #{feature_extractor_forward.3} parent=5 // pred_fallthru
      _
    %p164 = scmp.lt.s32.totalorder %s9, 2
    // Predicated region
    $region13: #{feature_extractor_forward.3} parent=5 // pred_check
      %p165 = pneg %p164
    $region14: #{feature_extractor_forward.3} parent=5 // pred_check_branch
      %167 = sbr.rel (%p165) target = $region16
    $region15: #{feature_extractor_forward.3} parent=5 // pred_region
      // Predicated region
      $region17: #{feature_extractor_forward.3} parent=15 // pred_check
        %p168 = pneg %p51
      $region18: #{feature_extractor_forward.3} parent=15 // pred_check_branch
        %170 = sbr.rel (%p168) target = $region20
      $region19: #{feature_extractor_forward.3} parent=15 // pred_region
        %s171 = smul.u32 %s17, 8
        %s172 = ssub.s32 %s171, 1
        %p173 = scmp.gt.s32.totalorder %s172, 0
        %s174 = scalar_select %p173, %s172, 0
        %p175 = scmp.lt.s32.totalorder %s16, 1
        %s176 = scalar_select %p175, %s16, 1
        %p177 = scmp.lt.s32.totalorder %s174, 7
        %s178 = scalar_select %p177, %s174, 7
        %s179 = smul.addr %s176, 8
        %s180 = sadd.s32 %s178, %s179
        %s181 = smul.addr %s180, 4
        %s182 = scalar_lea.vmem %s0, %s181
        %s183 = smul.u32 %s17, 8
        %s184 = ssub.s32 %s183, 1
        %p185 = scmp.gt.s32.totalorder %s184, 0
        %s186 = scalar_select %p185, %s184, 0
      $region20: #{feature_extractor_forward.3} parent=15 // pred_fallthru
        _
      // Predicated region
      $region21: #{feature_extractor_forward.3} parent=15 // pred_check
        %p187 = pneg %p79
      $region22: #{feature_extractor_forward.3} parent=15 // pred_check_branch
        %189 = sbr.rel (%p187) target = $region24
      $region23: #{feature_extractor_forward.3} parent=15 // pred_region
        %s190 = smul.u32 8, %s17
        %p191 = scmp.lt.s32.totalorder %s16, 1
        %s192 = scalar_select %p191, %s16, 1
        %p193 = scmp.lt.s32.totalorder %s190, 7
        %s194 = scalar_select %p193, %s190, 7
        %s195 = smul.addr %s192, 8
        %s196 = sadd.s32 %s194, %s195
        %s197 = smul.addr %s196, 4
        %s198 = scalar_lea.vmem %s1, %s197
        %s199 = smul.u32 8, %s17
      $region24: #{feature_extractor_forward.3} parent=15 // pred_fallthru
        _
      // Predicated region
      $region25: #{feature_extractor_forward.3} parent=15 // pred_check
        %p200 = pneg %p115
      $region26: #{feature_extractor_forward.3} parent=15 // pred_check_branch
        %202 = sbr.rel (%p200) target = $region28
      $region27: #{feature_extractor_forward.3} parent=15 // pred_region
        %s203 = smul.u32 %s17, 8
        %s204 = sadd.s32 %s203, 8
        %p205 = scmp.lt.s32.totalorder %s204, 7
        %s206 = scalar_select %p205, %s204, 7
        %p207 = scmp.lt.s32.totalorder %s16, 1
        %s208 = scalar_select %p207, %s16, 1
        %p209 = scmp.lt.s32.totalorder %s206, 7
        %s210 = scalar_select %p209, %s206, 7
        %s211 = smul.addr %s208, 8
        %s212 = sadd.s32 %s210, %s211
        %s213 = smul.addr %s212, 4
        %s214 = scalar_lea.vmem %s2, %s213
        %s215 = smul.u32 %s17, 8
        %s216 = sadd.s32 %s215, 8
        %p217 = scmp.lt.s32.totalorder %s216, 7
        %s218 = scalar_select %p217, %s216, 7
      $region28: #{feature_extractor_forward.3} parent=15 // pred_fallthru
        _
    $region16: #{feature_extractor_forward.3} parent=5 // pred_fallthru
      _
    %p219 = scmp.le.s32.totalorder 1, %s9
    %p220 = scmp.lt.s32.totalorder %s9, 3
    %p221 = pnand %p219, %p220
    %p222 = pneg %p221
    // Predicated region
    $region29: #{feature_extractor_forward.3} parent=5 // pred_check
      _
    $region30: #{feature_extractor_forward.3} parent=5 // pred_check_branch
      %224 = sbr.rel (%p221) target = $region32
    $region31: #{feature_extractor_forward.3} parent=5 // pred_region
      %s225 = ssub.s32 %s9, 1
      %s226 = smul.u32 %s19, 8
      %s227 = ssub.s32 %s226, 1
      %p228 = scmp.gt.s32.totalorder %s227, 0
      %s229 = scalar_select %p228, %s227, 0
      %p230 = scmp.lt.s32.totalorder %s18, 1
      %s231 = scalar_select %p230, %s18, 1
      %p232 = scmp.lt.s32.totalorder %s229, 7
      %s233 = scalar_select %p232, %s229, 7
      %s234 = smul.addr %s231, 8
      %s235 = sadd.s32 %s233, %s234
      %s236 = smul.addr %s235, 4
      %s237 = scalar_lea.vmem %s0, %s236
      %p238 = pneg %p57
      %p239 = pneg %p54
      %s240 = smul.u32 8, %s19
      %p241 = scmp.lt.s32.totalorder %s18, 1
      %s242 = scalar_select %p241, %s18, 1
      %p243 = scmp.lt.s32.totalorder %s240, 7
      %s244 = scalar_select %p243, %s240, 7
      %s245 = smul.addr %s242, 8
      %s246 = sadd.s32 %s244, %s245
      %s247 = smul.addr %s246, 4
      %s248 = scalar_lea.vmem %s1, %s247
      %p249 = pneg %p85
      %p250 = pneg %p82
      %s251 = smul.u32 %s19, 8
      %s252 = sadd.s32 %s251, 8
      %p253 = scmp.lt.s32.totalorder %s252, 7
      %s254 = scalar_select %p253, %s252, 7
      %p255 = scmp.lt.s32.totalorder %s18, 1
      %s256 = scalar_select %p255, %s18, 1
      %p257 = scmp.lt.s32.totalorder %s254, 7
      %s258 = scalar_select %p257, %s254, 7
      %s259 = smul.addr %s256, 8
      %s260 = sadd.s32 %s258, %s259
      %s261 = smul.addr %s260, 4
      %s262 = scalar_lea.vmem %s2, %s261
      %p263 = pneg %p121
      %p264 = pneg %p118
      %p265 = pneg %p149
      %p266 = pneg %p146
      %s267 = smul.u32 8, %s19
      %p268 = scmp.lt.s32.totalorder %s18, 1
      %s269 = scalar_select %p268, %s18, 1
      %p270 = scmp.lt.s32.totalorder %s267, 7
      %s271 = scalar_select %p270, %s267, 7
      %s272 = smul.addr %s269, 32
      %s273 = sadd.s32 %s271, %s272
      %s274 = smul.addr %s273, 4
      %s275 = scalar_lea.vmem %s3, %s274
      %s276 = smul.u32 %s19, 8
      %s277 = ssub.s32 %s276, 1
      %p278 = scmp.gt.s32.totalorder %s277, 0
      %s279 = scalar_select %p278, %s277, 0
      %p280 = scmp.lt.s32.totalorder %s18, 1
      %s281 = scalar_select %p280, %s18, 1
      %p282 = scmp.lt.s32.totalorder %s279, 7
      %s283 = scalar_select %p282, %s279, 7
      %s284 = smul.addr %s281, 8
      %s285 = sadd.s32 %s283, %s284
      %s286 = smul.addr %s285, 4
      %s287 = scalar_lea.vmem %s0, %s286
      %s288 = smul.u32 %s19, 8
      %s289 = ssub.s32 %s288, 1
      %p290 = scmp.gt.s32.totalorder %s289, 0
      %s291 = scalar_select %p290, %s289, 0
      %s292 = smul.u32 8, %s19
      %p293 = scmp.lt.s32.totalorder %s18, 1
      %s294 = scalar_select %p293, %s18, 1
      %p295 = scmp.lt.s32.totalorder %s292, 7
      %s296 = scalar_select %p295, %s292, 7
      %s297 = smul.addr %s294, 8
      %s298 = sadd.s32 %s296, %s297
      %s299 = smul.addr %s298, 4
      %s300 = scalar_lea.vmem %s1, %s299
      %s301 = smul.u32 8, %s19
      %s302 = smul.u32 %s19, 8
      %s303 = sadd.s32 %s302, 8
      %p304 = scmp.lt.s32.totalorder %s303, 7
      %s305 = scalar_select %p304, %s303, 7
      %p306 = scmp.lt.s32.totalorder %s18, 1
      %s307 = scalar_select %p306, %s18, 1
      %p308 = scmp.lt.s32.totalorder %s305, 7
      %s309 = scalar_select %p308, %s305, 7
      %s310 = smul.addr %s307, 8
      %s311 = sadd.s32 %s309, %s310
      %s312 = smul.addr %s311, 4
      %s313 = scalar_lea.vmem %s2, %s312
      %s314 = smul.u32 %s19, 8
      %s315 = sadd.s32 %s314, 8
      %p316 = scmp.lt.s32.totalorder %s315, 7
      %s317 = scalar_select %p316, %s315, 7
      %s318 = smul.u32 8, %s19
      %p319 = scmp.lt.s32.totalorder %s18, 1
      %s320 = scalar_select %p319, %s18, 1
      %p321 = scmp.lt.s32.totalorder %s318, 7
      %s322 = scalar_select %p321, %s318, 7
      %s323 = smul.addr %s320, 32
      %s324 = sadd.s32 %s322, %s323
      %s325 = smul.addr %s324, 4
      %s326 = scalar_lea.vmem %s3, %s325
      %s327 = smul.u32 8, %s19
      %v328 = vld [vmem:[%s287] sm:$0xf]
      %v329 = vunpack.c.l.bf16 %v328
      %v330 = vld [vmem:[%s300] sm:$0xf]
      %v331 = vld [vmem:[%s300 + $0x4] sm:$0xf]
      %v332 = vld [vmem:[%s300 + $0x8] sm:$0xf]
      %v333 = vld [vmem:[%s300 + $0xc] sm:$0xf]
      %v334 = vld [vmem:[%s300 + $0x10] sm:$0xf]
      %v335 = vld [vmem:[%s300 + $0x14] sm:$0xf]
      %v336 = vld [vmem:[%s300 + $0x18] sm:$0xf]
      %v337 = vld [vmem:[%s300 + $0x1c] sm:$0xf]
      %v338 = vunpack.c.l.bf16 %v330
      %v339 = vunpack.c.l.bf16 %v331
      %v340 = vunpack.c.l.bf16 %v332
      %v341 = vunpack.c.l.bf16 %v333
      %v342 = vunpack.c.l.bf16 %v334
      %v343 = vunpack.c.l.bf16 %v335
      %v344 = vunpack.c.l.bf16 %v336
      %v345 = vunpack.c.l.bf16 %v337
      %v346 = vld [vmem:[%s313] sm:$0xf]
      %v347 = vunpack.c.l.bf16 %v346
      %v348 = vmul.f32 %v329, 0.25
      %v349 = vmul.f32 %v338, 0.25
      %v350 = vmul.f32 %v339, 0.25
      %v351 = vmul.f32 %v340, 0.25
      %v352 = vmul.f32 %v341, 0.25
      %v353 = vmul.f32 %v342, 0.25
      %v354 = vmul.f32 %v343, 0.25
      %v355 = vmul.f32 %v344, 0.25
      %v356 = vmul.f32 %v338, 0.75
      %v357 = vmul.f32 %v339, 0.75
      %v358 = vmul.f32 %v340, 0.75
      %v359 = vmul.f32 %v341, 0.75
      %v360 = vmul.f32 %v342, 0.75
      %v361 = vmul.f32 %v343, 0.75
      %v362 = vmul.f32 %v344, 0.75
      %v363 = vmul.f32 %v345, 0.75
      %v364 = vadd.f32 %v348, %v356
      %v365 = vadd.f32 %v349, %v357
      %v366 = vadd.f32 %v350, %v358
      %v367 = vadd.f32 %v351, %v359
      %v368 = vadd.f32 %v352, %v360
      %v369 = vadd.f32 %v353, %v361
      %v370 = vadd.f32 %v354, %v362
      %v371 = vadd.f32 %v355, %v363
      %v372 = vmul.f32 %v345, 0.25
      %v373 = vmul.f32 %v347, 0.25
      %v374 = vadd.f32 %v356, %v350
      %v375 = vadd.f32 %v357, %v351
      %v376 = vadd.f32 %v358, %v352
      %v377 = vadd.f32 %v359, %v353
      %v378 = vadd.f32 %v360, %v354
      %v379 = vadd.f32 %v361, %v355
      %v380 = vadd.f32 %v362, %v372
      %v381 = vadd.f32 %v363, %v373
      %v390 = vrot.slane %v364, 7
      %v391 = vrot.slane %v365, 7
      %v392 = vrot.slane %v366, 7
      %v393 = vrot.slane %v367, 7
      %v394 = vrot.slane %v368, 7
      %v395 = vrot.slane %v369, 7
      %v396 = vrot.slane %v370, 7
      %v397 = vrot.slane %v371, 7
      %vm406 = vcmask 1040384
      %v407 = vsel %vm406, %v364, %v390
      %v408 = vsel %vm406, %v365, %v391
      %v409 = vsel %vm406, %v366, %v392
      %v410 = vsel %vm406, %v367, %v393
      %v411 = vsel %vm406, %v368, %v394
      %v412 = vsel %vm406, %v369, %v395
      %v413 = vsel %vm406, %v370, %v396
      %v414 = vsel %vm406, %v371, %v397
      %v415 = vrot.slane %v364, 1
      %v416 = vrot.slane %v365, 1
      %v417 = vrot.slane %v366, 1
      %v418 = vrot.slane %v367, 1
      %v419 = vrot.slane %v368, 1
      %v420 = vrot.slane %v369, 1
      %v421 = vrot.slane %v370, 1
      %v422 = vrot.slane %v371, 1
      %vm431 = vcmask 1046528
      %v432 = vsel %vm431, %v415, %v364
      %v433 = vsel %vm431, %v416, %v365
      %v434 = vsel %vm431, %v417, %v366
      %v435 = vsel %vm431, %v418, %v367
      %v436 = vsel %vm431, %v419, %v368
      %v437 = vsel %vm431, %v420, %v369
      %v438 = vsel %vm431, %v421, %v370
      %v439 = vsel %vm431, %v422, %v371
      %v440 = vmul.f32 %v407, 0.25
      %v441 = vmul.f32 %v408, 0.25
      %v442 = vmul.f32 %v409, 0.25
      %v443 = vmul.f32 %v410, 0.25
      %v444 = vmul.f32 %v411, 0.25
      %v445 = vmul.f32 %v412, 0.25
      %v446 = vmul.f32 %v413, 0.25
      %v447 = vmul.f32 %v414, 0.25
      %v448 = vmul.f32 %v364, 0.75
      %v449 = vmul.f32 %v365, 0.75
      %v450 = vmul.f32 %v366, 0.75
      %v451 = vmul.f32 %v367, 0.75
      %v452 = vmul.f32 %v368, 0.75
      %v453 = vmul.f32 %v369, 0.75
      %v454 = vmul.f32 %v370, 0.75
      %v455 = vmul.f32 %v371, 0.75
      %v456 = vadd.f32 %v440, %v448
      %v457 = vadd.f32 %v441, %v449
      %v458 = vadd.f32 %v442, %v450
      %v459 = vadd.f32 %v443, %v451
      %v460 = vadd.f32 %v444, %v452
      %v461 = vadd.f32 %v445, %v453
      %v462 = vadd.f32 %v446, %v454
      %v463 = vadd.f32 %v447, %v455
      %v464 = vmul.f32 %v432, 0.25
      %v465 = vmul.f32 %v433, 0.25
      %v466 = vmul.f32 %v434, 0.25
      %v467 = vmul.f32 %v435, 0.25
      %v468 = vmul.f32 %v436, 0.25
      %v469 = vmul.f32 %v437, 0.25
      %v470 = vmul.f32 %v438, 0.25
      %v471 = vmul.f32 %v439, 0.25
      %v472 = vadd.f32 %v448, %v464
      %v473 = vadd.f32 %v449, %v465
      %v474 = vadd.f32 %v450, %v466
      %v475 = vadd.f32 %v451, %v467
      %v476 = vadd.f32 %v452, %v468
      %v477 = vadd.f32 %v453, %v469
      %v478 = vadd.f32 %v454, %v470
      %v479 = vadd.f32 %v455, %v471
      %v480 = vmul.f32 %v456, %v456
      %v481 = vmul.f32 %v457, %v457
      %v482 = vmul.f32 %v458, %v458
      %v483 = vmul.f32 %v459, %v459
      %v484 = vmul.f32 %v460, %v460
      %v485 = vmul.f32 %v461, %v461
      %v486 = vmul.f32 %v462, %v462
      %v487 = vmul.f32 %v463, %v463
      %488 = vadd.xlane.f32.xlu0 %v480
      %v489 = vpop.xlane.xlu0 %488
      %490 = vadd.xlane.f32.xlu0 %v481
      %v491 = vpop.xlane.xlu0 %490
      %492 = vadd.xlane.f32.xlu0 %v482
      %v493 = vpop.xlane.xlu0 %492
      %494 = vadd.xlane.f32.xlu0 %v483
      %v495 = vpop.xlane.xlu0 %494
      %496 = vadd.xlane.f32.xlu0 %v484
      %v497 = vpop.xlane.xlu0 %496
      %498 = vadd.xlane.f32.xlu0 %v485
      %v499 = vpop.xlane.xlu0 %498
      %500 = vadd.xlane.f32.xlu0 %v486
      %v501 = vpop.xlane.xlu0 %500
      %502 = vadd.xlane.f32.xlu0 %v487
      %v503 = vpop.xlane.xlu0 %502
      %v504 = vmax.f32 %v489, 1e-24
      %v505 = vmax.f32 %v491, 1e-24
      %v506 = vmax.f32 %v493, 1e-24
      %v507 = vmax.f32 %v495, 1e-24
      %v508 = vmax.f32 %v497, 1e-24
      %v509 = vmax.f32 %v499, 1e-24
      %v510 = vmax.f32 %v501, 1e-24
      %v511 = vmax.f32 %v503, 1e-24
      %v512 = vrsqrt.pop %v504
      %v513 = vmul.f32 %v512, %v504
      %v514 = vmul.f32 %v513, %v512
      %v515 = vmul.f32 0.5, %v514
      %v516 = vsub.f32 1.5, %v515
      %v517 = vmul.f32 %v512, %v516
      %vm518 = vweird.f32 %v504
      %vm519 = vweird.f32 %v512
      %vm520 = vmor %vm518, %vm519
      %v521 = vsel %vm520, %v512, %v517
      %v522 = vrsqrt.pop %v505
      %v523 = vmul.f32 %v522, %v505
      %v524 = vmul.f32 %v523, %v522
      %v525 = vmul.f32 0.5, %v524
      %v526 = vsub.f32 1.5, %v525
      %v527 = vmul.f32 %v522, %v526
      %vm528 = vweird.f32 %v505
      %vm529 = vweird.f32 %v522
      %vm530 = vmor %vm528, %vm529
      %v531 = vsel %vm530, %v522, %v527
      %v532 = vrsqrt.pop %v506
      %v533 = vmul.f32 %v532, %v506
      %v534 = vmul.f32 %v533, %v532
      %v535 = vmul.f32 0.5, %v534
      %v536 = vsub.f32 1.5, %v535
      %v537 = vmul.f32 %v532, %v536
      %vm538 = vweird.f32 %v506
      %vm539 = vweird.f32 %v532
      %vm540 = vmor %vm538, %vm539
      %v541 = vsel %vm540, %v532, %v537
      %v542 = vrsqrt.pop %v507
      %v543 = vmul.f32 %v542, %v507
      %v544 = vmul.f32 %v543, %v542
      %v545 = vmul.f32 0.5, %v544
      %v546 = vsub.f32 1.5, %v545
      %v547 = vmul.f32 %v542, %v546
      %vm548 = vweird.f32 %v507
      %vm549 = vweird.f32 %v542
      %vm550 = vmor %vm548, %vm549
      %v551 = vsel %vm550, %v542, %v547
      %v552 = vrsqrt.pop %v508
      %v553 = vmul.f32 %v552, %v508
      %v554 = vmul.f32 %v553, %v552
      %v555 = vmul.f32 0.5, %v554
      %v556 = vsub.f32 1.5, %v555
      %v557 = vmul.f32 %v552, %v556
      %vm558 = vweird.f32 %v508
      %vm559 = vweird.f32 %v552
      %vm560 = vmor %vm558, %vm559
      %v561 = vsel %vm560, %v552, %v557
      %v562 = vrsqrt.pop %v509
      %v563 = vmul.f32 %v562, %v509
      %v564 = vmul.f32 %v563, %v562
      %v565 = vmul.f32 0.5, %v564
      %v566 = vsub.f32 1.5, %v565
      %v567 = vmul.f32 %v562, %v566
      %vm568 = vweird.f32 %v509
      %vm569 = vweird.f32 %v562
      %vm570 = vmor %vm568, %vm569
      %v571 = vsel %vm570, %v562, %v567
      %v572 = vrsqrt.pop %v510
      %v573 = vmul.f32 %v572, %v510
      %v574 = vmul.f32 %v573, %v572
      %v575 = vmul.f32 0.5, %v574
      %v576 = vsub.f32 1.5, %v575
      %v577 = vmul.f32 %v572, %v576
      %vm578 = vweird.f32 %v510
      %vm579 = vweird.f32 %v572
      %vm580 = vmor %vm578, %vm579
      %v581 = vsel %vm580, %v572, %v577
      %v582 = vrsqrt.pop %v511
      %v583 = vmul.f32 %v582, %v511
      %v584 = vmul.f32 %v583, %v582
      %v585 = vmul.f32 0.5, %v584
      %v586 = vsub.f32 1.5, %v585
      %v587 = vmul.f32 %v582, %v586
      %vm588 = vweird.f32 %v511
      %vm589 = vweird.f32 %v582
      %vm590 = vmor %vm588, %vm589
      %v591 = vsel %vm590, %v582, %v587
      %v592 = vmul.f32 %v456, %v521
      %v593 = vmul.f32 %v457, %v531
      %v594 = vmul.f32 %v458, %v541
      %v595 = vmul.f32 %v459, %v551
      %v596 = vmul.f32 %v460, %v561
      %v597 = vmul.f32 %v461, %v571
      %v598 = vmul.f32 %v462, %v581
      %v599 = vmul.f32 %v463, %v591
      %v600 = vmul.f32 %v472, %v472
      %v601 = vmul.f32 %v473, %v473
      %v602 = vmul.f32 %v474, %v474
      %v603 = vmul.f32 %v475, %v475
      %v604 = vmul.f32 %v476, %v476
      %v605 = vmul.f32 %v477, %v477
      %v606 = vmul.f32 %v478, %v478
      %v607 = vmul.f32 %v479, %v479
      %608 = vadd.xlane.f32.xlu0 %v600
      %v609 = vpop.xlane.xlu0 %608
      %610 = vadd.xlane.f32.xlu0 %v601
      %v611 = vpop.xlane.xlu0 %610
      %612 = vadd.xlane.f32.xlu0 %v602
      %v613 = vpop.xlane.xlu0 %612
      %614 = vadd.xlane.f32.xlu0 %v603
      %v615 = vpop.xlane.xlu0 %614
      %616 = vadd.xlane.f32.xlu0 %v604
      %v617 = vpop.xlane.xlu0 %616
      %618 = vadd.xlane.f32.xlu0 %v605
      %v619 = vpop.xlane.xlu0 %618
      %620 = vadd.xlane.f32.xlu0 %v606
      %v621 = vpop.xlane.xlu0 %620
      %622 = vadd.xlane.f32.xlu0 %v607
      %v623 = vpop.xlane.xlu0 %622
      %v624 = vmax.f32 %v609, 1e-24
      %v625 = vmax.f32 %v611, 1e-24
      %v626 = vmax.f32 %v613, 1e-24
      %v627 = vmax.f32 %v615, 1e-24
      %v628 = vmax.f32 %v617, 1e-24
      %v629 = vmax.f32 %v619, 1e-24
      %v630 = vmax.f32 %v621, 1e-24
      %v631 = vmax.f32 %v623, 1e-24
      %v632 = vrsqrt.pop %v624
      %v633 = vmul.f32 %v632, %v624
      %v634 = vmul.f32 %v633, %v632
      %v635 = vmul.f32 0.5, %v634
      %v636 = vsub.f32 1.5, %v635
      %v637 = vmul.f32 %v632, %v636
      %vm638 = vweird.f32 %v624
      %vm639 = vweird.f32 %v632
      %vm640 = vmor %vm638, %vm639
      %v641 = vsel %vm640, %v632, %v637
      %v642 = vrsqrt.pop %v625
      %v643 = vmul.f32 %v642, %v625
      %v644 = vmul.f32 %v643, %v642
      %v645 = vmul.f32 0.5, %v644
      %v646 = vsub.f32 1.5, %v645
      %v647 = vmul.f32 %v642, %v646
      %vm648 = vweird.f32 %v625
      %vm649 = vweird.f32 %v642
      %vm650 = vmor %vm648, %vm649
      %v651 = vsel %vm650, %v642, %v647
      %v652 = vrsqrt.pop %v626
      %v653 = vmul.f32 %v652, %v626
      %v654 = vmul.f32 %v653, %v652
      %v655 = vmul.f32 0.5, %v654
      %v656 = vsub.f32 1.5, %v655
      %v657 = vmul.f32 %v652, %v656
      %vm658 = vweird.f32 %v626
      %vm659 = vweird.f32 %v652
      %vm660 = vmor %vm658, %vm659
      %v661 = vsel %vm660, %v652, %v657
      %v662 = vrsqrt.pop %v627
      %v663 = vmul.f32 %v662, %v627
      %v664 = vmul.f32 %v663, %v662
      %v665 = vmul.f32 0.5, %v664
      %v666 = vsub.f32 1.5, %v665
      %v667 = vmul.f32 %v662, %v666
      %vm668 = vweird.f32 %v627
      %vm669 = vweird.f32 %v662
      %vm670 = vmor %vm668, %vm669
      %v671 = vsel %vm670, %v662, %v667
      %v672 = vrsqrt.pop %v628
      %v673 = vmul.f32 %v672, %v628
      %v674 = vmul.f32 %v673, %v672
      %v675 = vmul.f32 0.5, %v674
      %v676 = vsub.f32 1.5, %v675
      %v677 = vmul.f32 %v672, %v676
      %vm678 = vweird.f32 %v628
      %vm679 = vweird.f32 %v672
      %vm680 = vmor %vm678, %vm679
      %v681 = vsel %vm680, %v672, %v677
      %v682 = vrsqrt.pop %v629
      %v683 = vmul.f32 %v682, %v629
      %v684 = vmul.f32 %v683, %v682
      %v685 = vmul.f32 0.5, %v684
      %v686 = vsub.f32 1.5, %v685
      %v687 = vmul.f32 %v682, %v686
      %vm688 = vweird.f32 %v629
      %vm689 = vweird.f32 %v682
      %vm690 = vmor %vm688, %vm689
      %v691 = vsel %vm690, %v682, %v687
      %v692 = vrsqrt.pop %v630
      %v693 = vmul.f32 %v692, %v630
      %v694 = vmul.f32 %v693, %v692
      %v695 = vmul.f32 0.5, %v694
      %v696 = vsub.f32 1.5, %v695
      %v697 = vmul.f32 %v692, %v696
      %vm698 = vweird.f32 %v630
      %vm699 = vweird.f32 %v692
      %vm700 = vmor %vm698, %vm699
      %v701 = vsel %vm700, %v692, %v697
      %v702 = vrsqrt.pop %v631
      %v703 = vmul.f32 %v702, %v631
      %v704 = vmul.f32 %v703, %v702
      %v705 = vmul.f32 0.5, %v704
      %v706 = vsub.f32 1.5, %v705
      %v707 = vmul.f32 %v702, %v706
      %vm708 = vweird.f32 %v631
      %vm709 = vweird.f32 %v702
      %vm710 = vmor %vm708, %vm709
      %v711 = vsel %vm710, %v702, %v707
      %v712 = vmul.f32 %v472, %v641
      %v713 = vmul.f32 %v473, %v651
      %v714 = vmul.f32 %v474, %v661
      %v715 = vmul.f32 %v475, %v671
      %v716 = vmul.f32 %v476, %v681
      %v717 = vmul.f32 %v477, %v691
      %v718 = vmul.f32 %v478, %v701
      %v719 = vmul.f32 %v479, %v711
      %v728 = vrot.slane %v374, 7
      %v729 = vrot.slane %v375, 7
      %v730 = vrot.slane %v376, 7
      %v731 = vrot.slane %v377, 7
      %v732 = vrot.slane %v378, 7
      %v733 = vrot.slane %v379, 7
      %v734 = vrot.slane %v380, 7
      %v735 = vrot.slane %v381, 7
      %v744 = vsel %vm406, %v374, %v728
      %v745 = vsel %vm406, %v375, %v729
      %v746 = vsel %vm406, %v376, %v730
      %v747 = vsel %vm406, %v377, %v731
      %v748 = vsel %vm406, %v378, %v732
      %v749 = vsel %vm406, %v379, %v733
      %v750 = vsel %vm406, %v380, %v734
      %v751 = vsel %vm406, %v381, %v735
      %v752 = vrot.slane %v374, 1
      %v753 = vrot.slane %v375, 1
      %v754 = vrot.slane %v376, 1
      %v755 = vrot.slane %v377, 1
      %v756 = vrot.slane %v378, 1
      %v757 = vrot.slane %v379, 1
      %v758 = vrot.slane %v380, 1
      %v759 = vrot.slane %v381, 1
      %v768 = vsel %vm431, %v752, %v374
      %v769 = vsel %vm431, %v753, %v375
      %v770 = vsel %vm431, %v754, %v376
      %v771 = vsel %vm431, %v755, %v377
      %v772 = vsel %vm431, %v756, %v378
      %v773 = vsel %vm431, %v757, %v379
      %v774 = vsel %vm431, %v758, %v380
      %v775 = vsel %vm431, %v759, %v381
      %v776 = vmul.f32 %v744, 0.25
      %v777 = vmul.f32 %v745, 0.25
      %v778 = vmul.f32 %v746, 0.25
      %v779 = vmul.f32 %v747, 0.25
      %v780 = vmul.f32 %v748, 0.25
      %v781 = vmul.f32 %v749, 0.25
      %v782 = vmul.f32 %v750, 0.25
      %v783 = vmul.f32 %v751, 0.25
      %v784 = vmul.f32 %v374, 0.75
      %v785 = vmul.f32 %v375, 0.75
      %v786 = vmul.f32 %v376, 0.75
      %v787 = vmul.f32 %v377, 0.75
      %v788 = vmul.f32 %v378, 0.75
      %v789 = vmul.f32 %v379, 0.75
      %v790 = vmul.f32 %v380, 0.75
      %v791 = vmul.f32 %v381, 0.75
      %v792 = vadd.f32 %v776, %v784
      %v793 = vadd.f32 %v777, %v785
      %v794 = vadd.f32 %v778, %v786
      %v795 = vadd.f32 %v779, %v787
      %v796 = vadd.f32 %v780, %v788
      %v797 = vadd.f32 %v781, %v789
      %v798 = vadd.f32 %v782, %v790
      %v799 = vadd.f32 %v783, %v791
      %v800 = vmul.f32 %v768, 0.25
      %v801 = vmul.f32 %v769, 0.25
      %v802 = vmul.f32 %v770, 0.25
      %v803 = vmul.f32 %v771, 0.25
      %v804 = vmul.f32 %v772, 0.25
      %v805 = vmul.f32 %v773, 0.25
      %v806 = vmul.f32 %v774, 0.25
      %v807 = vmul.f32 %v775, 0.25
      %v808 = vadd.f32 %v784, %v800
      %v809 = vadd.f32 %v785, %v801
      %v810 = vadd.f32 %v786, %v802
      %v811 = vadd.f32 %v787, %v803
      %v812 = vadd.f32 %v788, %v804
      %v813 = vadd.f32 %v789, %v805
      %v814 = vadd.f32 %v790, %v806
      %v815 = vadd.f32 %v791, %v807
      %v816 = vmul.f32 %v792, %v792
      %v817 = vmul.f32 %v793, %v793
      %v818 = vmul.f32 %v794, %v794
      %v819 = vmul.f32 %v795, %v795
      %v820 = vmul.f32 %v796, %v796
      %v821 = vmul.f32 %v797, %v797
      %v822 = vmul.f32 %v798, %v798
      %v823 = vmul.f32 %v799, %v799
      %824 = vadd.xlane.f32.xlu0 %v816
      %v825 = vpop.xlane.xlu0 %824
      %826 = vadd.xlane.f32.xlu0 %v817
      %v827 = vpop.xlane.xlu0 %826
      %828 = vadd.xlane.f32.xlu0 %v818
      %v829 = vpop.xlane.xlu0 %828
      %830 = vadd.xlane.f32.xlu0 %v819
      %v831 = vpop.xlane.xlu0 %830
      %832 = vadd.xlane.f32.xlu0 %v820
      %v833 = vpop.xlane.xlu0 %832
      %834 = vadd.xlane.f32.xlu0 %v821
      %v835 = vpop.xlane.xlu0 %834
      %836 = vadd.xlane.f32.xlu0 %v822
      %v837 = vpop.xlane.xlu0 %836
      %838 = vadd.xlane.f32.xlu0 %v823
      %v839 = vpop.xlane.xlu0 %838
      %v840 = vmax.f32 %v825, 1e-24
      %v841 = vmax.f32 %v827, 1e-24
      %v842 = vmax.f32 %v829, 1e-24
      %v843 = vmax.f32 %v831, 1e-24
      %v844 = vmax.f32 %v833, 1e-24
      %v845 = vmax.f32 %v835, 1e-24
      %v846 = vmax.f32 %v837, 1e-24
      %v847 = vmax.f32 %v839, 1e-24
      %v848 = vrsqrt.pop %v840
      %v849 = vmul.f32 %v848, %v840
      %v850 = vmul.f32 %v849, %v848
      %v851 = vmul.f32 0.5, %v850
      %v852 = vsub.f32 1.5, %v851
      %v853 = vmul.f32 %v848, %v852
      %vm854 = vweird.f32 %v840
      %vm855 = vweird.f32 %v848
      %vm856 = vmor %vm854, %vm855
      %v857 = vsel %vm856, %v848, %v853
      %v858 = vrsqrt.pop %v841
      %v859 = vmul.f32 %v858, %v841
      %v860 = vmul.f32 %v859, %v858
      %v861 = vmul.f32 0.5, %v860
      %v862 = vsub.f32 1.5, %v861
      %v863 = vmul.f32 %v858, %v862
      %vm864 = vweird.f32 %v841
      %vm865 = vweird.f32 %v858
      %vm866 = vmor %vm864, %vm865
      %v867 = vsel %vm866, %v858, %v863
      %v868 = vrsqrt.pop %v842
      %v869 = vmul.f32 %v868, %v842
      %v870 = vmul.f32 %v869, %v868
      %v871 = vmul.f32 0.5, %v870
      %v872 = vsub.f32 1.5, %v871
      %v873 = vmul.f32 %v868, %v872
      %vm874 = vweird.f32 %v842
      %vm875 = vweird.f32 %v868
      %vm876 = vmor %vm874, %vm875
      %v877 = vsel %vm876, %v868, %v873
      %v878 = vrsqrt.pop %v843
      %v879 = vmul.f32 %v878, %v843
      %v880 = vmul.f32 %v879, %v878
      %v881 = vmul.f32 0.5, %v880
      %v882 = vsub.f32 1.5, %v881
      %v883 = vmul.f32 %v878, %v882
      %vm884 = vweird.f32 %v843
      %vm885 = vweird.f32 %v878
      %vm886 = vmor %vm884, %vm885
      %v887 = vsel %vm886, %v878, %v883
      %v888 = vrsqrt.pop %v844
      %v889 = vmul.f32 %v888, %v844
      %v890 = vmul.f32 %v889, %v888
      %v891 = vmul.f32 0.5, %v890
      %v892 = vsub.f32 1.5, %v891
      %v893 = vmul.f32 %v888, %v892
      %vm894 = vweird.f32 %v844
      %vm895 = vweird.f32 %v888
      %vm896 = vmor %vm894, %vm895
      %v897 = vsel %vm896, %v888, %v893
      %v898 = vrsqrt.pop %v845
      %v899 = vmul.f32 %v898, %v845
      %v900 = vmul.f32 %v899, %v898
      %v901 = vmul.f32 0.5, %v900
      %v902 = vsub.f32 1.5, %v901
      %v903 = vmul.f32 %v898, %v902
      %vm904 = vweird.f32 %v845
      %vm905 = vweird.f32 %v898
      %vm906 = vmor %vm904, %vm905
      %v907 = vsel %vm906, %v898, %v903
      %v908 = vrsqrt.pop %v846
      %v909 = vmul.f32 %v908, %v846
      %v910 = vmul.f32 %v909, %v908
      %v911 = vmul.f32 0.5, %v910
      %v912 = vsub.f32 1.5, %v911
      %v913 = vmul.f32 %v908, %v912
      %vm914 = vweird.f32 %v846
      %vm915 = vweird.f32 %v908
      %vm916 = vmor %vm914, %vm915
      %v917 = vsel %vm916, %v908, %v913
      %v918 = vrsqrt.pop %v847
      %v919 = vmul.f32 %v918, %v847
      %v920 = vmul.f32 %v919, %v918
      %v921 = vmul.f32 0.5, %v920
      %v922 = vsub.f32 1.5, %v921
      %v923 = vmul.f32 %v918, %v922
      %vm924 = vweird.f32 %v847
      %vm925 = vweird.f32 %v918
      %vm926 = vmor %vm924, %vm925
      %v927 = vsel %vm926, %v918, %v923
      %v928 = vmul.f32 %v792, %v857
      %v929 = vmul.f32 %v793, %v867
      %v930 = vmul.f32 %v794, %v877
      %v931 = vmul.f32 %v795, %v887
      %v932 = vmul.f32 %v796, %v897
      %v933 = vmul.f32 %v797, %v907
      %v934 = vmul.f32 %v798, %v917
      %v935 = vmul.f32 %v799, %v927
      %v936 = vmul.f32 %v808, %v808
      %v937 = vmul.f32 %v809, %v809
      %v938 = vmul.f32 %v810, %v810
      %v939 = vmul.f32 %v811, %v811
      %v940 = vmul.f32 %v812, %v812
      %v941 = vmul.f32 %v813, %v813
      %v942 = vmul.f32 %v814, %v814
      %v943 = vmul.f32 %v815, %v815
      %944 = vadd.xlane.f32.xlu0 %v936
      %v945 = vpop.xlane.xlu0 %944
      %946 = vadd.xlane.f32.xlu0 %v937
      %v947 = vpop.xlane.xlu0 %946
      %948 = vadd.xlane.f32.xlu0 %v938
      %v949 = vpop.xlane.xlu0 %948
      %950 = vadd.xlane.f32.xlu0 %v939
      %v951 = vpop.xlane.xlu0 %950
      %952 = vadd.xlane.f32.xlu0 %v940
      %v953 = vpop.xlane.xlu0 %952
      %954 = vadd.xlane.f32.xlu0 %v941
      %v955 = vpop.xlane.xlu0 %954
      %956 = vadd.xlane.f32.xlu0 %v942
      %v957 = vpop.xlane.xlu0 %956
      %958 = vadd.xlane.f32.xlu0 %v943
      %v959 = vpop.xlane.xlu0 %958
      %v960 = vmax.f32 %v945, 1e-24
      %v961 = vmax.f32 %v947, 1e-24
      %v962 = vmax.f32 %v949, 1e-24
      %v963 = vmax.f32 %v951, 1e-24
      %v964 = vmax.f32 %v953, 1e-24
      %v965 = vmax.f32 %v955, 1e-24
      %v966 = vmax.f32 %v957, 1e-24
      %v967 = vmax.f32 %v959, 1e-24
      %v968 = vrsqrt.pop %v960
      %v969 = vmul.f32 %v968, %v960
      %v970 = vmul.f32 %v969, %v968
      %v971 = vmul.f32 0.5, %v970
      %v972 = vsub.f32 1.5, %v971
      %v973 = vmul.f32 %v968, %v972
      %vm974 = vweird.f32 %v960
      %vm975 = vweird.f32 %v968
      %vm976 = vmor %vm974, %vm975
      %v977 = vsel %vm976, %v968, %v973
      %v978 = vrsqrt.pop %v961
      %v979 = vmul.f32 %v978, %v961
      %v980 = vmul.f32 %v979, %v978
      %v981 = vmul.f32 0.5, %v980
      %v982 = vsub.f32 1.5, %v981
      %v983 = vmul.f32 %v978, %v982
      %vm984 = vweird.f32 %v961
      %vm985 = vweird.f32 %v978
      %vm986 = vmor %vm984, %vm985
      %v987 = vsel %vm986, %v978, %v983
      %v988 = vrsqrt.pop %v962
      %v989 = vmul.f32 %v988, %v962
      %v990 = vmul.f32 %v989, %v988
      %v991 = vmul.f32 0.5, %v990
      %v992 = vsub.f32 1.5, %v991
      %v993 = vmul.f32 %v988, %v992
      %vm994 = vweird.f32 %v962
      %vm995 = vweird.f32 %v988
      %vm996 = vmor %vm994, %vm995
      %v997 = vsel %vm996, %v988, %v993
      %v998 = vrsqrt.pop %v963
      %v999 = vmul.f32 %v998, %v963
      %v1000 = vmul.f32 %v999, %v998
      %v1001 = vmul.f32 0.5, %v1000
      %v1002 = vsub.f32 1.5, %v1001
      %v1003 = vmul.f32 %v998, %v1002
      %vm1004 = vweird.f32 %v963
      %vm1005 = vweird.f32 %v998
      %vm1006 = vmor %vm1004, %vm1005
      %v1007 = vsel %vm1006, %v998, %v1003
      %v1008 = vrsqrt.pop %v964
      %v1009 = vmul.f32 %v1008, %v964
      %v1010 = vmul.f32 %v1009, %v1008
      %v1011 = vmul.f32 0.5, %v1010
      %v1012 = vsub.f32 1.5, %v1011
      %v1013 = vmul.f32 %v1008, %v1012
      %vm1014 = vweird.f32 %v964
      %vm1015 = vweird.f32 %v1008
      %vm1016 = vmor %vm1014, %vm1015
      %v1017 = vsel %vm1016, %v1008, %v1013
      %v1018 = vrsqrt.pop %v965
      %v1019 = vmul.f32 %v1018, %v965
      %v1020 = vmul.f32 %v1019, %v1018
      %v1021 = vmul.f32 0.5, %v1020
      %v1022 = vsub.f32 1.5, %v1021
      %v1023 = vmul.f32 %v1018, %v1022
      %vm1024 = vweird.f32 %v965
      %vm1025 = vweird.f32 %v1018
      %vm1026 = vmor %vm1024, %vm1025
      %v1027 = vsel %vm1026, %v1018, %v1023
      %v1028 = vrsqrt.pop %v966
      %v1029 = vmul.f32 %v1028, %v966
      %v1030 = vmul.f32 %v1029, %v1028
      %v1031 = vmul.f32 0.5, %v1030
      %v1032 = vsub.f32 1.5, %v1031
      %v1033 = vmul.f32 %v1028, %v1032
      %vm1034 = vweird.f32 %v966
      %vm1035 = vweird.f32 %v1028
      %vm1036 = vmor %vm1034, %vm1035
      %v1037 = vsel %vm1036, %v1028, %v1033
      %v1038 = vrsqrt.pop %v967
      %v1039 = vmul.f32 %v1038, %v967
      %v1040 = vmul.f32 %v1039, %v1038
      %v1041 = vmul.f32 0.5, %v1040
      %v1042 = vsub.f32 1.5, %v1041
      %v1043 = vmul.f32 %v1038, %v1042
      %vm1044 = vweird.f32 %v967
      %vm1045 = vweird.f32 %v1038
      %vm1046 = vmor %vm1044, %vm1045
      %v1047 = vsel %vm1046, %v1038, %v1043
      %v1048 = vmul.f32 %v808, %v977
      %v1049 = vmul.f32 %v809, %v987
      %v1050 = vmul.f32 %v810, %v997
      %v1051 = vmul.f32 %v811, %v1007
      %v1052 = vmul.f32 %v812, %v1017
      %v1053 = vmul.f32 %v813, %v1027
      %v1054 = vmul.f32 %v814, %v1037
      %v1055 = vmul.f32 %v815, %v1047
      %v1056 = vpack.c.bf16 %v592, %v592
      %v1057 = vpack.c.bf16 %v593, %v593
      %v1058 = vpack.c.bf16 %v594, %v594
      %v1059 = vpack.c.bf16 %v595, %v595
      %v1060 = vpack.c.bf16 %v596, %v596
      %v1061 = vpack.c.bf16 %v597, %v597
      %v1062 = vpack.c.bf16 %v598, %v598
      %v1063 = vpack.c.bf16 %v599, %v599
      %1064 = vst [vmem:[%s326] sm:$0xf] %v1056
      %1065 = vst [vmem:[%s326 + $0x4] sm:$0xf] %v1057
      %1066 = vst [vmem:[%s326 + $0x8] sm:$0xf] %v1058
      %1067 = vst [vmem:[%s326 + $0xc] sm:$0xf] %v1059
      %1068 = vst [vmem:[%s326 + $0x10] sm:$0xf] %v1060
      %1069 = vst [vmem:[%s326 + $0x14] sm:$0xf] %v1061
      %1070 = vst [vmem:[%s326 + $0x18] sm:$0xf] %v1062
      %1071 = vst [vmem:[%s326 + $0x1c] sm:$0xf] %v1063
      %v1072 = vpack.c.bf16 %v712, %v712
      %v1073 = vpack.c.bf16 %v713, %v713
      %v1074 = vpack.c.bf16 %v714, %v714
      %v1075 = vpack.c.bf16 %v715, %v715
      %v1076 = vpack.c.bf16 %v716, %v716
      %v1077 = vpack.c.bf16 %v717, %v717
      %v1078 = vpack.c.bf16 %v718, %v718
      %v1079 = vpack.c.bf16 %v719, %v719
      %s1080 = scalar_lea.vmem %s326, 32
      %1081 = vst [vmem:[%s1080] sm:$0xf] %v1072
      %1082 = vst [vmem:[%s1080 + $0x4] sm:$0xf] %v1073
      %1083 = vst [vmem:[%s1080 + $0x8] sm:$0xf] %v1074
      %1084 = vst [vmem:[%s1080 + $0xc] sm:$0xf] %v1075
      %1085 = vst [vmem:[%s1080 + $0x10] sm:$0xf] %v1076
      %1086 = vst [vmem:[%s1080 + $0x14] sm:$0xf] %v1077
      %1087 = vst [vmem:[%s1080 + $0x18] sm:$0xf] %v1078
      %1088 = vst [vmem:[%s1080 + $0x1c] sm:$0xf] %v1079
      %v1089 = vpack.c.bf16 %v928, %v928
      %v1090 = vpack.c.bf16 %v929, %v929
      %v1091 = vpack.c.bf16 %v930, %v930
      %v1092 = vpack.c.bf16 %v931, %v931
      %v1093 = vpack.c.bf16 %v932, %v932
      %v1094 = vpack.c.bf16 %v933, %v933
      %v1095 = vpack.c.bf16 %v934, %v934
      %v1096 = vpack.c.bf16 %v935, %v935
      %s1097 = scalar_lea.vmem %s326, 64
      %1098 = vst [vmem:[%s1097] sm:$0xf] %v1089
      %1099 = vst [vmem:[%s1097 + $0x4] sm:$0xf] %v1090
      %1100 = vst [vmem:[%s1097 + $0x8] sm:$0xf] %v1091
      %1101 = vst [vmem:[%s1097 + $0xc] sm:$0xf] %v1092
      %1102 = vst [vmem:[%s1097 + $0x10] sm:$0xf] %v1093
      %1103 = vst [vmem:[%s1097 + $0x14] sm:$0xf] %v1094
      %1104 = vst [vmem:[%s1097 + $0x18] sm:$0xf] %v1095
      %1105 = vst [vmem:[%s1097 + $0x1c] sm:$0xf] %v1096
      %v1106 = vpack.c.bf16 %v1048, %v1048
      %v1107 = vpack.c.bf16 %v1049, %v1049
      %v1108 = vpack.c.bf16 %v1050, %v1050
      %v1109 = vpack.c.bf16 %v1051, %v1051
      %v1110 = vpack.c.bf16 %v1052, %v1052
      %v1111 = vpack.c.bf16 %v1053, %v1053
      %v1112 = vpack.c.bf16 %v1054, %v1054
      %v1113 = vpack.c.bf16 %v1055, %v1055
      %s1114 = scalar_lea.vmem %s326, 96
      %1115 = vst [vmem:[%s1114] sm:$0xf] %v1106
      %1116 = vst [vmem:[%s1114 + $0x4] sm:$0xf] %v1107
      %1117 = vst [vmem:[%s1114 + $0x8] sm:$0xf] %v1108
      %1118 = vst [vmem:[%s1114 + $0xc] sm:$0xf] %v1109
      %1119 = vst [vmem:[%s1114 + $0x10] sm:$0xf] %v1110
      %1120 = vst [vmem:[%s1114 + $0x14] sm:$0xf] %v1111
      %1121 = vst [vmem:[%s1114 + $0x18] sm:$0xf] %v1112
      %1122 = vst [vmem:[%s1114 + $0x1c] sm:$0xf] %v1113
      %s1123 = smul.u32 8, %s19
      %p1124 = scmp.lt.s32.totalorder %s18, 1
      %s1125 = scalar_select %p1124, %s18, 1
      %p1126 = scmp.lt.s32.totalorder %s1123, 7
      %s1127 = scalar_select %p1126, %s1123, 7
      %s1128 = smul.addr %s1125, 32
      %s1129 = sadd.s32 %s1127, %s1128
      %s1130 = smul.addr %s1129, 4
      %s1131 = scalar_lea.vmem %s3, %s1130
      // Predicated region
      $region33: #{feature_extractor_forward.3} parent=31 // pred_check
        %p1132 = pneg %p146
      $region34: #{feature_extractor_forward.3} parent=31 // pred_check_branch
        %1134 = sbr.rel (%p1132) target = $region36
      $region35: #{feature_extractor_forward.3} parent=31 // pred_region
        %s1135 = smul.u32 8, %s19
      $region36: #{feature_extractor_forward.3} parent=31 // pred_fallthru
        _
    $region32: #{feature_extractor_forward.3} parent=5 // pred_fallthru
      _
    %p1136 = scmp.le.s32.totalorder 2, %s9
    // Predicated region
    $region37: #{feature_extractor_forward.3} parent=5 // pred_check
      %p1137 = pneg %p1136
    $region38: #{feature_extractor_forward.3} parent=5 // pred_check_branch
      %1139 = sbr.rel (%p1137) target = $region40
    $region39: #{feature_extractor_forward.3} parent=5 // pred_region
      %s1140 = ssub.s32 %s9, 2
      // Predicated region
      $region41: #{feature_extractor_forward.3} parent=39 // pred_check
        %p1141 = pneg %p152
      $region42: #{feature_extractor_forward.3} parent=39 // pred_check_branch
        %1143 = sbr.rel (%p1141) target = $region44
      $region43: #{feature_extractor_forward.3} parent=39 // pred_region
        %s1144 = smul.u32 8, %s21
        %p1145 = scmp.lt.s32.totalorder %s20, 1
        %s1146 = scalar_select %p1145, %s20, 1
        %p1147 = scmp.lt.s32.totalorder %s1144, 7
        %s1148 = scalar_select %p1147, %s1144, 7
        %s1149 = smul.addr %s1146, 32
        %s1150 = sadd.s32 %s1148, %s1149
        %s1151 = smul.addr %s1150, 4
        %s1152 = scalar_lea.vmem %s3, %s1151
      $region44: #{feature_extractor_forward.3} parent=39 // pred_fallthru
        _
    $region40: #{feature_extractor_forward.3} parent=5 // pred_fallthru
      _
  $region6: #{feature_extractor_forward.3} parent=0 // loop_footer
    %s13 = sadd.s32 1, %s9
  $region7: #{feature_extractor_forward.3} parent=0 // loop_footer_branch
    %8 = sbr.rel target = $region3
  $region8: #{feature_extractor_forward.3} parent=0 // loop_exit
    _

// kernel: feature_extractor_forward.2
$region0: #{feature_extractor_forward.2}
  #allocation0 [shape = 'u32[]', space=smem, size = 0x4, offset = 0x4, fixed_abs, tag = 'smem constant byte address 0x4 - core index']
  #allocation1 [shape = 'u32[72,128]{1,0:T(1,128)}', space=vmem, size = 0x9000, scoped, tag = 'internal scratch']
  %s0 = inlined_call_operand.vmem [shape: bf16[2,1,10,16,12], index: 0, kind: input, shape index: {}]
  %s1 = inlined_call_operand.vmem [shape: bf16[12,512], index: 1, kind: input, shape index: {}]
  %s2 = inlined_call_operand.vmem [shape: f32[1,512], index: 2, kind: input, shape index: {}]
  %s3 = inlined_call_operand.vmem [shape: bf16[3,1536,128], index: 3, kind: input, shape index: {}]
  %s4 = inlined_call_operand.vmem [shape: f32[1,128], index: 4, kind: input, shape index: {}]
  %s5 = inlined_call_operand.vmem [shape: bf16[2,8,8,128], index: 5, kind: output, shape index: {}]
  %s6 = sld [smem:[#allocation0]]
  $region53: #{feature_extractor_forward.2} parent=0
    _
  %s8 = ssub.s32 1, %s6
  %s9 = scalar_select 0, %s8, %s6
  loop: start=0, step=1, limit=4
  $region2: #{feature_extractor_forward.2} parent=0 // loop_pre_header
    _
  $region3: #{feature_extractor_forward.2} parent=0 // loop_header
    %s11 = sphi 0, %s15
    %p12 = scmp.ge.s32.totalorder %s11, 4
    %s18 = sphi 0, %s30
    %s19 = sphi 0, %s26
    %s20 = sphi 0, %s18
    %s21 = sphi 0, %s19
    %s22 = sphi 0, %s20
    %s23 = sphi 0, %s21
    %s35 = sphi 0, %s37
    %s38 = sphi 0, %s35
    %s39 = sphi 0, %s38
    %s55 = sphi 0, %s39
    %s59 = sphi 0, %s59
    %s61 = sphi 0, %s59
    %s62 = sphi 0, %s61
    %s76 = sphi 0, %s62
    %s80 = sphi 0, %s80
    %s82 = sphi 0, %s80
    %s83 = sphi 0, %s82
    %s97 = sphi 0, %s83
    %s101 = sphi 0, %s101
    %s103 = sphi 0, %s101
    %s104 = sphi 0, %s103
    %s118 = sphi 0, %s104
    %s122 = sphi 0, %s122
    %s124 = sphi 0, %s122
    %s125 = sphi 0, %s124
    %s139 = sphi 0, %s125
    %s147 = sphi 0, %s149
    %s150 = sphi 0, %s147
    %s151 = sphi 0, %s150
    %s167 = sphi 0, %s151
  $region4: #{feature_extractor_forward.2} parent=0 // loop_header_branch
    %14 = sbr.rel (%p12) target = $region8
  $region5: #{feature_extractor_forward.2} parent=0 // loop_body
    %s16 = ssub.s32 %s11, 1
    %s17 = ssub.s32 %s11, 2
    %s24 = sadd.s32 1, %s19
    %p25 = scmp.ge.s32.totalorder %s24, 1
    %s26 = scalar_select %p25, 0, %s24
    %s27 = sadd.s32 1, %s18
    %s28 = scalar_select %p25, %s27, %s18
    %p29 = scmp.ge.s32.totalorder %s28, 2
    %s30 = scalar_select %p29, 0, %s28
    %s31 = ssub.s32 %s18, %s30
    %s32 = ssub.s32 %s19, %s26
    %s33 = sor.u32 %s31, %s32
    %p34 = scmp.eq.s32.totalorder %s33, 0
    %s36 = sadd.s32 %s35, 1
    %s37 = scalar_select %p34, %s35, %s36
    %p40 = pneg %p34
    %p41 = scmp.eq.s32.totalorder %s11, 1
    %p42 = por %p40, %p41
    %p43 = scmp.ne.s32.totalorder %s35, %s38
    %p44 = scmp.eq.s32.totalorder %s11, 0
    %p45 = por %p43, %p44
    %p46 = scmp.ne.s32.totalorder %s35, %s38
    %p47 = scmp.eq.s32.totalorder %s16, 1
    %p48 = por %p46, %p47
    %p49 = scmp.ne.s32.totalorder %s38, %s39
    %p50 = scmp.eq.s32.totalorder %s16, 0
    %p51 = por %p49, %p50
    %p52 = scmp.ne.s32.totalorder %s38, %s39
    %p53 = scmp.eq.s32.totalorder %s17, 1
    %p54 = por %p52, %p53
    %p56 = scmp.ne.s32.totalorder %s39, %s55
    %p57 = scmp.eq.s32.totalorder %s17, 0
    %p58 = por %p56, %p57
    %s60 = sadd.s32 %s59, 1
    %p63 = scmp.eq.s32.totalorder %s11, 1
    %p64 = scmp.ne.s32.totalorder %s59, %s61
    %p65 = scmp.eq.s32.totalorder %s11, 0
    %p66 = por %p64, %p65
    %p67 = scmp.ne.s32.totalorder %s59, %s61
    %p68 = scmp.eq.s32.totalorder %s16, 1
    %p69 = por %p67, %p68
    %p70 = scmp.ne.s32.totalorder %s61, %s62
    %p71 = scmp.eq.s32.totalorder %s16, 0
    %p72 = por %p70, %p71
    %p73 = scmp.ne.s32.totalorder %s61, %s62
    %p74 = scmp.eq.s32.totalorder %s17, 1
    %p75 = por %p73, %p74
    %p77 = scmp.ne.s32.totalorder %s62, %s76
    %p78 = scmp.eq.s32.totalorder %s17, 0
    %p79 = por %p77, %p78
    %s81 = sadd.s32 %s80, 1
    %p84 = scmp.eq.s32.totalorder %s11, 1
    %p85 = scmp.ne.s32.totalorder %s80, %s82
    %p86 = scmp.eq.s32.totalorder %s11, 0
    %p87 = por %p85, %p86
    %p88 = scmp.ne.s32.totalorder %s80, %s82
    %p89 = scmp.eq.s32.totalorder %s16, 1
    %p90 = por %p88, %p89
    %p91 = scmp.ne.s32.totalorder %s82, %s83
    %p92 = scmp.eq.s32.totalorder %s16, 0
    %p93 = por %p91, %p92
    %p94 = scmp.ne.s32.totalorder %s82, %s83
    %p95 = scmp.eq.s32.totalorder %s17, 1
    %p96 = por %p94, %p95
    %p98 = scmp.ne.s32.totalorder %s83, %s97
    %p99 = scmp.eq.s32.totalorder %s17, 0
    %p100 = por %p98, %p99
    %s102 = sadd.s32 %s101, 1
    %p105 = scmp.eq.s32.totalorder %s11, 1
    %p106 = scmp.ne.s32.totalorder %s101, %s103
    %p107 = scmp.eq.s32.totalorder %s11, 0
    %p108 = por %p106, %p107
    %p109 = scmp.ne.s32.totalorder %s101, %s103
    %p110 = scmp.eq.s32.totalorder %s16, 1
    %p111 = por %p109, %p110
    %p112 = scmp.ne.s32.totalorder %s103, %s104
    %p113 = scmp.eq.s32.totalorder %s16, 0
    %p114 = por %p112, %p113
    %p115 = scmp.ne.s32.totalorder %s103, %s104
    %p116 = scmp.eq.s32.totalorder %s17, 1
    %p117 = por %p115, %p116
    %p119 = scmp.ne.s32.totalorder %s104, %s118
    %p120 = scmp.eq.s32.totalorder %s17, 0
    %p121 = por %p119, %p120
    %s123 = sadd.s32 %s122, 1
    %p126 = scmp.eq.s32.totalorder %s11, 1
    %p127 = scmp.ne.s32.totalorder %s122, %s124
    %p128 = scmp.eq.s32.totalorder %s11, 0
    %p129 = por %p127, %p128
    %p130 = scmp.ne.s32.totalorder %s122, %s124
    %p131 = scmp.eq.s32.totalorder %s16, 1
    %p132 = por %p130, %p131
    %p133 = scmp.ne.s32.totalorder %s124, %s125
    %p134 = scmp.eq.s32.totalorder %s16, 0
    %p135 = por %p133, %p134
    %p136 = scmp.ne.s32.totalorder %s124, %s125
    %p137 = scmp.eq.s32.totalorder %s17, 1
    %p138 = por %p136, %p137
    %p140 = scmp.ne.s32.totalorder %s125, %s139
    %p141 = scmp.eq.s32.totalorder %s17, 0
    %p142 = por %p140, %p141
    %s143 = ssub.s32 %s18, %s30
    %s144 = ssub.s32 %s19, %s26
    %s145 = sor.u32 %s143, %s144
    %p146 = scmp.eq.s32.totalorder %s145, 0
    %s148 = sadd.s32 %s147, 1
    %s149 = scalar_select %p146, %s147, %s148
    %p152 = pneg %p146
    %p153 = scmp.eq.s32.totalorder %s11, 1
    %p154 = por %p152, %p153
    %p155 = scmp.ne.s32.totalorder %s147, %s150
    %p156 = scmp.eq.s32.totalorder %s11, 0
    %p157 = por %p155, %p156
    %p158 = scmp.ne.s32.totalorder %s147, %s150
    %p159 = scmp.eq.s32.totalorder %s16, 1
    %p160 = por %p158, %p159
    %p161 = scmp.ne.s32.totalorder %s150, %s151
    %p162 = scmp.eq.s32.totalorder %s16, 0
    %p163 = por %p161, %p162
    %p164 = scmp.ne.s32.totalorder %s150, %s151
    %p165 = scmp.eq.s32.totalorder %s17, 1
    %p166 = por %p164, %p165
    %p168 = scmp.ne.s32.totalorder %s151, %s167
    %p169 = scmp.eq.s32.totalorder %s17, 0
    %p170 = por %p168, %p169
    %p171 = scmp.le.s32.totalorder 1, %s11
    %p172 = scmp.lt.s32.totalorder %s11, 3
    %p173 = pnand %p171, %p172
    %p174 = pneg %p173
    // Predicated region
    $region9: #{feature_extractor_forward.2} parent=5 // pred_check
      _
    $region10: #{feature_extractor_forward.2} parent=5 // pred_check_branch
      %176 = sbr.rel (%p173) target = $region12
    $region11: #{feature_extractor_forward.2} parent=5 // pred_region
      %s177 = ssub.s32 %s11, 1
      // Predicated region
      $region13: #{feature_extractor_forward.2} parent=11 // pred_check
        %p178 = pneg %p72
      $region14: #{feature_extractor_forward.2} parent=11 // pred_check_branch
        %180 = sbr.rel (%p178) target = $region16
      $region15: #{feature_extractor_forward.2} parent=11 // pred_region
        _
      $region16: #{feature_extractor_forward.2} parent=11 // pred_fallthru
        _
      // Predicated region
      $region17: #{feature_extractor_forward.2} parent=11 // pred_check
        %p181 = pneg %p93
      $region18: #{feature_extractor_forward.2} parent=11 // pred_check_branch
        %183 = sbr.rel (%p181) target = $region20
      $region19: #{feature_extractor_forward.2} parent=11 // pred_region
        _
      $region20: #{feature_extractor_forward.2} parent=11 // pred_fallthru
        _
      // Predicated region
      $region21: #{feature_extractor_forward.2} parent=11 // pred_check
        %p184 = pneg %p114
      $region22: #{feature_extractor_forward.2} parent=11 // pred_check_branch
        %186 = sbr.rel (%p184) target = $region24
      $region23: #{feature_extractor_forward.2} parent=11 // pred_region
        _
      $region24: #{feature_extractor_forward.2} parent=11 // pred_fallthru
        _
      // Predicated region
      $region25: #{feature_extractor_forward.2} parent=11 // pred_check
        %p187 = pneg %p135
      $region26: #{feature_extractor_forward.2} parent=11 // pred_check_branch
        %189 = sbr.rel (%p187) target = $region28
      $region27: #{feature_extractor_forward.2} parent=11 // pred_region
        _
      $region28: #{feature_extractor_forward.2} parent=11 // pred_fallthru
        _
    $region12: #{feature_extractor_forward.2} parent=5 // pred_fallthru
      _
    %p190 = scmp.lt.s32.totalorder %s11, 2
    // Predicated region
    $region29: #{feature_extractor_forward.2} parent=5 // pred_check
      %p191 = pneg %p190
    $region30: #{feature_extractor_forward.2} parent=5 // pred_check_branch
      %193 = sbr.rel (%p191) target = $region32
    $region31: #{feature_extractor_forward.2} parent=5 // pred_region
      // Predicated region
      $region33: #{feature_extractor_forward.2} parent=31 // pred_check
        %p194 = pneg %p45
      $region34: #{feature_extractor_forward.2} parent=31 // pred_check_branch
        %196 = sbr.rel (%p194) target = $region36
      $region35: #{feature_extractor_forward.2} parent=31 // pred_region
        %p197 = scmp.lt.s32.totalorder %s18, 1
        %s198 = scalar_select %p197, %s18, 1
        %p199 = scmp.lt.s32.totalorder %s19, 0
        %s200 = scalar_select %p199, %s19, 0
        %s201 = smul.addr %s200, 20
        %s202 = smul.addr %s198, 20
        %s203 = sadd.s32 %s201, %s202
        %s204 = smul.addr %s203, 4
        %s205 = scalar_lea.vmem %s0, %s204
      $region36: #{feature_extractor_forward.2} parent=31 // pred_fallthru
        _
    $region32: #{feature_extractor_forward.2} parent=5 // pred_fallthru
      _
    %p206 = scmp.le.s32.totalorder 1, %s11
    %p207 = scmp.lt.s32.totalorder %s11, 3
    %p208 = pnand %p206, %p207
    %p209 = pneg %p208
    // Predicated region
    $region37: #{feature_extractor_forward.2} parent=5 // pred_check
      _
    $region38: #{feature_extractor_forward.2} parent=5 // pred_check_branch
      %211 = sbr.rel (%p208) target = $region40
    $region39: #{feature_extractor_forward.2} parent=5 // pred_region
      %s212 = ssub.s32 %s11, 1
      %p213 = scmp.lt.s32.totalorder %s20, 1
      %s214 = scalar_select %p213, %s20, 1
      %p215 = scmp.lt.s32.totalorder %s21, 0
      %s216 = scalar_select %p215, %s21, 0
      %s217 = smul.addr %s216, 20
      %s218 = smul.addr %s214, 20
      %s219 = sadd.s32 %s217, %s218
      %s220 = smul.addr %s219, 4
      %s221 = scalar_lea.vmem %s0, %s220
      %p222 = pneg %p51
      %p223 = pneg %p48
      %p224 = pneg %p72
      %p225 = pneg %p69
      %p226 = pneg %p93
      %p227 = pneg %p90
      %p228 = pneg %p114
      %p229 = pneg %p111
      %p230 = pneg %p135
      %p231 = pneg %p132
      %p232 = pneg %p163
      %p233 = pneg %p160
      %s234 = smul.u32 8, %s21
      %p235 = scmp.lt.s32.totalorder %s20, 1
      %s236 = scalar_select %p235, %s20, 1
      %p237 = scmp.lt.s32.totalorder %s234, 7
      %s238 = scalar_select %p237, %s234, 7
      %s239 = smul.addr %s236, 8
      %s240 = sadd.s32 %s238, %s239
      %s241 = smul.addr %s240, 4
      %s242 = scalar_lea.vmem %s5, %s241
      %p243 = scmp.lt.s32.totalorder %s20, 1
      %s244 = scalar_select %p243, %s20, 1
      %p245 = scmp.lt.s32.totalorder %s21, 0
      %s246 = scalar_select %p245, %s21, 0
      %s247 = smul.addr %s246, 20
      %s248 = smul.addr %s244, 20
      %s249 = sadd.s32 %s247, %s248
      %s250 = smul.addr %s249, 4
      %s251 = scalar_lea.vmem %s0, %s250
      %s252 = smul.u32 8, %s21
      %p253 = scmp.lt.s32.totalorder %s20, 1
      %s254 = scalar_select %p253, %s20, 1
      %p255 = scmp.lt.s32.totalorder %s252, 7
      %s256 = scalar_select %p255, %s252, 7
      %s257 = smul.addr %s254, 8
      %s258 = sadd.s32 %s256, %s257
      %s259 = smul.addr %s258, 4
      %s260 = scalar_lea.vmem %s5, %s259
      %s261 = smul.u32 8, %s21
      %v263 = vld [vmem:[%s251] sm:$0xf]
      %v264 = vld [vmem:[%s251 + $0x4] sm:$0xf]
      %v265 = vld [vmem:[%s251 + $0x8] sm:$0xf]
      %v266 = vld [vmem:[%s251 + $0xc] sm:$0xf]
      %v267 = vld [vmem:[%s251 + $0x10] sm:$0xf]
      %v268 = vld [vmem:[%s251 + $0x14] sm:$0xf]
      %v269 = vld [vmem:[%s251 + $0x18] sm:$0xf]
      %v270 = vld [vmem:[%s251 + $0x1c] sm:$0xf]
      %v271 = vld [vmem:[%s251 + $0x20] sm:$0xf]
      %v272 = vld [vmem:[%s251 + $0x24] sm:$0xf]
      %v273 = vld [vmem:[%s251 + $0x28] sm:$0xf]
      %v274 = vld [vmem:[%s251 + $0x2c] sm:$0xf]
      %v275 = vld [vmem:[%s251 + $0x30] sm:$0xf]
      %v276 = vld [vmem:[%s251 + $0x34] sm:$0xf]
      %v277 = vld [vmem:[%s251 + $0x38] sm:$0xf]
      %v278 = vld [vmem:[%s251 + $0x3c] sm:$0xf]
      %v279 = vld [vmem:[%s251 + $0x40] sm:$0xf]
      %v280 = vld [vmem:[%s251 + $0x44] sm:$0xf]
      %v281 = vld [vmem:[%s251 + $0x48] sm:$0xf]
      %v282 = vld [vmem:[%s251 + $0x4c] sm:$0xf]
      %v283 = vld [vmem:[%s1] sm:$0xff]
      %v284 = vld [vmem:[%s1 + $0x8] sm:$0xff]
      %v285 = vld [vmem:[%s1 + $0x10] sm:$0x33]
      %v286 = vld [vmem:[%s1 + $0x18] sm:$0x33]
      %v287 = vld [vmem:[%s2] sm:$0xf]
      %v289 = vperm.slane %v287, 0
      %v290 = vperm.slane %v287, 1
      %v291 = vperm.slane %v287, 2
      %v292 = vperm.slane %v287, 3
      %v317 = vunpack.c.l.b16 %v263
      %v318 = vunpack.c.l.b16 %v264
      %v319 = vunpack.c.l.b16 %v265
      %v320 = vunpack.c.l.b16 %v266
      %v321 = vunpack.c.l.b16 %v267
      %v322 = vunpack.c.l.b16 %v268
      %v323 = vunpack.c.l.b16 %v269
      %v324 = vunpack.c.l.b16 %v270
      %v325 = vunpack.c.l.b16 %v271
      %v326 = vunpack.c.l.b16 %v272
      %v327 = vunpack.c.l.b16 %v273
      %v328 = vunpack.c.l.b16 %v274
      %v329 = vunpack.c.l.b16 %v275
      %v330 = vunpack.c.l.b16 %v276
      %v331 = vunpack.c.l.b16 %v277
      %v332 = vunpack.c.l.b16 %v278
      %v333 = vunpack.c.l.b16 %v279
      %v334 = vunpack.c.l.b16 %v280
      %v335 = vunpack.c.l.b16 %v281
      %v336 = vunpack.c.l.b16 %v282
      %v337 = vpack.c.b16 %v318, %v317
      %v338 = vpack.c.b16 %v320, %v319
      %v339 = vpack.c.b16 %v322, %v321
      %v340 = vpack.c.b16 %v324, %v323
      %v341 = vpack.c.b16 %v326, %v325
      %v342 = vpack.c.b16 %v328, %v327
      %v343 = vpack.c.b16 %v330, %v329
      %v344 = vpack.c.b16 %v332, %v331
      %v345 = vpack.c.b16 %v334, %v333
      %v346 = vpack.c.b16 %v336, %v335
      %v351 = vunpack.c.l.b16 %v283
      %v352 = vunpack.c.h.b16 %v283
      %v353 = vunpack.c.l.b16 %v284
      %v354 = vunpack.c.h.b16 %v284
      %v355 = vunpack.c.l.b16 %v285
      %v356 = vunpack.c.h.b16 %v285
      %v357 = vunpack.c.l.b16 %v286
      %v358 = vunpack.c.h.b16 %v286
      %v359 = vpack.c.b16 %v355, %v351
      %v360 = vpack.c.b16 %v356, %v352
      %v361 = vpack.c.b16 %v357, %v353
      %v362 = vpack.c.b16 %v358, %v354
      %vm363 = vcmask 97280
      %v365 = vsel %vm363, %v337, 0
      %v368 = vsel %vm363, %v338, 0
      %v371 = vsel %vm363, %v339, 0
      %v374 = vsel %vm363, %v340, 0
      %v377 = vsel %vm363, %v341, 0
      %v380 = vsel %vm363, %v342, 0
      %v383 = vsel %vm363, %v343, 0
      %v386 = vsel %vm363, %v344, 0
      %v389 = vsel %vm363, %v345, 0
      %v392 = vsel %vm363, %v346, 0
      %vm394 = vcmask 1045504
      %v396 = vsel %vm394, %v359, 0
      %v399 = vsel %vm394, %v360, 0
      %v402 = vsel %vm394, %v361, 0
      %v405 = vsel %vm394, %v362, 0
      %407 = vmatpush.bf16.msra.mxu0 0
      %408 = vmatpush.bf16.msra.mxu0 0
      %409 = vmatpush.bf16.msra.mxu0 0
      %410 = vmatpush.bf16.msra.mxu0 0
      %411 = vmatpush.bf16.msra.mxu0 0
      %412 = vmatpush.bf16.msra.mxu0 0
      %413 = vmatpush.bf16.msra.mxu0 0
      %414 = vmatpush.bf16.msra.mxu0 %v396
      %415 = vmatmul.bf16.gmra.mxu0 %v365
      %v416 = vpop.f32.mrf.mxu0
      %v417 = vadd.f32 %v289, %v416
      %v418 = vpop.f32.mrf.mxu0
      %v419 = vadd.f32 %v289, %v418
      %420 = vmatmul.bf16.gmra.mxu0 %v368
      %v421 = vpop.f32.mrf.mxu0
      %v422 = vadd.f32 %v289, %v421
      %v423 = vpop.f32.mrf.mxu0
      %v424 = vadd.f32 %v289, %v423
      %425 = vmatmul.bf16.gmra.mxu0 %v371
      %v426 = vpop.f32.mrf.mxu0
      %v427 = vadd.f32 %v289, %v426
      %v428 = vpop.f32.mrf.mxu0
      %v429 = vadd.f32 %v289, %v428
      %430 = vmatmul.bf16.gmra.mxu0 %v374
      %v431 = vpop.f32.mrf.mxu0
      %v432 = vadd.f32 %v289, %v431
      %v433 = vpop.f32.mrf.mxu0
      %v434 = vadd.f32 %v289, %v433
      %435 = vmatmul.bf16.gmra.mxu0 %v377
      %v436 = vpop.f32.mrf.mxu0
      %v437 = vadd.f32 %v289, %v436
      %v438 = vpop.f32.mrf.mxu0
      %v439 = vadd.f32 %v289, %v438
      %440 = vmatmul.bf16.gmra.mxu0 %v380
      %v441 = vpop.f32.mrf.mxu0
      %v442 = vadd.f32 %v289, %v441
      %v443 = vpop.f32.mrf.mxu0
      %v444 = vadd.f32 %v289, %v443
      %445 = vmatmul.bf16.gmra.mxu0 %v383
      %v446 = vpop.f32.mrf.mxu0
      %v447 = vadd.f32 %v289, %v446
      %v448 = vpop.f32.mrf.mxu0
      %v449 = vadd.f32 %v289, %v448
      %450 = vmatmul.bf16.gmra.mxu0 %v386
      %v451 = vpop.f32.mrf.mxu0
      %v452 = vadd.f32 %v289, %v451
      %v453 = vpop.f32.mrf.mxu0
      %v454 = vadd.f32 %v289, %v453
      %455 = vmatmul.bf16.gmra.mxu0 %v389
      %v456 = vpop.f32.mrf.mxu0
      %v457 = vadd.f32 %v289, %v456
      %v458 = vpop.f32.mrf.mxu0
      %v459 = vadd.f32 %v289, %v458
      %460 = vmatmul.bf16.gmra.mxu0 %v392
      %v461 = vpop.f32.mrf.mxu0
      %v462 = vadd.f32 %v289, %v461
      %v463 = vpop.f32.mrf.mxu0
      %v464 = vadd.f32 %v289, %v463
      %465 = vdwg.mxu0
      %466 = vmatpush.bf16.msra.mxu0 0
      %467 = vmatpush.bf16.msra.mxu0 0
      %468 = vmatpush.bf16.msra.mxu0 0
      %469 = vmatpush.bf16.msra.mxu0 0
      %470 = vmatpush.bf16.msra.mxu0 0
      %471 = vmatpush.bf16.msra.mxu0 0
      %472 = vmatpush.bf16.msra.mxu0 0
      %473 = vmatpush.bf16.msra.mxu0 %v399
      %474 = vmatmul.bf16.gmra.mxu0 %v365
      %v475 = vpop.f32.mrf.mxu0
      %v476 = vadd.f32 %v290, %v475
      %v477 = vpop.f32.mrf.mxu0
      %v478 = vadd.f32 %v290, %v477
      %479 = vmatmul.bf16.gmra.mxu0 %v368
      %v480 = vpop.f32.mrf.mxu0
      %v481 = vadd.f32 %v290, %v480
      %v482 = vpop.f32.mrf.mxu0
      %v483 = vadd.f32 %v290, %v482
      %484 = vmatmul.bf16.gmra.mxu0 %v371
      %v485 = vpop.f32.mrf.mxu0
      %v486 = vadd.f32 %v290, %v485
      %v487 = vpop.f32.mrf.mxu0
      %v488 = vadd.f32 %v290, %v487
      %489 = vmatmul.bf16.gmra.mxu0 %v374
      %v490 = vpop.f32.mrf.mxu0
      %v491 = vadd.f32 %v290, %v490
      %v492 = vpop.f32.mrf.mxu0
      %v493 = vadd.f32 %v290, %v492
      %494 = vmatmul.bf16.gmra.mxu0 %v377
      %v495 = vpop.f32.mrf.mxu0
      %v496 = vadd.f32 %v290, %v495
      %v497 = vpop.f32.mrf.mxu0
      %v498 = vadd.f32 %v290, %v497
      %499 = vmatmul.bf16.gmra.mxu0 %v380
      %v500 = vpop.f32.mrf.mxu0
      %v501 = vadd.f32 %v290, %v500
      %v502 = vpop.f32.mrf.mxu0
      %v503 = vadd.f32 %v290, %v502
      %504 = vmatmul.bf16.gmra.mxu0 %v383
      %v505 = vpop.f32.mrf.mxu0
      %v506 = vadd.f32 %v290, %v505
      %v507 = vpop.f32.mrf.mxu0
      %v508 = vadd.f32 %v290, %v507
      %509 = vmatmul.bf16.gmra.mxu0 %v386
      %v510 = vpop.f32.mrf.mxu0
      %v511 = vadd.f32 %v290, %v510
      %v512 = vpop.f32.mrf.mxu0
      %v513 = vadd.f32 %v290, %v512
      %514 = vmatmul.bf16.gmra.mxu0 %v389
      %v515 = vpop.f32.mrf.mxu0
      %v516 = vadd.f32 %v290, %v515
      %v517 = vpop.f32.mrf.mxu0
      %v518 = vadd.f32 %v290, %v517
      %519 = vmatmul.bf16.gmra.mxu0 %v392
      %v520 = vpop.f32.mrf.mxu0
      %v521 = vadd.f32 %v290, %v520
      %v522 = vpop.f32.mrf.mxu0
      %v523 = vadd.f32 %v290, %v522
      %524 = vdwg.mxu0
      %525 = vmatpush.bf16.msra.mxu0 0
      %526 = vmatpush.bf16.msra.mxu0 0
      %527 = vmatpush.bf16.msra.mxu0 0
      %528 = vmatpush.bf16.msra.mxu0 0
      %529 = vmatpush.bf16.msra.mxu0 0
      %530 = vmatpush.bf16.msra.mxu0 0
      %531 = vmatpush.bf16.msra.mxu0 0
      %532 = vmatpush.bf16.msra.mxu0 %v402
      %533 = vmatmul.bf16.gmra.mxu0 %v365
      %v534 = vpop.f32.mrf.mxu0
      %v535 = vadd.f32 %v291, %v534
      %v536 = vpop.f32.mrf.mxu0
      %v537 = vadd.f32 %v291, %v536
      %538 = vmatmul.bf16.gmra.mxu0 %v368
      %v539 = vpop.f32.mrf.mxu0
      %v540 = vadd.f32 %v291, %v539
      %v541 = vpop.f32.mrf.mxu0
      %v542 = vadd.f32 %v291, %v541
      %543 = vmatmul.bf16.gmra.mxu0 %v371
      %v544 = vpop.f32.mrf.mxu0
      %v545 = vadd.f32 %v291, %v544
      %v546 = vpop.f32.mrf.mxu0
      %v547 = vadd.f32 %v291, %v546
      %548 = vmatmul.bf16.gmra.mxu0 %v374
      %v549 = vpop.f32.mrf.mxu0
      %v550 = vadd.f32 %v291, %v549
      %v551 = vpop.f32.mrf.mxu0
      %v552 = vadd.f32 %v291, %v551
      %553 = vmatmul.bf16.gmra.mxu0 %v377
      %v554 = vpop.f32.mrf.mxu0
      %v555 = vadd.f32 %v291, %v554
      %v556 = vpop.f32.mrf.mxu0
      %v557 = vadd.f32 %v291, %v556
      %558 = vmatmul.bf16.gmra.mxu0 %v380
      %v559 = vpop.f32.mrf.mxu0
      %v560 = vadd.f32 %v291, %v559
      %v561 = vpop.f32.mrf.mxu0
      %v562 = vadd.f32 %v291, %v561
      %563 = vmatmul.bf16.gmra.mxu0 %v383
      %v564 = vpop.f32.mrf.mxu0
      %v565 = vadd.f32 %v291, %v564
      %v566 = vpop.f32.mrf.mxu0
      %v567 = vadd.f32 %v291, %v566
      %568 = vmatmul.bf16.gmra.mxu0 %v386
      %v569 = vpop.f32.mrf.mxu0
      %v570 = vadd.f32 %v291, %v569
      %v571 = vpop.f32.mrf.mxu0
      %v572 = vadd.f32 %v291, %v571
      %573 = vmatmul.bf16.gmra.mxu0 %v389
      %v574 = vpop.f32.mrf.mxu0
      %v575 = vadd.f32 %v291, %v574
      %v576 = vpop.f32.mrf.mxu0
      %v577 = vadd.f32 %v291, %v576
      %578 = vmatmul.bf16.gmra.mxu0 %v392
      %v579 = vpop.f32.mrf.mxu0
      %v580 = vadd.f32 %v291, %v579
      %v581 = vpop.f32.mrf.mxu0
      %v582 = vadd.f32 %v291, %v581
      %583 = vdwg.mxu0
      %584 = vmatpush.bf16.msra.mxu0 0
      %585 = vmatpush.bf16.msra.mxu0 0
      %586 = vmatpush.bf16.msra.mxu0 0
      %587 = vmatpush.bf16.msra.mxu0 0
      %588 = vmatpush.bf16.msra.mxu0 0
      %589 = vmatpush.bf16.msra.mxu0 0
      %590 = vmatpush.bf16.msra.mxu0 0
      %591 = vmatpush.bf16.msra.mxu0 %v405
      %592 = vmatmul.bf16.gmra.mxu0 %v365
      %v593 = vpop.f32.mrf.mxu0
      %v594 = vadd.f32 %v292, %v593
      %v595 = vpop.f32.mrf.mxu0
      %v596 = vadd.f32 %v292, %v595
      %597 = vmatmul.bf16.gmra.mxu0 %v368
      %v598 = vpop.f32.mrf.mxu0
      %v599 = vadd.f32 %v292, %v598
      %v600 = vpop.f32.mrf.mxu0
      %v601 = vadd.f32 %v292, %v600
      %602 = vmatmul.bf16.gmra.mxu0 %v371
      %v603 = vpop.f32.mrf.mxu0
      %v604 = vadd.f32 %v292, %v603
      %v605 = vpop.f32.mrf.mxu0
      %v606 = vadd.f32 %v292, %v605
      %607 = vmatmul.bf16.gmra.mxu0 %v374
      %v608 = vpop.f32.mrf.mxu0
      %v609 = vadd.f32 %v292, %v608
      %v610 = vpop.f32.mrf.mxu0
      %v611 = vadd.f32 %v292, %v610
      %612 = vmatmul.bf16.gmra.mxu0 %v377
      %v613 = vpop.f32.mrf.mxu0
      %v614 = vadd.f32 %v292, %v613
      %v615 = vpop.f32.mrf.mxu0
      %v616 = vadd.f32 %v292, %v615
      %617 = vmatmul.bf16.gmra.mxu0 %v380
      %v618 = vpop.f32.mrf.mxu0
      %v619 = vadd.f32 %v292, %v618
      %v620 = vpop.f32.mrf.mxu0
      %v621 = vadd.f32 %v292, %v620
      %622 = vmatmul.bf16.gmra.mxu0 %v383
      %v623 = vpop.f32.mrf.mxu0
      %v624 = vadd.f32 %v292, %v623
      %v625 = vpop.f32.mrf.mxu0
      %v626 = vadd.f32 %v292, %v625
      %627 = vmatmul.bf16.gmra.mxu0 %v386
      %v628 = vpop.f32.mrf.mxu0
      %v629 = vadd.f32 %v292, %v628
      %v630 = vpop.f32.mrf.mxu0
      %v631 = vadd.f32 %v292, %v630
      %632 = vmatmul.bf16.gmra.mxu0 %v389
      %v633 = vpop.f32.mrf.mxu0
      %v634 = vadd.f32 %v292, %v633
      %v635 = vpop.f32.mrf.mxu0
      %v636 = vadd.f32 %v292, %v635
      %637 = vmatmul.bf16.gmra.mxu0 %v392
      %v638 = vpop.f32.mrf.mxu0
      %v639 = vadd.f32 %v292, %v638
      %v640 = vpop.f32.mrf.mxu0
      %v641 = vadd.f32 %v292, %v640
      %642 = vdwg.mxu0
      %v643 = vmax.f32 %v417, 0.0
      %v644 = vmax.f32 %v476, 0.0
      %v645 = vmax.f32 %v535, 0.0
      %v646 = vmax.f32 %v594, 0.0
      %v647 = vmax.f32 %v419, 0.0
      %v648 = vmax.f32 %v478, 0.0
      %v649 = vmax.f32 %v537, 0.0
      %v650 = vmax.f32 %v596, 0.0
      %v651 = vmax.f32 %v422, 0.0
      %v652 = vmax.f32 %v481, 0.0
      %v653 = vmax.f32 %v540, 0.0
      %v654 = vmax.f32 %v599, 0.0
      %v655 = vmax.f32 %v424, 0.0
      %v656 = vmax.f32 %v483, 0.0
      %v657 = vmax.f32 %v542, 0.0
      %v658 = vmax.f32 %v601, 0.0
      %v659 = vmax.f32 %v427, 0.0
      %v660 = vmax.f32 %v486, 0.0
      %v661 = vmax.f32 %v545, 0.0
      %v662 = vmax.f32 %v604, 0.0
      %v663 = vmax.f32 %v429, 0.0
      %v664 = vmax.f32 %v488, 0.0
      %v665 = vmax.f32 %v547, 0.0
      %v666 = vmax.f32 %v606, 0.0
      %v667 = vmax.f32 %v432, 0.0
      %v668 = vmax.f32 %v491, 0.0
      %v669 = vmax.f32 %v550, 0.0
      %v670 = vmax.f32 %v609, 0.0
      %v671 = vmax.f32 %v434, 0.0
      %v672 = vmax.f32 %v493, 0.0
      %v673 = vmax.f32 %v552, 0.0
      %v674 = vmax.f32 %v611, 0.0
      %v675 = vmax.f32 %v437, 0.0
      %v676 = vmax.f32 %v496, 0.0
      %v677 = vmax.f32 %v555, 0.0
      %v678 = vmax.f32 %v614, 0.0
      %v679 = vmax.f32 %v439, 0.0
      %v680 = vmax.f32 %v498, 0.0
      %v681 = vmax.f32 %v557, 0.0
      %v682 = vmax.f32 %v616, 0.0
      %v683 = vmax.f32 %v442, 0.0
      %v684 = vmax.f32 %v501, 0.0
      %v685 = vmax.f32 %v560, 0.0
      %v686 = vmax.f32 %v619, 0.0
      %v687 = vmax.f32 %v444, 0.0
      %v688 = vmax.f32 %v503, 0.0
      %v689 = vmax.f32 %v562, 0.0
      %v690 = vmax.f32 %v621, 0.0
      %v691 = vmax.f32 %v447, 0.0
      %v692 = vmax.f32 %v506, 0.0
      %v693 = vmax.f32 %v565, 0.0
      %v694 = vmax.f32 %v624, 0.0
      %v695 = vmax.f32 %v449, 0.0
      %v696 = vmax.f32 %v508, 0.0
      %v697 = vmax.f32 %v567, 0.0
      %v698 = vmax.f32 %v626, 0.0
      %v699 = vmax.f32 %v452, 0.0
      %v700 = vmax.f32 %v511, 0.0
      %v701 = vmax.f32 %v570, 0.0
      %v702 = vmax.f32 %v629, 0.0
      %v703 = vmax.f32 %v454, 0.0
      %v704 = vmax.f32 %v513, 0.0
      %v705 = vmax.f32 %v572, 0.0
      %v706 = vmax.f32 %v631, 0.0
      %v707 = vmax.f32 %v457, 0.0
      %v708 = vmax.f32 %v516, 0.0
      %v709 = vmax.f32 %v575, 0.0
      %v710 = vmax.f32 %v634, 0.0
      %v711 = vmax.f32 %v459, 0.0
      %v712 = vmax.f32 %v518, 0.0
      %v713 = vmax.f32 %v577, 0.0
      %v714 = vmax.f32 %v636, 0.0
      %v715 = vmax.f32 %v462, 0.0
      %v716 = vmax.f32 %v521, 0.0
      %v717 = vmax.f32 %v580, 0.0
      %v718 = vmax.f32 %v639, 0.0
      %v719 = vmax.f32 %v464, 0.0
      %v720 = vmax.f32 %v523, 0.0
      %v721 = vmax.f32 %v582, 0.0
      %v722 = vmax.f32 %v641, 0.0
      %v723 = vlaneseq
      %v724 = vshrl.u32 %v723, 7
      %v725 = vadd.s32 %v724, 8
      %p726 = scmp.gt.s32.totalorder %s21, 0
      %s727 = scalar_select %p726, 1, 0
      %v728 = vstv %s727
      %vm729 = vcmp.eq.s32.totalorder %v728, 1
      %p730 = scmp.lt.s32.totalorder %s21, 0
      %s731 = scalar_select %p730, 1, 0
      %v732 = vstv %s731
      %vm733 = vcmp.eq.s32.totalorder %v732, 1
      %vm734 = vcmp.ge.s32.totalorder %v724, 1
      %vm735 = vcmp.ge.s32.totalorder %v725, 1
      %vm736 = vcmp.le.s32.totalorder %v724, 8
      %vm737 = vcmp.le.s32.totalorder %v725, 8
      %vm738 = vmand %vm734, %vm736
      %vm739 = vmand %vm735, %vm737
      %v740 = vsel %vm729, 1, 0
      %v741 = vsel %vm733, 1, 0
      %vm742 = vcmp.eq.s32.totalorder %v740, 1
      %vm743 = vcmp.eq.s32.totalorder %v741, 1
      %v744 = vsel %vm738, 1, 0
      %v745 = vsel %vm739, 1, 0
      %vm746 = vcmp.eq.s32.totalorder %v744, 1
      %vm747 = vcmp.eq.s32.totalorder %v745, 1
      %vm748 = vmand %vm742, %vm746
      %vm749 = vmand %vm742, %vm747
      %vm750 = vmand 1, %vm746
      %vm751 = vmand 1, %vm747
      %vm752 = vmand %vm743, %vm746
      %vm753 = vmand %vm743, %vm747
      %v754 = vsel %vm748, 1, 0
      %v755 = vsel %vm749, 1, 0
      %v756 = vsel %vm750, 1, 0
      %v757 = vsel %vm751, 1, 0
      %v758 = vsel %vm752, 1, 0
      %v759 = vsel %vm753, 1, 0
      %vm760 = vcmp.eq.s32.totalorder %v754, 1
      %vm761 = vcmp.eq.s32.totalorder %v755, 1
      %vm762 = vcmp.eq.s32.totalorder %v756, 1
      %vm763 = vcmp.eq.s32.totalorder %v757, 1
      %vm764 = vcmp.eq.s32.totalorder %v758, 1
      %vm765 = vcmp.eq.s32.totalorder %v759, 1
      %v766 = vsel %vm760, %v643, 0.0
      %v767 = vsel %vm760, %v644, 0.0
      %v768 = vsel %vm760, %v645, 0.0
      %v769 = vsel %vm760, %v646, 0.0
      %v770 = vsel %vm761, %v647, 0.0
      %v771 = vsel %vm761, %v648, 0.0
      %v772 = vsel %vm761, %v649, 0.0
      %v773 = vsel %vm761, %v650, 0.0
      %v774 = vsel %vm762, %v651, 0.0
      %v775 = vsel %vm762, %v652, 0.0
      %v776 = vsel %vm762, %v653, 0.0
      %v777 = vsel %vm762, %v654, 0.0
      %v778 = vsel %vm763, %v655, 0.0
      %v779 = vsel %vm763, %v656, 0.0
      %v780 = vsel %vm763, %v657, 0.0
      %v781 = vsel %vm763, %v658, 0.0
      %v782 = vsel %vm762, %v659, 0.0
      %v783 = vsel %vm762, %v660, 0.0
      %v784 = vsel %vm762, %v661, 0.0
      %v785 = vsel %vm762, %v662, 0.0
      %v786 = vsel %vm763, %v663, 0.0
      %v787 = vsel %vm763, %v664, 0.0
      %v788 = vsel %vm763, %v665, 0.0
      %v789 = vsel %vm763, %v666, 0.0
      %v790 = vsel %vm762, %v667, 0.0
      %v791 = vsel %vm762, %v668, 0.0
      %v792 = vsel %vm762, %v669, 0.0
      %v793 = vsel %vm762, %v670, 0.0
      %v794 = vsel %vm763, %v671, 0.0
      %v795 = vsel %vm763, %v672, 0.0
      %v796 = vsel %vm763, %v673, 0.0
      %v797 = vsel %vm763, %v674, 0.0
      %v798 = vsel %vm762, %v675, 0.0
      %v799 = vsel %vm762, %v676, 0.0
      %v800 = vsel %vm762, %v677, 0.0
      %v801 = vsel %vm762, %v678, 0.0
      %v802 = vsel %vm763, %v679, 0.0
      %v803 = vsel %vm763, %v680, 0.0
      %v804 = vsel %vm763, %v681, 0.0
      %v805 = vsel %vm763, %v682, 0.0
      %v806 = vsel %vm762, %v683, 0.0
      %v807 = vsel %vm762, %v684, 0.0
      %v808 = vsel %vm762, %v685, 0.0
      %v809 = vsel %vm762, %v686, 0.0
      %v810 = vsel %vm763, %v687, 0.0
      %v811 = vsel %vm763, %v688, 0.0
      %v812 = vsel %vm763, %v689, 0.0
      %v813 = vsel %vm763, %v690, 0.0
      %v814 = vsel %vm762, %v691, 0.0
      %v815 = vsel %vm762, %v692, 0.0
      %v816 = vsel %vm762, %v693, 0.0
      %v817 = vsel %vm762, %v694, 0.0
      %v818 = vsel %vm763, %v695, 0.0
      %v819 = vsel %vm763, %v696, 0.0
      %v820 = vsel %vm763, %v697, 0.0
      %v821 = vsel %vm763, %v698, 0.0
      %v822 = vsel %vm762, %v699, 0.0
      %v823 = vsel %vm762, %v700, 0.0
      %v824 = vsel %vm762, %v701, 0.0
      %v825 = vsel %vm762, %v702, 0.0
      %v826 = vsel %vm763, %v703, 0.0
      %v827 = vsel %vm763, %v704, 0.0
      %v828 = vsel %vm763, %v705, 0.0
      %v829 = vsel %vm763, %v706, 0.0
      %v830 = vsel %vm762, %v707, 0.0
      %v831 = vsel %vm762, %v708, 0.0
      %v832 = vsel %vm762, %v709, 0.0
      %v833 = vsel %vm762, %v710, 0.0
      %v834 = vsel %vm763, %v711, 0.0
      %v835 = vsel %vm763, %v712, 0.0
      %v836 = vsel %vm763, %v713, 0.0
      %v837 = vsel %vm763, %v714, 0.0
      %v838 = vsel %vm764, %v715, 0.0
      %v839 = vsel %vm764, %v716, 0.0
      %v840 = vsel %vm764, %v717, 0.0
      %v841 = vsel %vm764, %v718, 0.0
      %v842 = vsel %vm765, %v719, 0.0
      %v843 = vsel %vm765, %v720, 0.0
      %v844 = vsel %vm765, %v721, 0.0
      %v845 = vsel %vm765, %v722, 0.0
      %v846 = vpack.c.bf16 %v767, %v766
      %v847 = vpack.c.bf16 %v769, %v768
      %v848 = vpack.c.bf16 %v771, %v770
      %v849 = vpack.c.bf16 %v773, %v772
      %v850 = vpack.c.bf16 %v775, %v774
      %v851 = vpack.c.bf16 %v777, %v776
      %v852 = vpack.c.bf16 %v779, %v778
      %v853 = vpack.c.bf16 %v781, %v780
      %v854 = vpack.c.bf16 %v783, %v782
      %v855 = vpack.c.bf16 %v785, %v784
      %v856 = vpack.c.bf16 %v787, %v786
      %v857 = vpack.c.bf16 %v789, %v788
      %v858 = vpack.c.bf16 %v791, %v790
      %v859 = vpack.c.bf16 %v793, %v792
      %v860 = vpack.c.bf16 %v795, %v794
      %v861 = vpack.c.bf16 %v797, %v796
      %v862 = vpack.c.bf16 %v799, %v798
      %v863 = vpack.c.bf16 %v801, %v800
      %v864 = vpack.c.bf16 %v803, %v802
      %v865 = vpack.c.bf16 %v805, %v804
      %v866 = vpack.c.bf16 %v807, %v806
      %v867 = vpack.c.bf16 %v809, %v808
      %v868 = vpack.c.bf16 %v811, %v810
      %v869 = vpack.c.bf16 %v813, %v812
      %v870 = vpack.c.bf16 %v815, %v814
      %v871 = vpack.c.bf16 %v817, %v816
      %v872 = vpack.c.bf16 %v819, %v818
      %v873 = vpack.c.bf16 %v821, %v820
      %v874 = vpack.c.bf16 %v823, %v822
      %v875 = vpack.c.bf16 %v825, %v824
      %v876 = vpack.c.bf16 %v827, %v826
      %v877 = vpack.c.bf16 %v829, %v828
      %v878 = vpack.c.bf16 %v831, %v830
      %v879 = vpack.c.bf16 %v833, %v832
      %v880 = vpack.c.bf16 %v835, %v834
      %v881 = vpack.c.bf16 %v837, %v836
      %v882 = vpack.c.bf16 %v839, %v838
      %v883 = vpack.c.bf16 %v841, %v840
      %v884 = vpack.c.bf16 %v843, %v842
      %v885 = vpack.c.bf16 %v845, %v844
      %v902 = vunpack.c.l.b16 %v846
      %v903 = vunpack.c.h.b16 %v846
      %v904 = vunpack.c.l.b16 %v847
      %v905 = vunpack.c.h.b16 %v847
      %v906 = vunpack.c.l.b16 %v850
      %v907 = vunpack.c.h.b16 %v850
      %v908 = vunpack.c.l.b16 %v851
      %v909 = vunpack.c.h.b16 %v851
      %v910 = vunpack.c.l.b16 %v854
      %v911 = vunpack.c.h.b16 %v854
      %v912 = vunpack.c.l.b16 %v855
      %v913 = vunpack.c.h.b16 %v855
      %v914 = vunpack.c.l.b16 %v858
      %v915 = vunpack.c.h.b16 %v858
      %v916 = vunpack.c.l.b16 %v859
      %v917 = vunpack.c.h.b16 %v859
      %v918 = vunpack.c.l.b16 %v862
      %v919 = vunpack.c.h.b16 %v862
      %v920 = vunpack.c.l.b16 %v863
      %v921 = vunpack.c.h.b16 %v863
      %v922 = vunpack.c.l.b16 %v866
      %v923 = vunpack.c.h.b16 %v866
      %v924 = vunpack.c.l.b16 %v867
      %v925 = vunpack.c.h.b16 %v867
      %v926 = vunpack.c.l.b16 %v870
      %v927 = vunpack.c.h.b16 %v870
      %v928 = vunpack.c.l.b16 %v871
      %v929 = vunpack.c.h.b16 %v871
      %v930 = vunpack.c.l.b16 %v874
      %v931 = vunpack.c.h.b16 %v874
      %v932 = vunpack.c.l.b16 %v875
      %v933 = vunpack.c.h.b16 %v875
      %v950 = vunpack.c.l.b16 %v848
      %v951 = vunpack.c.h.b16 %v848
      %v952 = vunpack.c.l.b16 %v849
      %v953 = vunpack.c.h.b16 %v849
      %v954 = vunpack.c.l.b16 %v852
      %v955 = vunpack.c.h.b16 %v852
      %v956 = vunpack.c.l.b16 %v853
      %v957 = vunpack.c.h.b16 %v853
      %v958 = vunpack.c.l.b16 %v856
      %v959 = vunpack.c.h.b16 %v856
      %v960 = vunpack.c.l.b16 %v857
      %v961 = vunpack.c.h.b16 %v857
      %v962 = vunpack.c.l.b16 %v860
      %v963 = vunpack.c.h.b16 %v860
      %v964 = vunpack.c.l.b16 %v861
      %v965 = vunpack.c.h.b16 %v861
      %v966 = vunpack.c.l.b16 %v864
      %v967 = vunpack.c.h.b16 %v864
      %v968 = vunpack.c.l.b16 %v865
      %v969 = vunpack.c.h.b16 %v865
      %v970 = vunpack.c.l.b16 %v868
      %v971 = vunpack.c.h.b16 %v868
      %v972 = vunpack.c.l.b16 %v869
      %v973 = vunpack.c.h.b16 %v869
      %v974 = vunpack.c.l.b16 %v872
      %v975 = vunpack.c.h.b16 %v872
      %v976 = vunpack.c.l.b16 %v873
      %v977 = vunpack.c.h.b16 %v873
      %v978 = vunpack.c.l.b16 %v876
      %v979 = vunpack.c.h.b16 %v876
      %v980 = vunpack.c.l.b16 %v877
      %v981 = vunpack.c.h.b16 %v877
      %v982 = vpack.c.b16 %v950, %v902
      %v983 = vpack.c.b16 %v951, %v903
      %v984 = vpack.c.b16 %v952, %v904
      %v985 = vpack.c.b16 %v953, %v905
      %v986 = vpack.c.b16 %v954, %v906
      %v987 = vpack.c.b16 %v955, %v907
      %v988 = vpack.c.b16 %v956, %v908
      %v989 = vpack.c.b16 %v957, %v909
      %v990 = vpack.c.b16 %v958, %v910
      %v991 = vpack.c.b16 %v959, %v911
      %v992 = vpack.c.b16 %v960, %v912
      %v993 = vpack.c.b16 %v961, %v913
      %v994 = vpack.c.b16 %v962, %v914
      %v995 = vpack.c.b16 %v963, %v915
      %v996 = vpack.c.b16 %v964, %v916
      %v997 = vpack.c.b16 %v965, %v917
      %v998 = vpack.c.b16 %v966, %v918
      %v999 = vpack.c.b16 %v967, %v919
      %v1000 = vpack.c.b16 %v968, %v920
      %v1001 = vpack.c.b16 %v969, %v921
      %v1002 = vpack.c.b16 %v970, %v922
      %v1003 = vpack.c.b16 %v971, %v923
      %v1004 = vpack.c.b16 %v972, %v924
      %v1005 = vpack.c.b16 %v973, %v925
      %v1006 = vpack.c.b16 %v974, %v926
      %v1007 = vpack.c.b16 %v975, %v927
      %v1008 = vpack.c.b16 %v976, %v928
      %v1009 = vpack.c.b16 %v977, %v929
      %v1010 = vpack.c.b16 %v978, %v930
      %v1011 = vpack.c.b16 %v979, %v931
      %v1012 = vpack.c.b16 %v980, %v932
      %v1013 = vpack.c.b16 %v981, %v933
      %v1015 = vshrl.u32 %v982, 16
      %v1017 = vshll.u32 %v982, 16
      %v1019 = vrot.slane %v1017, 1
      %v1020 = vor.u32 %v1015, %v1019
      %v1022 = vshrl.u32 %v983, 16
      %v1024 = vshll.u32 %v983, 16
      %v1026 = vrot.slane %v1024, 1
      %v1027 = vor.u32 %v1022, %v1026
      %v1029 = vshrl.u32 %v984, 16
      %v1031 = vshll.u32 %v984, 16
      %v1033 = vrot.slane %v1031, 1
      %v1034 = vor.u32 %v1029, %v1033
      %v1036 = vshrl.u32 %v985, 16
      %v1038 = vshll.u32 %v985, 16
      %v1040 = vrot.slane %v1038, 1
      %v1041 = vor.u32 %v1036, %v1040
      %v1043 = vshrl.u32 %v986, 16
      %v1045 = vshll.u32 %v986, 16
      %v1047 = vrot.slane %v1045, 1
      %v1048 = vor.u32 %v1043, %v1047
      %v1050 = vshrl.u32 %v987, 16
      %v1052 = vshll.u32 %v987, 16
      %v1054 = vrot.slane %v1052, 1
      %v1055 = vor.u32 %v1050, %v1054
      %v1057 = vshrl.u32 %v988, 16
      %v1059 = vshll.u32 %v988, 16
      %v1061 = vrot.slane %v1059, 1
      %v1062 = vor.u32 %v1057, %v1061
      %v1064 = vshrl.u32 %v989, 16
      %v1066 = vshll.u32 %v989, 16
      %v1068 = vrot.slane %v1066, 1
      %v1069 = vor.u32 %v1064, %v1068
      %v1071 = vshrl.u32 %v990, 16
      %v1073 = vshll.u32 %v990, 16
      %v1075 = vrot.slane %v1073, 1
      %v1076 = vor.u32 %v1071, %v1075
      %v1078 = vshrl.u32 %v991, 16
      %v1080 = vshll.u32 %v991, 16
      %v1082 = vrot.slane %v1080, 1
      %v1083 = vor.u32 %v1078, %v1082
      %v1085 = vshrl.u32 %v992, 16
      %v1087 = vshll.u32 %v992, 16
      %v1089 = vrot.slane %v1087, 1
      %v1090 = vor.u32 %v1085, %v1089
      %v1092 = vshrl.u32 %v993, 16
      %v1094 = vshll.u32 %v993, 16
      %v1096 = vrot.slane %v1094, 1
      %v1097 = vor.u32 %v1092, %v1096
      %v1099 = vshrl.u32 %v994, 16
      %v1101 = vshll.u32 %v994, 16
      %v1103 = vrot.slane %v1101, 1
      %v1104 = vor.u32 %v1099, %v1103
      %v1106 = vshrl.u32 %v995, 16
      %v1108 = vshll.u32 %v995, 16
      %v1110 = vrot.slane %v1108, 1
      %v1111 = vor.u32 %v1106, %v1110
      %v1113 = vshrl.u32 %v996, 16
      %v1115 = vshll.u32 %v996, 16
      %v1117 = vrot.slane %v1115, 1
      %v1118 = vor.u32 %v1113, %v1117
      %v1120 = vshrl.u32 %v997, 16
      %v1122 = vshll.u32 %v997, 16
      %v1124 = vrot.slane %v1122, 1
      %v1125 = vor.u32 %v1120, %v1124
      %v1127 = vshrl.u32 %v998, 16
      %v1129 = vshll.u32 %v998, 16
      %v1131 = vrot.slane %v1129, 1
      %v1132 = vor.u32 %v1127, %v1131
      %v1134 = vshrl.u32 %v999, 16
      %v1136 = vshll.u32 %v999, 16
      %v1138 = vrot.slane %v1136, 1
      %v1139 = vor.u32 %v1134, %v1138
      %v1141 = vshrl.u32 %v1000, 16
      %v1143 = vshll.u32 %v1000, 16
      %v1145 = vrot.slane %v1143, 1
      %v1146 = vor.u32 %v1141, %v1145
      %v1148 = vshrl.u32 %v1001, 16
      %v1150 = vshll.u32 %v1001, 16
      %v1152 = vrot.slane %v1150, 1
      %v1153 = vor.u32 %v1148, %v1152
      %v1155 = vshrl.u32 %v1002, 16
      %v1157 = vshll.u32 %v1002, 16
      %v1159 = vrot.slane %v1157, 1
      %v1160 = vor.u32 %v1155, %v1159
      %v1162 = vshrl.u32 %v1003, 16
      %v1164 = vshll.u32 %v1003, 16
      %v1166 = vrot.slane %v1164, 1
      %v1167 = vor.u32 %v1162, %v1166
      %v1169 = vshrl.u32 %v1004, 16
      %v1171 = vshll.u32 %v1004, 16
      %v1173 = vrot.slane %v1171, 1
      %v1174 = vor.u32 %v1169, %v1173
      %v1176 = vshrl.u32 %v1005, 16
      %v1178 = vshll.u32 %v1005, 16
      %v1180 = vrot.slane %v1178, 1
      %v1181 = vor.u32 %v1176, %v1180
      %v1183 = vshrl.u32 %v1006, 16
      %v1185 = vshll.u32 %v1006, 16
      %v1187 = vrot.slane %v1185, 1
      %v1188 = vor.u32 %v1183, %v1187
      %v1190 = vshrl.u32 %v1007, 16
      %v1192 = vshll.u32 %v1007, 16
      %v1194 = vrot.slane %v1192, 1
      %v1195 = vor.u32 %v1190, %v1194
      %v1197 = vshrl.u32 %v1008, 16
      %v1199 = vshll.u32 %v1008, 16
      %v1201 = vrot.slane %v1199, 1
      %v1202 = vor.u32 %v1197, %v1201
      %v1204 = vshrl.u32 %v1009, 16
      %v1206 = vshll.u32 %v1009, 16
      %v1208 = vrot.slane %v1206, 1
      %v1209 = vor.u32 %v1204, %v1208
      %v1211 = vshrl.u32 %v1010, 16
      %v1213 = vshll.u32 %v1010, 16
      %v1215 = vrot.slane %v1213, 1
      %v1216 = vor.u32 %v1211, %v1215
      %v1218 = vshrl.u32 %v1011, 16
      %v1220 = vshll.u32 %v1011, 16
      %v1222 = vrot.slane %v1220, 1
      %v1223 = vor.u32 %v1218, %v1222
      %v1225 = vshrl.u32 %v1012, 16
      %v1227 = vshll.u32 %v1012, 16
      %v1229 = vrot.slane %v1227, 1
      %v1230 = vor.u32 %v1225, %v1229
      %v1232 = vshrl.u32 %v1013, 16
      %v1234 = vshll.u32 %v1013, 16
      %v1236 = vrot.slane %v1234, 1
      %v1237 = vor.u32 %v1232, %v1236
      %v1238 = vrot.slane %v982, 1
      %v1239 = vrot.slane %v983, 1
      %v1240 = vrot.slane %v984, 1
      %v1241 = vrot.slane %v985, 1
      %v1242 = vrot.slane %v986, 1
      %v1243 = vrot.slane %v987, 1
      %v1244 = vrot.slane %v988, 1
      %v1245 = vrot.slane %v989, 1
      %v1246 = vrot.slane %v990, 1
      %v1247 = vrot.slane %v991, 1
      %v1248 = vrot.slane %v992, 1
      %v1249 = vrot.slane %v993, 1
      %v1250 = vrot.slane %v994, 1
      %v1251 = vrot.slane %v995, 1
      %v1252 = vrot.slane %v996, 1
      %v1253 = vrot.slane %v997, 1
      %v1254 = vrot.slane %v998, 1
      %v1255 = vrot.slane %v999, 1
      %v1256 = vrot.slane %v1000, 1
      %v1257 = vrot.slane %v1001, 1
      %v1258 = vrot.slane %v1002, 1
      %v1259 = vrot.slane %v1003, 1
      %v1260 = vrot.slane %v1004, 1
      %v1261 = vrot.slane %v1005, 1
      %v1262 = vrot.slane %v1006, 1
      %v1263 = vrot.slane %v1007, 1
      %v1264 = vrot.slane %v1008, 1
      %v1265 = vrot.slane %v1009, 1
      %v1266 = vrot.slane %v1010, 1
      %v1267 = vrot.slane %v1011, 1
      %v1268 = vrot.slane %v1012, 1
      %v1269 = vrot.slane %v1013, 1
      %v1270 = vunpack.c.l.b16 %v1020
      %v1271 = vunpack.c.l.b16 %v1027
      %v1272 = vunpack.c.l.b16 %v1034
      %v1273 = vunpack.c.l.b16 %v1041
      %v1274 = vunpack.c.l.b16 %v1238
      %v1275 = vunpack.c.l.b16 %v1239
      %v1276 = vunpack.c.l.b16 %v1240
      %v1277 = vunpack.c.l.b16 %v1241
      %v1278 = vunpack.c.l.b16 %v1048
      %v1279 = vunpack.c.l.b16 %v1055
      %v1280 = vunpack.c.l.b16 %v1062
      %v1281 = vunpack.c.l.b16 %v1069
      %v1282 = vunpack.c.l.b16 %v1242
      %v1283 = vunpack.c.l.b16 %v1243
      %v1284 = vunpack.c.l.b16 %v1244
      %v1285 = vunpack.c.l.b16 %v1245
      %v1286 = vunpack.c.l.b16 %v1076
      %v1287 = vunpack.c.l.b16 %v1083
      %v1288 = vunpack.c.l.b16 %v1090
      %v1289 = vunpack.c.l.b16 %v1097
      %v1290 = vunpack.c.l.b16 %v1246
      %v1291 = vunpack.c.l.b16 %v1247
      %v1292 = vunpack.c.l.b16 %v1248
      %v1293 = vunpack.c.l.b16 %v1249
      %v1294 = vunpack.c.l.b16 %v1104
      %v1295 = vunpack.c.l.b16 %v1111
      %v1296 = vunpack.c.l.b16 %v1118
      %v1297 = vunpack.c.l.b16 %v1125
      %v1298 = vunpack.c.l.b16 %v1250
      %v1299 = vunpack.c.l.b16 %v1251
      %v1300 = vunpack.c.l.b16 %v1252
      %v1301 = vunpack.c.l.b16 %v1253
      %v1302 = vunpack.c.l.b16 %v1132
      %v1303 = vunpack.c.l.b16 %v1139
      %v1304 = vunpack.c.l.b16 %v1146
      %v1305 = vunpack.c.l.b16 %v1153
      %v1306 = vunpack.c.l.b16 %v1254
      %v1307 = vunpack.c.l.b16 %v1255
      %v1308 = vunpack.c.l.b16 %v1256
      %v1309 = vunpack.c.l.b16 %v1257
      %v1310 = vunpack.c.l.b16 %v1160
      %v1311 = vunpack.c.l.b16 %v1167
      %v1312 = vunpack.c.l.b16 %v1174
      %v1313 = vunpack.c.l.b16 %v1181
      %v1314 = vunpack.c.l.b16 %v1258
      %v1315 = vunpack.c.l.b16 %v1259
      %v1316 = vunpack.c.l.b16 %v1260
      %v1317 = vunpack.c.l.b16 %v1261
      %v1318 = vunpack.c.l.b16 %v1188
      %v1319 = vunpack.c.l.b16 %v1195
      %v1320 = vunpack.c.l.b16 %v1202
      %v1321 = vunpack.c.l.b16 %v1209
      %v1322 = vunpack.c.l.b16 %v1262
      %v1323 = vunpack.c.l.b16 %v1263
      %v1324 = vunpack.c.l.b16 %v1264
      %v1325 = vunpack.c.l.b16 %v1265
      %v1326 = vunpack.c.l.b16 %v1216
      %v1327 = vunpack.c.l.b16 %v1223
      %v1328 = vunpack.c.l.b16 %v1230
      %v1329 = vunpack.c.l.b16 %v1237
      %v1330 = vunpack.c.l.b16 %v1266
      %v1331 = vunpack.c.l.b16 %v1267
      %v1332 = vunpack.c.l.b16 %v1268
      %v1333 = vunpack.c.l.b16 %v1269
      %v1334 = vld [vmem:[%s3] sm:$0xf]
      %v1335 = vld [vmem:[%s3 + $0x4] sm:$0xf]
      %v1336 = vld [vmem:[%s3 + $0x8] sm:$0xf]
      %v1337 = vld [vmem:[%s3 + $0xc] sm:$0xf]
      %v1338 = vld [vmem:[%s3 + $0x10] sm:$0xf]
      %v1339 = vld [vmem:[%s3 + $0x14] sm:$0xf]
      %v1340 = vld [vmem:[%s3 + $0x18] sm:$0xf]
      %v1341 = vld [vmem:[%s3 + $0x1c] sm:$0xf]
      %v1342 = vld [vmem:[%s3 + $0x20] sm:$0xf]
      %v1343 = vld [vmem:[%s3 + $0x24] sm:$0xf]
      %v1344 = vld [vmem:[%s3 + $0x28] sm:$0xf]
      %v1345 = vld [vmem:[%s3 + $0x2c] sm:$0xf]
      %v1346 = vld [vmem:[%s3 + $0x30] sm:$0xf]
      %v1347 = vld [vmem:[%s3 + $0x34] sm:$0xf]
      %v1348 = vld [vmem:[%s3 + $0x38] sm:$0xf]
      %v1349 = vld [vmem:[%s3 + $0x3c] sm:$0xf]
      %v1350 = vld [vmem:[%s3 + $0x40] sm:$0xf]
      %v1351 = vld [vmem:[%s3 + $0x44] sm:$0xf]
      %v1352 = vld [vmem:[%s3 + $0x48] sm:$0xf]
      %v1353 = vld [vmem:[%s3 + $0x4c] sm:$0xf]
      %v1354 = vld [vmem:[%s3 + $0x50] sm:$0xf]
      %v1355 = vld [vmem:[%s3 + $0x54] sm:$0xf]
      %v1356 = vld [vmem:[%s3 + $0x58] sm:$0xf]
      %v1357 = vld [vmem:[%s3 + $0x5c] sm:$0xf]
      %v1358 = vld [vmem:[%s3 + $0x60] sm:$0xf]
      %v1359 = vld [vmem:[%s3 + $0x64] sm:$0xf]
      %v1360 = vld [vmem:[%s3 + $0x68] sm:$0xf]
      %v1361 = vld [vmem:[%s3 + $0x6c] sm:$0xf]
      %v1362 = vld [vmem:[%s3 + $0x70] sm:$0xf]
      %v1363 = vld [vmem:[%s3 + $0x74] sm:$0xf]
      %v1364 = vld [vmem:[%s3 + $0x78] sm:$0xf]
      %v1365 = vld [vmem:[%s3 + $0x7c] sm:$0xf]
      %v1366 = vld [vmem:[%s3 + $0x80] sm:$0xf]
      %v1367 = vld [vmem:[%s3 + $0x84] sm:$0xf]
      %v1368 = vld [vmem:[%s3 + $0x88] sm:$0xf]
      %v1369 = vld [vmem:[%s3 + $0x8c] sm:$0xf]
      %v1370 = vld [vmem:[%s3 + $0x90] sm:$0xf]
      %v1371 = vld [vmem:[%s3 + $0x94] sm:$0xf]
      %v1372 = vld [vmem:[%s3 + $0x98] sm:$0xf]
      %v1373 = vld [vmem:[%s3 + $0x9c] sm:$0xf]
      %v1374 = vld [vmem:[%s3 + $0xa0] sm:$0xf]
      %v1375 = vld [vmem:[%s3 + $0xa4] sm:$0xf]
      %v1376 = vld [vmem:[%s3 + $0xa8] sm:$0xf]
      %v1377 = vld [vmem:[%s3 + $0xac] sm:$0xf]
      %v1378 = vld [vmem:[%s3 + $0xb0] sm:$0xf]
      %v1379 = vld [vmem:[%s3 + $0xb4] sm:$0xf]
      %v1380 = vld [vmem:[%s3 + $0xb8] sm:$0xf]
      %v1381 = vld [vmem:[%s3 + $0xbc] sm:$0xf]
      %v1382 = vld [vmem:[%s3 + $0xc0] sm:$0xf]
      %v1383 = vld [vmem:[%s3 + $0xc4] sm:$0xf]
      %v1384 = vld [vmem:[%s3 + $0xc8] sm:$0xf]
      %v1385 = vld [vmem:[%s3 + $0xcc] sm:$0xf]
      %v1386 = vld [vmem:[%s3 + $0xd0] sm:$0xf]
      %v1387 = vld [vmem:[%s3 + $0xd4] sm:$0xf]
      %v1388 = vld [vmem:[%s3 + $0xd8] sm:$0xf]
      %v1389 = vld [vmem:[%s3 + $0xdc] sm:$0xf]
      %v1390 = vld [vmem:[%s3 + $0xe0] sm:$0xf]
      %v1391 = vld [vmem:[%s3 + $0xe4] sm:$0xf]
      %v1392 = vld [vmem:[%s3 + $0xe8] sm:$0xf]
      %v1393 = vld [vmem:[%s3 + $0xec] sm:$0xf]
      %v1394 = vld [vmem:[%s3 + $0xf0] sm:$0xf]
      %v1395 = vld [vmem:[%s3 + $0xf4] sm:$0xf]
      %v1396 = vld [vmem:[%s3 + $0xf8] sm:$0xf]
      %v1397 = vld [vmem:[%s3 + $0xfc] sm:$0xf]
      %v1398 = vld [vmem:[%s3 + $0x100] sm:$0xf]
      %v1399 = vld [vmem:[%s3 + $0x104] sm:$0xf]
      %v1400 = vld [vmem:[%s3 + $0x108] sm:$0xf]
      %v1401 = vld [vmem:[%s3 + $0x10c] sm:$0xf]
      %v1402 = vld [vmem:[%s3 + $0x110] sm:$0xf]
      %v1403 = vld [vmem:[%s3 + $0x114] sm:$0xf]
      %v1404 = vld [vmem:[%s3 + $0x118] sm:$0xf]
      %v1405 = vld [vmem:[%s3 + $0x11c] sm:$0xf]
      %v1406 = vld [vmem:[%s3 + $0x120] sm:$0xf]
      %v1407 = vld [vmem:[%s3 + $0x124] sm:$0xf]
      %v1408 = vld [vmem:[%s3 + $0x128] sm:$0xf]
      %v1409 = vld [vmem:[%s3 + $0x12c] sm:$0xf]
      %v1410 = vld [vmem:[%s3 + $0x130] sm:$0xf]
      %v1411 = vld [vmem:[%s3 + $0x134] sm:$0xf]
      %v1412 = vld [vmem:[%s3 + $0x138] sm:$0xf]
      %v1413 = vld [vmem:[%s3 + $0x13c] sm:$0xf]
      %v1414 = vld [vmem:[%s3 + $0x140] sm:$0xf]
      %v1415 = vld [vmem:[%s3 + $0x144] sm:$0xf]
      %v1416 = vld [vmem:[%s3 + $0x148] sm:$0xf]
      %v1417 = vld [vmem:[%s3 + $0x14c] sm:$0xf]
      %v1418 = vld [vmem:[%s3 + $0x150] sm:$0xf]
      %v1419 = vld [vmem:[%s3 + $0x154] sm:$0xf]
      %v1420 = vld [vmem:[%s3 + $0x158] sm:$0xf]
      %v1421 = vld [vmem:[%s3 + $0x15c] sm:$0xf]
      %v1422 = vld [vmem:[%s3 + $0x160] sm:$0xf]
      %v1423 = vld [vmem:[%s3 + $0x164] sm:$0xf]
      %v1424 = vld [vmem:[%s3 + $0x168] sm:$0xf]
      %v1425 = vld [vmem:[%s3 + $0x16c] sm:$0xf]
      %v1426 = vld [vmem:[%s3 + $0x170] sm:$0xf]
      %v1427 = vld [vmem:[%s3 + $0x174] sm:$0xf]
      %v1428 = vld [vmem:[%s3 + $0x178] sm:$0xf]
      %v1429 = vld [vmem:[%s3 + $0x17c] sm:$0xf]
      %v1430 = vld [vmem:[%s3 + $0x180] sm:$0xf]
      %v1431 = vld [vmem:[%s3 + $0x184] sm:$0xf]
      %v1432 = vld [vmem:[%s3 + $0x188] sm:$0xf]
      %v1433 = vld [vmem:[%s3 + $0x18c] sm:$0xf]
      %v1434 = vld [vmem:[%s3 + $0x190] sm:$0xf]
      %v1435 = vld [vmem:[%s3 + $0x194] sm:$0xf]
      %v1436 = vld [vmem:[%s3 + $0x198] sm:$0xf]
      %v1437 = vld [vmem:[%s3 + $0x19c] sm:$0xf]
      %v1438 = vld [vmem:[%s3 + $0x1a0] sm:$0xf]
      %v1439 = vld [vmem:[%s3 + $0x1a4] sm:$0xf]
      %v1440 = vld [vmem:[%s3 + $0x1a8] sm:$0xf]
      %v1441 = vld [vmem:[%s3 + $0x1ac] sm:$0xf]
      %v1442 = vld [vmem:[%s3 + $0x1b0] sm:$0xf]
      %v1443 = vld [vmem:[%s3 + $0x1b4] sm:$0xf]
      %v1444 = vld [vmem:[%s3 + $0x1b8] sm:$0xf]
      %v1445 = vld [vmem:[%s3 + $0x1bc] sm:$0xf]
      %v1446 = vld [vmem:[%s3 + $0x1c0] sm:$0xf]
      %v1447 = vld [vmem:[%s3 + $0x1c4] sm:$0xf]
      %v1448 = vld [vmem:[%s3 + $0x1c8] sm:$0xf]
      %v1449 = vld [vmem:[%s3 + $0x1cc] sm:$0xf]
      %v1450 = vld [vmem:[%s3 + $0x1d0] sm:$0xf]
      %v1451 = vld [vmem:[%s3 + $0x1d4] sm:$0xf]
      %v1452 = vld [vmem:[%s3 + $0x1d8] sm:$0xf]
      %v1453 = vld [vmem:[%s3 + $0x1dc] sm:$0xf]
      %v1454 = vld [vmem:[%s3 + $0x1e0] sm:$0xf]
      %v1455 = vld [vmem:[%s3 + $0x1e4] sm:$0xf]
      %v1456 = vld [vmem:[%s3 + $0x1e8] sm:$0xf]
      %v1457 = vld [vmem:[%s3 + $0x1ec] sm:$0xf]
      %v1458 = vld [vmem:[%s3 + $0x1f0] sm:$0xf]
      %v1459 = vld [vmem:[%s3 + $0x1f4] sm:$0xf]
      %v1460 = vld [vmem:[%s3 + $0x1f8] sm:$0xf]
      %v1461 = vld [vmem:[%s3 + $0x1fc] sm:$0xf]
      %v1462 = vld [vmem:[%s3 + $0x200] sm:$0xf]
      %v1463 = vld [vmem:[%s3 + $0x204] sm:$0xf]
      %v1464 = vld [vmem:[%s3 + $0x208] sm:$0xf]
      %v1465 = vld [vmem:[%s3 + $0x20c] sm:$0xf]
      %v1466 = vld [vmem:[%s3 + $0x210] sm:$0xf]
      %v1467 = vld [vmem:[%s3 + $0x214] sm:$0xf]
      %v1468 = vld [vmem:[%s3 + $0x218] sm:$0xf]
      %v1469 = vld [vmem:[%s3 + $0x21c] sm:$0xf]
      %v1470 = vld [vmem:[%s3 + $0x220] sm:$0xf]
      %v1471 = vld [vmem:[%s3 + $0x224] sm:$0xf]
      %v1472 = vld [vmem:[%s3 + $0x228] sm:$0xf]
      %v1473 = vld [vmem:[%s3 + $0x22c] sm:$0xf]
      %v1474 = vld [vmem:[%s3 + $0x230] sm:$0xf]
      %v1475 = vld [vmem:[%s3 + $0x234] sm:$0xf]
      %v1476 = vld [vmem:[%s3 + $0x238] sm:$0xf]
      %v1477 = vld [vmem:[%s3 + $0x23c] sm:$0xf]
      %v1478 = vld [vmem:[%s3 + $0x240] sm:$0xf]
      %v1479 = vld [vmem:[%s3 + $0x244] sm:$0xf]
      %v1480 = vld [vmem:[%s3 + $0x248] sm:$0xf]
      %v1481 = vld [vmem:[%s3 + $0x24c] sm:$0xf]
      %v1482 = vld [vmem:[%s3 + $0x250] sm:$0xf]
      %v1483 = vld [vmem:[%s3 + $0x254] sm:$0xf]
      %v1484 = vld [vmem:[%s3 + $0x258] sm:$0xf]
      %v1485 = vld [vmem:[%s3 + $0x25c] sm:$0xf]
      %v1486 = vld [vmem:[%s3 + $0x260] sm:$0xf]
      %v1487 = vld [vmem:[%s3 + $0x264] sm:$0xf]
      %v1488 = vld [vmem:[%s3 + $0x268] sm:$0xf]
      %v1489 = vld [vmem:[%s3 + $0x26c] sm:$0xf]
      %v1490 = vld [vmem:[%s3 + $0x270] sm:$0xf]
      %v1491 = vld [vmem:[%s3 + $0x274] sm:$0xf]
      %v1492 = vld [vmem:[%s3 + $0x278] sm:$0xf]
      %v1493 = vld [vmem:[%s3 + $0x27c] sm:$0xf]
      %v1494 = vld [vmem:[%s3 + $0x280] sm:$0xf]
      %v1495 = vld [vmem:[%s3 + $0x284] sm:$0xf]
      %v1496 = vld [vmem:[%s3 + $0x288] sm:$0xf]
      %v1497 = vld [vmem:[%s3 + $0x28c] sm:$0xf]
      %v1498 = vld [vmem:[%s3 + $0x290] sm:$0xf]
      %v1499 = vld [vmem:[%s3 + $0x294] sm:$0xf]
      %v1500 = vld [vmem:[%s3 + $0x298] sm:$0xf]
      %v1501 = vld [vmem:[%s3 + $0x29c] sm:$0xf]
      %v1502 = vld [vmem:[%s3 + $0x2a0] sm:$0xf]
      %v1503 = vld [vmem:[%s3 + $0x2a4] sm:$0xf]
      %v1504 = vld [vmem:[%s3 + $0x2a8] sm:$0xf]
      %v1505 = vld [vmem:[%s3 + $0x2ac] sm:$0xf]
      %v1506 = vld [vmem:[%s3 + $0x2b0] sm:$0xf]
      %v1507 = vld [vmem:[%s3 + $0x2b4] sm:$0xf]
      %v1508 = vld [vmem:[%s3 + $0x2b8] sm:$0xf]
      %v1509 = vld [vmem:[%s3 + $0x2bc] sm:$0xf]
      %v1510 = vld [vmem:[%s3 + $0x2c0] sm:$0xf]
      %v1511 = vld [vmem:[%s3 + $0x2c4] sm:$0xf]
      %v1512 = vld [vmem:[%s3 + $0x2c8] sm:$0xf]
      %v1513 = vld [vmem:[%s3 + $0x2cc] sm:$0xf]
      %v1514 = vld [vmem:[%s3 + $0x2d0] sm:$0xf]
      %v1515 = vld [vmem:[%s3 + $0x2d4] sm:$0xf]
      %v1516 = vld [vmem:[%s3 + $0x2d8] sm:$0xf]
      %v1517 = vld [vmem:[%s3 + $0x2dc] sm:$0xf]
      %v1518 = vld [vmem:[%s3 + $0x2e0] sm:$0xf]
      %v1519 = vld [vmem:[%s3 + $0x2e4] sm:$0xf]
      %v1520 = vld [vmem:[%s3 + $0x2e8] sm:$0xf]
      %v1521 = vld [vmem:[%s3 + $0x2ec] sm:$0xf]
      %v1522 = vld [vmem:[%s3 + $0x2f0] sm:$0xf]
      %v1523 = vld [vmem:[%s3 + $0x2f4] sm:$0xf]
      %v1524 = vld [vmem:[%s3 + $0x2f8] sm:$0xf]
      %v1525 = vld [vmem:[%s3 + $0x2fc] sm:$0xf]
      %v1528 = vunpack.c.l.b16 %v878
      %v1529 = vunpack.c.h.b16 %v878
      %v1530 = vunpack.c.l.b16 %v879
      %v1531 = vunpack.c.h.b16 %v879
      %v1534 = vunpack.c.l.b16 %v880
      %v1535 = vunpack.c.h.b16 %v880
      %v1536 = vunpack.c.l.b16 %v881
      %v1537 = vunpack.c.h.b16 %v881
      %v1538 = vpack.c.b16 %v1534, %v1528
      %v1539 = vpack.c.b16 %v1535, %v1529
      %v1540 = vpack.c.b16 %v1536, %v1530
      %v1541 = vpack.c.b16 %v1537, %v1531
      %v1543 = vshrl.u32 %v1538, 16
      %v1545 = vshll.u32 %v1538, 16
      %v1547 = vrot.slane %v1545, 1
      %v1548 = vor.u32 %v1543, %v1547
      %v1550 = vshrl.u32 %v1539, 16
      %v1552 = vshll.u32 %v1539, 16
      %v1554 = vrot.slane %v1552, 1
      %v1555 = vor.u32 %v1550, %v1554
      %v1557 = vshrl.u32 %v1540, 16
      %v1559 = vshll.u32 %v1540, 16
      %v1561 = vrot.slane %v1559, 1
      %v1562 = vor.u32 %v1557, %v1561
      %v1564 = vshrl.u32 %v1541, 16
      %v1566 = vshll.u32 %v1541, 16
      %v1568 = vrot.slane %v1566, 1
      %v1569 = vor.u32 %v1564, %v1568
      %v1570 = vrot.slane %v1538, 1
      %v1571 = vrot.slane %v1539, 1
      %v1572 = vrot.slane %v1540, 1
      %v1573 = vrot.slane %v1541, 1
      %v1574 = vunpack.c.l.b16 %v1548
      %v1575 = vunpack.c.l.b16 %v1555
      %v1576 = vunpack.c.l.b16 %v1562
      %v1577 = vunpack.c.l.b16 %v1569
      %v1578 = vunpack.c.l.b16 %v1570
      %v1579 = vunpack.c.l.b16 %v1571
      %v1580 = vunpack.c.l.b16 %v1572
      %v1581 = vunpack.c.l.b16 %v1573
      %s1582 = scalar_lea.vmem %s3, 768
      %v1583 = vld [vmem:[%s1582] sm:$0xf]
      %v1584 = vld [vmem:[%s1582 + $0x4] sm:$0xf]
      %v1585 = vld [vmem:[%s1582 + $0x8] sm:$0xf]
      %v1586 = vld [vmem:[%s1582 + $0xc] sm:$0xf]
      %v1587 = vld [vmem:[%s1582 + $0x10] sm:$0xf]
      %v1588 = vld [vmem:[%s1582 + $0x14] sm:$0xf]
      %v1589 = vld [vmem:[%s1582 + $0x18] sm:$0xf]
      %v1590 = vld [vmem:[%s1582 + $0x1c] sm:$0xf]
      %v1591 = vld [vmem:[%s1582 + $0x20] sm:$0xf]
      %v1592 = vld [vmem:[%s1582 + $0x24] sm:$0xf]
      %v1593 = vld [vmem:[%s1582 + $0x28] sm:$0xf]
      %v1594 = vld [vmem:[%s1582 + $0x2c] sm:$0xf]
      %v1595 = vld [vmem:[%s1582 + $0x30] sm:$0xf]
      %v1596 = vld [vmem:[%s1582 + $0x34] sm:$0xf]
      %v1597 = vld [vmem:[%s1582 + $0x38] sm:$0xf]
      %v1598 = vld [vmem:[%s1582 + $0x3c] sm:$0xf]
      %v1599 = vld [vmem:[%s1582 + $0x40] sm:$0xf]
      %v1600 = vld [vmem:[%s1582 + $0x44] sm:$0xf]
      %v1601 = vld [vmem:[%s1582 + $0x48] sm:$0xf]
      %v1602 = vld [vmem:[%s1582 + $0x4c] sm:$0xf]
      %v1603 = vld [vmem:[%s1582 + $0x50] sm:$0xf]
      %v1604 = vld [vmem:[%s1582 + $0x54] sm:$0xf]
      %v1605 = vld [vmem:[%s1582 + $0x58] sm:$0xf]
      %v1606 = vld [vmem:[%s1582 + $0x5c] sm:$0xf]
      %v1607 = vld [vmem:[%s1582 + $0x60] sm:$0xf]
      %v1608 = vld [vmem:[%s1582 + $0x64] sm:$0xf]
      %v1609 = vld [vmem:[%s1582 + $0x68] sm:$0xf]
      %v1610 = vld [vmem:[%s1582 + $0x6c] sm:$0xf]
      %v1611 = vld [vmem:[%s1582 + $0x70] sm:$0xf]
      %v1612 = vld [vmem:[%s1582 + $0x74] sm:$0xf]
      %v1613 = vld [vmem:[%s1582 + $0x78] sm:$0xf]
      %v1614 = vld [vmem:[%s1582 + $0x7c] sm:$0xf]
      %v1615 = vld [vmem:[%s1582 + $0x80] sm:$0xf]
      %v1616 = vld [vmem:[%s1582 + $0x84] sm:$0xf]
      %v1617 = vld [vmem:[%s1582 + $0x88] sm:$0xf]
      %v1618 = vld [vmem:[%s1582 + $0x8c] sm:$0xf]
      %v1619 = vld [vmem:[%s1582 + $0x90] sm:$0xf]
      %v1620 = vld [vmem:[%s1582 + $0x94] sm:$0xf]
      %v1621 = vld [vmem:[%s1582 + $0x98] sm:$0xf]
      %v1622 = vld [vmem:[%s1582 + $0x9c] sm:$0xf]
      %v1623 = vld [vmem:[%s1582 + $0xa0] sm:$0xf]
      %v1624 = vld [vmem:[%s1582 + $0xa4] sm:$0xf]
      %v1625 = vld [vmem:[%s1582 + $0xa8] sm:$0xf]
      %v1626 = vld [vmem:[%s1582 + $0xac] sm:$0xf]
      %v1627 = vld [vmem:[%s1582 + $0xb0] sm:$0xf]
      %v1628 = vld [vmem:[%s1582 + $0xb4] sm:$0xf]
      %v1629 = vld [vmem:[%s1582 + $0xb8] sm:$0xf]
      %v1630 = vld [vmem:[%s1582 + $0xbc] sm:$0xf]
      %v1631 = vld [vmem:[%s1582 + $0xc0] sm:$0xf]
      %v1632 = vld [vmem:[%s1582 + $0xc4] sm:$0xf]
      %v1633 = vld [vmem:[%s1582 + $0xc8] sm:$0xf]
      %v1634 = vld [vmem:[%s1582 + $0xcc] sm:$0xf]
      %v1635 = vld [vmem:[%s1582 + $0xd0] sm:$0xf]
      %v1636 = vld [vmem:[%s1582 + $0xd4] sm:$0xf]
      %v1637 = vld [vmem:[%s1582 + $0xd8] sm:$0xf]
      %v1638 = vld [vmem:[%s1582 + $0xdc] sm:$0xf]
      %v1639 = vld [vmem:[%s1582 + $0xe0] sm:$0xf]
      %v1640 = vld [vmem:[%s1582 + $0xe4] sm:$0xf]
      %v1641 = vld [vmem:[%s1582 + $0xe8] sm:$0xf]
      %v1642 = vld [vmem:[%s1582 + $0xec] sm:$0xf]
      %v1643 = vld [vmem:[%s1582 + $0xf0] sm:$0xf]
      %v1644 = vld [vmem:[%s1582 + $0xf4] sm:$0xf]
      %v1645 = vld [vmem:[%s1582 + $0xf8] sm:$0xf]
      %v1646 = vld [vmem:[%s1582 + $0xfc] sm:$0xf]
      %v1647 = vld [vmem:[%s1582 + $0x100] sm:$0xf]
      %v1648 = vld [vmem:[%s1582 + $0x104] sm:$0xf]
      %v1649 = vld [vmem:[%s1582 + $0x108] sm:$0xf]
      %v1650 = vld [vmem:[%s1582 + $0x10c] sm:$0xf]
      %v1651 = vld [vmem:[%s1582 + $0x110] sm:$0xf]
      %v1652 = vld [vmem:[%s1582 + $0x114] sm:$0xf]
      %v1653 = vld [vmem:[%s1582 + $0x118] sm:$0xf]
      %v1654 = vld [vmem:[%s1582 + $0x11c] sm:$0xf]
      %v1655 = vld [vmem:[%s1582 + $0x120] sm:$0xf]
      %v1656 = vld [vmem:[%s1582 + $0x124] sm:$0xf]
      %v1657 = vld [vmem:[%s1582 + $0x128] sm:$0xf]
      %v1658 = vld [vmem:[%s1582 + $0x12c] sm:$0xf]
      %v1659 = vld [vmem:[%s1582 + $0x130] sm:$0xf]
      %v1660 = vld [vmem:[%s1582 + $0x134] sm:$0xf]
      %v1661 = vld [vmem:[%s1582 + $0x138] sm:$0xf]
      %v1662 = vld [vmem:[%s1582 + $0x13c] sm:$0xf]
      %v1663 = vld [vmem:[%s1582 + $0x140] sm:$0xf]
      %v1664 = vld [vmem:[%s1582 + $0x144] sm:$0xf]
      %v1665 = vld [vmem:[%s1582 + $0x148] sm:$0xf]
      %v1666 = vld [vmem:[%s1582 + $0x14c] sm:$0xf]
      %v1667 = vld [vmem:[%s1582 + $0x150] sm:$0xf]
      %v1668 = vld [vmem:[%s1582 + $0x154] sm:$0xf]
      %v1669 = vld [vmem:[%s1582 + $0x158] sm:$0xf]
      %v1670 = vld [vmem:[%s1582 + $0x15c] sm:$0xf]
      %v1671 = vld [vmem:[%s1582 + $0x160] sm:$0xf]
      %v1672 = vld [vmem:[%s1582 + $0x164] sm:$0xf]
      %v1673 = vld [vmem:[%s1582 + $0x168] sm:$0xf]
      %v1674 = vld [vmem:[%s1582 + $0x16c] sm:$0xf]
      %v1675 = vld [vmem:[%s1582 + $0x170] sm:$0xf]
      %v1676 = vld [vmem:[%s1582 + $0x174] sm:$0xf]
      %v1677 = vld [vmem:[%s1582 + $0x178] sm:$0xf]
      %v1678 = vld [vmem:[%s1582 + $0x17c] sm:$0xf]
      %v1679 = vld [vmem:[%s1582 + $0x180] sm:$0xf]
      %v1680 = vld [vmem:[%s1582 + $0x184] sm:$0xf]
      %v1681 = vld [vmem:[%s1582 + $0x188] sm:$0xf]
      %v1682 = vld [vmem:[%s1582 + $0x18c] sm:$0xf]
      %v1683 = vld [vmem:[%s1582 + $0x190] sm:$0xf]
      %v1684 = vld [vmem:[%s1582 + $0x194] sm:$0xf]
      %v1685 = vld [vmem:[%s1582 + $0x198] sm:$0xf]
      %v1686 = vld [vmem:[%s1582 + $0x19c] sm:$0xf]
      %v1687 = vld [vmem:[%s1582 + $0x1a0] sm:$0xf]
      %v1688 = vld [vmem:[%s1582 + $0x1a4] sm:$0xf]
      %v1689 = vld [vmem:[%s1582 + $0x1a8] sm:$0xf]
      %v1690 = vld [vmem:[%s1582 + $0x1ac] sm:$0xf]
      %v1691 = vld [vmem:[%s1582 + $0x1b0] sm:$0xf]
      %v1692 = vld [vmem:[%s1582 + $0x1b4] sm:$0xf]
      %v1693 = vld [vmem:[%s1582 + $0x1b8] sm:$0xf]
      %v1694 = vld [vmem:[%s1582 + $0x1bc] sm:$0xf]
      %v1695 = vld [vmem:[%s1582 + $0x1c0] sm:$0xf]
      %v1696 = vld [vmem:[%s1582 + $0x1c4] sm:$0xf]
      %v1697 = vld [vmem:[%s1582 + $0x1c8] sm:$0xf]
      %v1698 = vld [vmem:[%s1582 + $0x1cc] sm:$0xf]
      %v1699 = vld [vmem:[%s1582 + $0x1d0] sm:$0xf]
      %v1700 = vld [vmem:[%s1582 + $0x1d4] sm:$0xf]
      %v1701 = vld [vmem:[%s1582 + $0x1d8] sm:$0xf]
      %v1702 = vld [vmem:[%s1582 + $0x1dc] sm:$0xf]
      %v1703 = vld [vmem:[%s1582 + $0x1e0] sm:$0xf]
      %v1704 = vld [vmem:[%s1582 + $0x1e4] sm:$0xf]
      %v1705 = vld [vmem:[%s1582 + $0x1e8] sm:$0xf]
      %v1706 = vld [vmem:[%s1582 + $0x1ec] sm:$0xf]
      %v1707 = vld [vmem:[%s1582 + $0x1f0] sm:$0xf]
      %v1708 = vld [vmem:[%s1582 + $0x1f4] sm:$0xf]
      %v1709 = vld [vmem:[%s1582 + $0x1f8] sm:$0xf]
      %v1710 = vld [vmem:[%s1582 + $0x1fc] sm:$0xf]
      %v1711 = vld [vmem:[%s1582 + $0x200] sm:$0xf]
      %v1712 = vld [vmem:[%s1582 + $0x204] sm:$0xf]
      %v1713 = vld [vmem:[%s1582 + $0x208] sm:$0xf]
      %v1714 = vld [vmem:[%s1582 + $0x20c] sm:$0xf]
      %v1715 = vld [vmem:[%s1582 + $0x210] sm:$0xf]
      %v1716 = vld [vmem:[%s1582 + $0x214] sm:$0xf]
      %v1717 = vld [vmem:[%s1582 + $0x218] sm:$0xf]
      %v1718 = vld [vmem:[%s1582 + $0x21c] sm:$0xf]
      %v1719 = vld [vmem:[%s1582 + $0x220] sm:$0xf]
      %v1720 = vld [vmem:[%s1582 + $0x224] sm:$0xf]
      %v1721 = vld [vmem:[%s1582 + $0x228] sm:$0xf]
      %v1722 = vld [vmem:[%s1582 + $0x22c] sm:$0xf]
      %v1723 = vld [vmem:[%s1582 + $0x230] sm:$0xf]
      %v1724 = vld [vmem:[%s1582 + $0x234] sm:$0xf]
      %v1725 = vld [vmem:[%s1582 + $0x238] sm:$0xf]
      %v1726 = vld [vmem:[%s1582 + $0x23c] sm:$0xf]
      %v1727 = vld [vmem:[%s1582 + $0x240] sm:$0xf]
      %v1728 = vld [vmem:[%s1582 + $0x244] sm:$0xf]
      %v1729 = vld [vmem:[%s1582 + $0x248] sm:$0xf]
      %v1730 = vld [vmem:[%s1582 + $0x24c] sm:$0xf]
      %v1731 = vld [vmem:[%s1582 + $0x250] sm:$0xf]
      %v1732 = vld [vmem:[%s1582 + $0x254] sm:$0xf]
      %v1733 = vld [vmem:[%s1582 + $0x258] sm:$0xf]
      %v1734 = vld [vmem:[%s1582 + $0x25c] sm:$0xf]
      %v1735 = vld [vmem:[%s1582 + $0x260] sm:$0xf]
      %v1736 = vld [vmem:[%s1582 + $0x264] sm:$0xf]
      %v1737 = vld [vmem:[%s1582 + $0x268] sm:$0xf]
      %v1738 = vld [vmem:[%s1582 + $0x26c] sm:$0xf]
      %v1739 = vld [vmem:[%s1582 + $0x270] sm:$0xf]
      %v1740 = vld [vmem:[%s1582 + $0x274] sm:$0xf]
      %v1741 = vld [vmem:[%s1582 + $0x278] sm:$0xf]
      %v1742 = vld [vmem:[%s1582 + $0x27c] sm:$0xf]
      %v1743 = vld [vmem:[%s1582 + $0x280] sm:$0xf]
      %v1744 = vld [vmem:[%s1582 + $0x284] sm:$0xf]
      %v1745 = vld [vmem:[%s1582 + $0x288] sm:$0xf]
      %v1746 = vld [vmem:[%s1582 + $0x28c] sm:$0xf]
      %v1747 = vld [vmem:[%s1582 + $0x290] sm:$0xf]
      %v1748 = vld [vmem:[%s1582 + $0x294] sm:$0xf]
      %v1749 = vld [vmem:[%s1582 + $0x298] sm:$0xf]
      %v1750 = vld [vmem:[%s1582 + $0x29c] sm:$0xf]
      %v1751 = vld [vmem:[%s1582 + $0x2a0] sm:$0xf]
      %v1752 = vld [vmem:[%s1582 + $0x2a4] sm:$0xf]
      %v1753 = vld [vmem:[%s1582 + $0x2a8] sm:$0xf]
      %v1754 = vld [vmem:[%s1582 + $0x2ac] sm:$0xf]
      %v1755 = vld [vmem:[%s1582 + $0x2b0] sm:$0xf]
      %v1756 = vld [vmem:[%s1582 + $0x2b4] sm:$0xf]
      %v1757 = vld [vmem:[%s1582 + $0x2b8] sm:$0xf]
      %v1758 = vld [vmem:[%s1582 + $0x2bc] sm:$0xf]
      %v1759 = vld [vmem:[%s1582 + $0x2c0] sm:$0xf]
      %v1760 = vld [vmem:[%s1582 + $0x2c4] sm:$0xf]
      %v1761 = vld [vmem:[%s1582 + $0x2c8] sm:$0xf]
      %v1762 = vld [vmem:[%s1582 + $0x2cc] sm:$0xf]
      %v1763 = vld [vmem:[%s1582 + $0x2d0] sm:$0xf]
      %v1764 = vld [vmem:[%s1582 + $0x2d4] sm:$0xf]
      %v1765 = vld [vmem:[%s1582 + $0x2d8] sm:$0xf]
      %v1766 = vld [vmem:[%s1582 + $0x2dc] sm:$0xf]
      %v1767 = vld [vmem:[%s1582 + $0x2e0] sm:$0xf]
      %v1768 = vld [vmem:[%s1582 + $0x2e4] sm:$0xf]
      %v1769 = vld [vmem:[%s1582 + $0x2e8] sm:$0xf]
      %v1770 = vld [vmem:[%s1582 + $0x2ec] sm:$0xf]
      %v1771 = vld [vmem:[%s1582 + $0x2f0] sm:$0xf]
      %v1772 = vld [vmem:[%s1582 + $0x2f4] sm:$0xf]
      %v1773 = vld [vmem:[%s1582 + $0x2f8] sm:$0xf]
      %v1774 = vld [vmem:[%s1582 + $0x2fc] sm:$0xf]
      %v1775 = vpack.c.b16 %v910, %v906
      %v1776 = vpack.c.b16 %v911, %v907
      %v1777 = vpack.c.b16 %v912, %v908
      %v1778 = vpack.c.b16 %v913, %v909
      %v1779 = vpack.c.b16 %v1286, %v1278
      %v1780 = vpack.c.b16 %v1287, %v1279
      %v1781 = vpack.c.b16 %v1288, %v1280
      %v1782 = vpack.c.b16 %v1289, %v1281
      %v1783 = vpack.c.b16 %v1290, %v1282
      %v1784 = vpack.c.b16 %v1291, %v1283
      %v1785 = vpack.c.b16 %v1292, %v1284
      %v1786 = vpack.c.b16 %v1293, %v1285
      %v1787 = vpack.c.b16 %v918, %v914
      %v1788 = vpack.c.b16 %v919, %v915
      %v1789 = vpack.c.b16 %v920, %v916
      %v1790 = vpack.c.b16 %v921, %v917
      %v1791 = vpack.c.b16 %v1302, %v1294
      %v1792 = vpack.c.b16 %v1303, %v1295
      %v1793 = vpack.c.b16 %v1304, %v1296
      %v1794 = vpack.c.b16 %v1305, %v1297
      %v1795 = vpack.c.b16 %v1306, %v1298
      %v1796 = vpack.c.b16 %v1307, %v1299
      %v1797 = vpack.c.b16 %v1308, %v1300
      %v1798 = vpack.c.b16 %v1309, %v1301
      %v1799 = vpack.c.b16 %v926, %v922
      %v1800 = vpack.c.b16 %v927, %v923
      %v1801 = vpack.c.b16 %v928, %v924
      %v1802 = vpack.c.b16 %v929, %v925
      %v1803 = vpack.c.b16 %v1318, %v1310
      %v1804 = vpack.c.b16 %v1319, %v1311
      %v1805 = vpack.c.b16 %v1320, %v1312
      %v1806 = vpack.c.b16 %v1321, %v1313
      %v1807 = vpack.c.b16 %v1322, %v1314
      %v1808 = vpack.c.b16 %v1323, %v1315
      %v1809 = vpack.c.b16 %v1324, %v1316
      %v1810 = vpack.c.b16 %v1325, %v1317
      %v1811 = vpack.c.b16 %v1528, %v930
      %v1812 = vpack.c.b16 %v1529, %v931
      %v1813 = vpack.c.b16 %v1530, %v932
      %v1814 = vpack.c.b16 %v1531, %v933
      %v1815 = vpack.c.b16 %v1574, %v1326
      %v1816 = vpack.c.b16 %v1575, %v1327
      %v1817 = vpack.c.b16 %v1576, %v1328
      %v1818 = vpack.c.b16 %v1577, %v1329
      %v1819 = vpack.c.b16 %v1578, %v1330
      %v1820 = vpack.c.b16 %v1579, %v1331
      %v1821 = vpack.c.b16 %v1580, %v1332
      %v1822 = vpack.c.b16 %v1581, %v1333
      %v2063 = vunpack.c.l.b16 %v1583
      %v2064 = vunpack.c.l.b16 %v1584
      %v2065 = vunpack.c.l.b16 %v1585
      %v2066 = vunpack.c.l.b16 %v1586
      %v2067 = vunpack.c.l.b16 %v1587
      %v2068 = vunpack.c.l.b16 %v1588
      %v2069 = vunpack.c.l.b16 %v1589
      %v2070 = vunpack.c.l.b16 %v1590
      %v2071 = vunpack.c.l.b16 %v1591
      %v2072 = vunpack.c.l.b16 %v1592
      %v2073 = vunpack.c.l.b16 %v1593
      %v2074 = vunpack.c.l.b16 %v1594
      %v2075 = vunpack.c.l.b16 %v1595
      %v2076 = vunpack.c.l.b16 %v1596
      %v2077 = vunpack.c.l.b16 %v1597
      %v2078 = vunpack.c.l.b16 %v1598
      %v2079 = vunpack.c.l.b16 %v1599
      %v2080 = vunpack.c.l.b16 %v1600
      %v2081 = vunpack.c.l.b16 %v1601
      %v2082 = vunpack.c.l.b16 %v1602
      %v2083 = vunpack.c.l.b16 %v1603
      %v2084 = vunpack.c.l.b16 %v1604
      %v2085 = vunpack.c.l.b16 %v1605
      %v2086 = vunpack.c.l.b16 %v1606
      %v2087 = vunpack.c.l.b16 %v1607
      %v2088 = vunpack.c.l.b16 %v1608
      %v2089 = vunpack.c.l.b16 %v1609
      %v2090 = vunpack.c.l.b16 %v1610
      %v2091 = vunpack.c.l.b16 %v1611
      %v2092 = vunpack.c.l.b16 %v1612
      %v2093 = vunpack.c.l.b16 %v1613
      %v2094 = vunpack.c.l.b16 %v1614
      %v2095 = vunpack.c.l.b16 %v1615
      %v2096 = vunpack.c.l.b16 %v1616
      %v2097 = vunpack.c.l.b16 %v1617
      %v2098 = vunpack.c.l.b16 %v1618
      %v2099 = vunpack.c.l.b16 %v1619
      %v2100 = vunpack.c.l.b16 %v1620
      %v2101 = vunpack.c.l.b16 %v1621
      %v2102 = vunpack.c.l.b16 %v1622
      %v2103 = vunpack.c.l.b16 %v1623
      %v2104 = vunpack.c.l.b16 %v1624
      %v2105 = vunpack.c.l.b16 %v1625
      %v2106 = vunpack.c.l.b16 %v1626
      %v2107 = vunpack.c.l.b16 %v1627
      %v2108 = vunpack.c.l.b16 %v1628
      %v2109 = vunpack.c.l.b16 %v1629
      %v2110 = vunpack.c.l.b16 %v1630
      %v2111 = vunpack.c.l.b16 %v1631
      %v2112 = vunpack.c.l.b16 %v1632
      %v2113 = vunpack.c.l.b16 %v1633
      %v2114 = vunpack.c.l.b16 %v1634
      %v2115 = vunpack.c.l.b16 %v1635
      %v2116 = vunpack.c.l.b16 %v1636
      %v2117 = vunpack.c.l.b16 %v1637
      %v2118 = vunpack.c.l.b16 %v1638
      %v2119 = vunpack.c.l.b16 %v1639
      %v2120 = vunpack.c.l.b16 %v1640
      %v2121 = vunpack.c.l.b16 %v1641
      %v2122 = vunpack.c.l.b16 %v1642
      %v2123 = vunpack.c.l.b16 %v1643
      %v2124 = vunpack.c.l.b16 %v1644
      %v2125 = vunpack.c.l.b16 %v1645
      %v2126 = vunpack.c.l.b16 %v1646
      %v2127 = vunpack.c.l.b16 %v1647
      %v2128 = vunpack.c.l.b16 %v1648
      %v2129 = vunpack.c.l.b16 %v1649
      %v2130 = vunpack.c.l.b16 %v1650
      %v2131 = vunpack.c.l.b16 %v1651
      %v2132 = vunpack.c.l.b16 %v1652
      %v2133 = vunpack.c.l.b16 %v1653
      %v2134 = vunpack.c.l.b16 %v1654
      %v2135 = vunpack.c.l.b16 %v1655
      %v2136 = vunpack.c.l.b16 %v1656
      %v2137 = vunpack.c.l.b16 %v1657
      %v2138 = vunpack.c.l.b16 %v1658
      %v2139 = vunpack.c.l.b16 %v1659
      %v2140 = vunpack.c.l.b16 %v1660
      %v2141 = vunpack.c.l.b16 %v1661
      %v2142 = vunpack.c.l.b16 %v1662
      %v2143 = vunpack.c.l.b16 %v1663
      %v2144 = vunpack.c.l.b16 %v1664
      %v2145 = vunpack.c.l.b16 %v1665
      %v2146 = vunpack.c.l.b16 %v1666
      %v2147 = vunpack.c.l.b16 %v1667
      %v2148 = vunpack.c.l.b16 %v1668
      %v2149 = vunpack.c.l.b16 %v1669
      %v2150 = vunpack.c.l.b16 %v1670
      %v2151 = vunpack.c.l.b16 %v1671
      %v2152 = vunpack.c.l.b16 %v1672
      %v2153 = vunpack.c.l.b16 %v1673
      %v2154 = vunpack.c.l.b16 %v1674
      %v2155 = vunpack.c.l.b16 %v1675
      %v2156 = vunpack.c.l.b16 %v1676
      %v2157 = vunpack.c.l.b16 %v1677
      %v2158 = vunpack.c.l.b16 %v1678
      %v2159 = vunpack.c.l.b16 %v1679
      %v2160 = vunpack.c.l.b16 %v1680
      %v2161 = vunpack.c.l.b16 %v1681
      %v2162 = vunpack.c.l.b16 %v1682
      %v2163 = vunpack.c.l.b16 %v1683
      %v2164 = vunpack.c.l.b16 %v1684
      %v2165 = vunpack.c.l.b16 %v1685
      %v2166 = vunpack.c.l.b16 %v1686
      %v2167 = vunpack.c.l.b16 %v1687
      %v2168 = vunpack.c.l.b16 %v1688
      %v2169 = vunpack.c.l.b16 %v1689
      %v2170 = vunpack.c.l.b16 %v1690
      %v2171 = vunpack.c.l.b16 %v1691
      %v2172 = vunpack.c.l.b16 %v1692
      %v2173 = vunpack.c.l.b16 %v1693
      %v2174 = vunpack.c.l.b16 %v1694
      %v2175 = vunpack.c.l.b16 %v1695
      %v2176 = vunpack.c.l.b16 %v1696
      %v2177 = vunpack.c.l.b16 %v1697
      %v2178 = vunpack.c.l.b16 %v1698
      %v2179 = vunpack.c.l.b16 %v1699
      %v2180 = vunpack.c.l.b16 %v1700
      %v2181 = vunpack.c.l.b16 %v1701
      %v2182 = vunpack.c.l.b16 %v1702
      %v2183 = vunpack.c.l.b16 %v1703
      %v2184 = vunpack.c.l.b16 %v1704
      %v2185 = vunpack.c.l.b16 %v1705
      %v2186 = vunpack.c.l.b16 %v1706
      %v2187 = vunpack.c.l.b16 %v1707
      %v2188 = vunpack.c.l.b16 %v1708
      %v2189 = vunpack.c.l.b16 %v1709
      %v2190 = vunpack.c.l.b16 %v1710
      %v2191 = vunpack.c.l.b16 %v1711
      %v2192 = vunpack.c.l.b16 %v1712
      %v2193 = vunpack.c.l.b16 %v1713
      %v2194 = vunpack.c.l.b16 %v1714
      %v2195 = vunpack.c.l.b16 %v1715
      %v2196 = vunpack.c.l.b16 %v1716
      %v2197 = vunpack.c.l.b16 %v1717
      %v2198 = vunpack.c.l.b16 %v1718
      %v2199 = vunpack.c.l.b16 %v1719
      %v2200 = vunpack.c.l.b16 %v1720
      %v2201 = vunpack.c.l.b16 %v1721
      %v2202 = vunpack.c.l.b16 %v1722
      %v2203 = vunpack.c.l.b16 %v1723
      %v2204 = vunpack.c.l.b16 %v1724
      %v2205 = vunpack.c.l.b16 %v1725
      %v2206 = vunpack.c.l.b16 %v1726
      %v2207 = vunpack.c.l.b16 %v1727
      %v2208 = vunpack.c.l.b16 %v1728
      %v2209 = vunpack.c.l.b16 %v1729
      %v2210 = vunpack.c.l.b16 %v1730
      %v2211 = vunpack.c.l.b16 %v1731
      %v2212 = vunpack.c.l.b16 %v1732
      %v2213 = vunpack.c.l.b16 %v1733
      %v2214 = vunpack.c.l.b16 %v1734
      %v2215 = vunpack.c.l.b16 %v1735
      %v2216 = vunpack.c.l.b16 %v1736
      %v2217 = vunpack.c.l.b16 %v1737
      %v2218 = vunpack.c.l.b16 %v1738
      %v2219 = vunpack.c.l.b16 %v1739
      %v2220 = vunpack.c.l.b16 %v1740
      %v2221 = vunpack.c.l.b16 %v1741
      %v2222 = vunpack.c.l.b16 %v1742
      %v2223 = vunpack.c.l.b16 %v1743
      %v2224 = vunpack.c.l.b16 %v1744
      %v2225 = vunpack.c.l.b16 %v1745
      %v2226 = vunpack.c.l.b16 %v1746
      %v2227 = vunpack.c.l.b16 %v1747
      %v2228 = vunpack.c.l.b16 %v1748
      %v2229 = vunpack.c.l.b16 %v1749
      %v2230 = vunpack.c.l.b16 %v1750
      %v2231 = vunpack.c.l.b16 %v1751
      %v2232 = vunpack.c.l.b16 %v1752
      %v2233 = vunpack.c.l.b16 %v1753
      %v2234 = vunpack.c.l.b16 %v1754
      %v2235 = vunpack.c.l.b16 %v1755
      %v2236 = vunpack.c.l.b16 %v1756
      %v2237 = vunpack.c.l.b16 %v1757
      %v2238 = vunpack.c.l.b16 %v1758
      %v2239 = vunpack.c.l.b16 %v1759
      %v2240 = vunpack.c.l.b16 %v1760
      %v2241 = vunpack.c.l.b16 %v1761
      %v2242 = vunpack.c.l.b16 %v1762
      %v2243 = vunpack.c.l.b16 %v1763
      %v2244 = vunpack.c.l.b16 %v1764
      %v2245 = vunpack.c.l.b16 %v1765
      %v2246 = vunpack.c.l.b16 %v1766
      %v2247 = vunpack.c.l.b16 %v1767
      %v2248 = vunpack.c.l.b16 %v1768
      %v2249 = vunpack.c.l.b16 %v1769
      %v2250 = vunpack.c.l.b16 %v1770
      %v2251 = vunpack.c.l.b16 %v1771
      %v2252 = vunpack.c.l.b16 %v1772
      %v2253 = vunpack.c.l.b16 %v1773
      %v2254 = vunpack.c.l.b16 %v1774
      %v2255 = vpack.c.b16 %v2064, %v2063
      %v2256 = vpack.c.b16 %v2066, %v2065
      %v2257 = vpack.c.b16 %v2068, %v2067
      %v2258 = vpack.c.b16 %v2070, %v2069
      %v2259 = vpack.c.b16 %v2072, %v2071
      %v2260 = vpack.c.b16 %v2074, %v2073
      %v2261 = vpack.c.b16 %v2076, %v2075
      %v2262 = vpack.c.b16 %v2078, %v2077
      %v2263 = vpack.c.b16 %v2080, %v2079
      %v2264 = vpack.c.b16 %v2082, %v2081
      %v2265 = vpack.c.b16 %v2084, %v2083
      %v2266 = vpack.c.b16 %v2086, %v2085
      %v2267 = vpack.c.b16 %v2088, %v2087
      %v2268 = vpack.c.b16 %v2090, %v2089
      %v2269 = vpack.c.b16 %v2092, %v2091
      %v2270 = vpack.c.b16 %v2094, %v2093
      %v2271 = vpack.c.b16 %v2096, %v2095
      %v2272 = vpack.c.b16 %v2098, %v2097
      %v2273 = vpack.c.b16 %v2100, %v2099
      %v2274 = vpack.c.b16 %v2102, %v2101
      %v2275 = vpack.c.b16 %v2104, %v2103
      %v2276 = vpack.c.b16 %v2106, %v2105
      %v2277 = vpack.c.b16 %v2108, %v2107
      %v2278 = vpack.c.b16 %v2110, %v2109
      %v2279 = vpack.c.b16 %v2112, %v2111
      %v2280 = vpack.c.b16 %v2114, %v2113
      %v2281 = vpack.c.b16 %v2116, %v2115
      %v2282 = vpack.c.b16 %v2118, %v2117
      %v2283 = vpack.c.b16 %v2120, %v2119
      %v2284 = vpack.c.b16 %v2122, %v2121
      %v2285 = vpack.c.b16 %v2124, %v2123
      %v2286 = vpack.c.b16 %v2126, %v2125
      %v2287 = vpack.c.b16 %v2128, %v2127
      %v2288 = vpack.c.b16 %v2130, %v2129
      %v2289 = vpack.c.b16 %v2132, %v2131
      %v2290 = vpack.c.b16 %v2134, %v2133
      %v2291 = vpack.c.b16 %v2136, %v2135
      %v2292 = vpack.c.b16 %v2138, %v2137
      %v2293 = vpack.c.b16 %v2140, %v2139
      %v2294 = vpack.c.b16 %v2142, %v2141
      %v2295 = vpack.c.b16 %v2144, %v2143
      %v2296 = vpack.c.b16 %v2146, %v2145
      %v2297 = vpack.c.b16 %v2148, %v2147
      %v2298 = vpack.c.b16 %v2150, %v2149
      %v2299 = vpack.c.b16 %v2152, %v2151
      %v2300 = vpack.c.b16 %v2154, %v2153
      %v2301 = vpack.c.b16 %v2156, %v2155
      %v2302 = vpack.c.b16 %v2158, %v2157
      %v2303 = vpack.c.b16 %v2160, %v2159
      %v2304 = vpack.c.b16 %v2162, %v2161
      %v2305 = vpack.c.b16 %v2164, %v2163
      %v2306 = vpack.c.b16 %v2166, %v2165
      %v2307 = vpack.c.b16 %v2168, %v2167
      %v2308 = vpack.c.b16 %v2170, %v2169
      %v2309 = vpack.c.b16 %v2172, %v2171
      %v2310 = vpack.c.b16 %v2174, %v2173
      %v2311 = vpack.c.b16 %v2176, %v2175
      %v2312 = vpack.c.b16 %v2178, %v2177
      %v2313 = vpack.c.b16 %v2180, %v2179
      %v2314 = vpack.c.b16 %v2182, %v2181
      %v2315 = vpack.c.b16 %v2184, %v2183
      %v2316 = vpack.c.b16 %v2186, %v2185
      %v2317 = vpack.c.b16 %v2188, %v2187
      %v2318 = vpack.c.b16 %v2190, %v2189
      %v2319 = vpack.c.b16 %v2192, %v2191
      %v2320 = vpack.c.b16 %v2194, %v2193
      %v2321 = vpack.c.b16 %v2196, %v2195
      %v2322 = vpack.c.b16 %v2198, %v2197
      %v2323 = vpack.c.b16 %v2200, %v2199
      %v2324 = vpack.c.b16 %v2202, %v2201
      %v2325 = vpack.c.b16 %v2204, %v2203
      %v2326 = vpack.c.b16 %v2206, %v2205
      %v2327 = vpack.c.b16 %v2208, %v2207
      %v2328 = vpack.c.b16 %v2210, %v2209
      %v2329 = vpack.c.b16 %v2212, %v2211
      %v2330 = vpack.c.b16 %v2214, %v2213
      %v2331 = vpack.c.b16 %v2216, %v2215
      %v2332 = vpack.c.b16 %v2218, %v2217
      %v2333 = vpack.c.b16 %v2220, %v2219
      %v2334 = vpack.c.b16 %v2222, %v2221
      %v2335 = vpack.c.b16 %v2224, %v2223
      %v2336 = vpack.c.b16 %v2226, %v2225
      %v2337 = vpack.c.b16 %v2228, %v2227
      %v2338 = vpack.c.b16 %v2230, %v2229
      %v2339 = vpack.c.b16 %v2232, %v2231
      %v2340 = vpack.c.b16 %v2234, %v2233
      %v2341 = vpack.c.b16 %v2236, %v2235
      %v2342 = vpack.c.b16 %v2238, %v2237
      %v2343 = vpack.c.b16 %v2240, %v2239
      %v2344 = vpack.c.b16 %v2242, %v2241
      %v2345 = vpack.c.b16 %v2244, %v2243
      %v2346 = vpack.c.b16 %v2246, %v2245
      %v2347 = vpack.c.b16 %v2248, %v2247
      %v2348 = vpack.c.b16 %v2250, %v2249
      %v2349 = vpack.c.b16 %v2252, %v2251
      %v2350 = vpack.c.b16 %v2254, %v2253
      %2447 = vmatpush.bf16.msra.mxu0 %v2262
      %2448 = vmatpush.bf16.msra.mxu0 %v2261
      %2449 = vmatpush.bf16.msra.mxu0 %v2260
      %2450 = vmatpush.bf16.msra.mxu0 %v2259
      %2451 = vmatpush.bf16.msra.mxu0 %v2258
      %2452 = vmatpush.bf16.msra.mxu0 %v2257
      %2453 = vmatpush.bf16.msra.mxu0 %v2256
      %2454 = vmatpush.bf16.msra.mxu0 %v2255
      %2455 = vmatmul.bf16.gmra.mxu0 %v1775
      %v2456 = vpop.f32.mrf.mxu0
      %v2457 = vadd.f32 0.0, %v2456
      %v2458 = vpop.f32.mrf.mxu0
      %v2459 = vadd.f32 0.0, %v2458
      %2460 = vmatmul.bf16.gmra.mxu0 %v1787
      %v2461 = vpop.f32.mrf.mxu0
      %v2462 = vadd.f32 0.0, %v2461
      %v2463 = vpop.f32.mrf.mxu0
      %v2464 = vadd.f32 0.0, %v2463
      %2465 = vmatmul.bf16.gmra.mxu0 %v1799
      %v2466 = vpop.f32.mrf.mxu0
      %v2467 = vadd.f32 0.0, %v2466
      %v2468 = vpop.f32.mrf.mxu0
      %v2469 = vadd.f32 0.0, %v2468
      %2470 = vmatmul.bf16.gmra.mxu0 %v1811
      %v2471 = vpop.f32.mrf.mxu0
      %v2472 = vadd.f32 0.0, %v2471
      %v2473 = vpop.f32.mrf.mxu0
      %v2474 = vadd.f32 0.0, %v2473
      %2475 = vdwg.mxu0
      %2476 = vmatpush.bf16.msra.mxu0 %v2270
      %2477 = vmatpush.bf16.msra.mxu0 %v2269
      %2478 = vmatpush.bf16.msra.mxu0 %v2268
      %2479 = vmatpush.bf16.msra.mxu0 %v2267
      %2480 = vmatpush.bf16.msra.mxu0 %v2266
      %2481 = vmatpush.bf16.msra.mxu0 %v2265
      %2482 = vmatpush.bf16.msra.mxu0 %v2264
      %2483 = vmatpush.bf16.msra.mxu0 %v2263
      %2484 = vmatmul.bf16.gmra.mxu0 %v1776
      %v2485 = vpop.f32.mrf.mxu0
      %v2486 = vadd.f32 %v2457, %v2485
      %v2487 = vpop.f32.mrf.mxu0
      %v2488 = vadd.f32 %v2459, %v2487
      %2489 = vmatmul.bf16.gmra.mxu0 %v1788
      %v2490 = vpop.f32.mrf.mxu0
      %v2491 = vadd.f32 %v2462, %v2490
      %v2492 = vpop.f32.mrf.mxu0
      %v2493 = vadd.f32 %v2464, %v2492
      %2494 = vmatmul.bf16.gmra.mxu0 %v1800
      %v2495 = vpop.f32.mrf.mxu0
      %v2496 = vadd.f32 %v2467, %v2495
      %v2497 = vpop.f32.mrf.mxu0
      %v2498 = vadd.f32 %v2469, %v2497
      %2499 = vmatmul.bf16.gmra.mxu0 %v1812
      %v2500 = vpop.f32.mrf.mxu0
      %v2501 = vadd.f32 %v2472, %v2500
      %v2502 = vpop.f32.mrf.mxu0
      %v2503 = vadd.f32 %v2474, %v2502
      %2504 = vdwg.mxu0
      %2505 = vmatpush.bf16.msra.mxu0 %v2278
      %2506 = vmatpush.bf16.msra.mxu0 %v2277
      %2507 = vmatpush.bf16.msra.mxu0 %v2276
      %2508 = vmatpush.bf16.msra.mxu0 %v2275
      %2509 = vmatpush.bf16.msra.mxu0 %v2274
      %2510 = vmatpush.bf16.msra.mxu0 %v2273
      %2511 = vmatpush.bf16.msra.mxu0 %v2272
      %2512 = vmatpush.bf16.msra.mxu0 %v2271
      %2513 = vmatmul.bf16.gmra.mxu0 %v1777
      %v2514 = vpop.f32.mrf.mxu0
      %v2515 = vadd.f32 %v2486, %v2514
      %v2516 = vpop.f32.mrf.mxu0
      %v2517 = vadd.f32 %v2488, %v2516
      %2518 = vmatmul.bf16.gmra.mxu0 %v1789
      %v2519 = vpop.f32.mrf.mxu0
      %v2520 = vadd.f32 %v2491, %v2519
      %v2521 = vpop.f32.mrf.mxu0
      %v2522 = vadd.f32 %v2493, %v2521
      %2523 = vmatmul.bf16.gmra.mxu0 %v1801
      %v2524 = vpop.f32.mrf.mxu0
      %v2525 = vadd.f32 %v2496, %v2524
      %v2526 = vpop.f32.mrf.mxu0
      %v2527 = vadd.f32 %v2498, %v2526
      %2528 = vmatmul.bf16.gmra.mxu0 %v1813
      %v2529 = vpop.f32.mrf.mxu0
      %v2530 = vadd.f32 %v2501, %v2529
      %v2531 = vpop.f32.mrf.mxu0
      %v2532 = vadd.f32 %v2503, %v2531
      %2533 = vdwg.mxu0
      %2534 = vmatpush.bf16.msra.mxu0 %v2286
      %2535 = vmatpush.bf16.msra.mxu0 %v2285
      %2536 = vmatpush.bf16.msra.mxu0 %v2284
      %2537 = vmatpush.bf16.msra.mxu0 %v2283
      %2538 = vmatpush.bf16.msra.mxu0 %v2282
      %2539 = vmatpush.bf16.msra.mxu0 %v2281
      %2540 = vmatpush.bf16.msra.mxu0 %v2280
      %2541 = vmatpush.bf16.msra.mxu0 %v2279
      %2542 = vmatmul.bf16.gmra.mxu0 %v1778
      %v2543 = vpop.f32.mrf.mxu0
      %v2544 = vadd.f32 %v2515, %v2543
      %v2545 = vpop.f32.mrf.mxu0
      %v2546 = vadd.f32 %v2517, %v2545
      %2547 = vmatmul.bf16.gmra.mxu0 %v1790
      %v2548 = vpop.f32.mrf.mxu0
      %v2549 = vadd.f32 %v2520, %v2548
      %v2550 = vpop.f32.mrf.mxu0
      %v2551 = vadd.f32 %v2522, %v2550
      %2552 = vmatmul.bf16.gmra.mxu0 %v1802
      %v2553 = vpop.f32.mrf.mxu0
      %v2554 = vadd.f32 %v2525, %v2553
      %v2555 = vpop.f32.mrf.mxu0
      %v2556 = vadd.f32 %v2527, %v2555
      %2557 = vmatmul.bf16.gmra.mxu0 %v1814
      %v2558 = vpop.f32.mrf.mxu0
      %v2559 = vadd.f32 %v2530, %v2558
      %v2560 = vpop.f32.mrf.mxu0
      %v2561 = vadd.f32 %v2532, %v2560
      %2562 = vdwg.mxu0
      %2563 = vmatpush.bf16.msra.mxu0 %v2294
      %2564 = vmatpush.bf16.msra.mxu0 %v2293
      %2565 = vmatpush.bf16.msra.mxu0 %v2292
      %2566 = vmatpush.bf16.msra.mxu0 %v2291
      %2567 = vmatpush.bf16.msra.mxu0 %v2290
      %2568 = vmatpush.bf16.msra.mxu0 %v2289
      %2569 = vmatpush.bf16.msra.mxu0 %v2288
      %2570 = vmatpush.bf16.msra.mxu0 %v2287
      %2571 = vmatmul.bf16.gmra.mxu0 %v1779
      %v2572 = vpop.f32.mrf.mxu0
      %v2573 = vadd.f32 %v2544, %v2572
      %v2574 = vpop.f32.mrf.mxu0
      %v2575 = vadd.f32 %v2546, %v2574
      %2576 = vmatmul.bf16.gmra.mxu0 %v1791
      %v2577 = vpop.f32.mrf.mxu0
      %v2578 = vadd.f32 %v2549, %v2577
      %v2579 = vpop.f32.mrf.mxu0
      %v2580 = vadd.f32 %v2551, %v2579
      %2581 = vmatmul.bf16.gmra.mxu0 %v1803
      %v2582 = vpop.f32.mrf.mxu0
      %v2583 = vadd.f32 %v2554, %v2582
      %v2584 = vpop.f32.mrf.mxu0
      %v2585 = vadd.f32 %v2556, %v2584
      %2586 = vmatmul.bf16.gmra.mxu0 %v1815
      %v2587 = vpop.f32.mrf.mxu0
      %v2588 = vadd.f32 %v2559, %v2587
      %v2589 = vpop.f32.mrf.mxu0
      %v2590 = vadd.f32 %v2561, %v2589
      %2591 = vdwg.mxu0
      %2592 = vmatpush.bf16.msra.mxu0 %v2302
      %2593 = vmatpush.bf16.msra.mxu0 %v2301
      %2594 = vmatpush.bf16.msra.mxu0 %v2300
      %2595 = vmatpush.bf16.msra.mxu0 %v2299
      %2596 = vmatpush.bf16.msra.mxu0 %v2298
      %2597 = vmatpush.bf16.msra.mxu0 %v2297
      %2598 = vmatpush.bf16.msra.mxu0 %v2296
      %2599 = vmatpush.bf16.msra.mxu0 %v2295
      %2600 = vmatmul.bf16.gmra.mxu0 %v1780
      %v2601 = vpop.f32.mrf.mxu0
      %v2602 = vadd.f32 %v2573, %v2601
      %v2603 = vpop.f32.mrf.mxu0
      %v2604 = vadd.f32 %v2575, %v2603
      %2605 = vmatmul.bf16.gmra.mxu0 %v1792
      %v2606 = vpop.f32.mrf.mxu0
      %v2607 = vadd.f32 %v2578, %v2606
      %v2608 = vpop.f32.mrf.mxu0
      %v2609 = vadd.f32 %v2580, %v2608
      %2610 = vmatmul.bf16.gmra.mxu0 %v1804
      %v2611 = vpop.f32.mrf.mxu0
      %v2612 = vadd.f32 %v2583, %v2611
      %v2613 = vpop.f32.mrf.mxu0
      %v2614 = vadd.f32 %v2585, %v2613
      %2615 = vmatmul.bf16.gmra.mxu0 %v1816
      %v2616 = vpop.f32.mrf.mxu0
      %v2617 = vadd.f32 %v2588, %v2616
      %v2618 = vpop.f32.mrf.mxu0
      %v2619 = vadd.f32 %v2590, %v2618
      %2620 = vdwg.mxu0
      %2621 = vmatpush.bf16.msra.mxu0 %v2310
      %2622 = vmatpush.bf16.msra.mxu0 %v2309
      %2623 = vmatpush.bf16.msra.mxu0 %v2308
      %2624 = vmatpush.bf16.msra.mxu0 %v2307
      %2625 = vmatpush.bf16.msra.mxu0 %v2306
      %2626 = vmatpush.bf16.msra.mxu0 %v2305
      %2627 = vmatpush.bf16.msra.mxu0 %v2304
      %2628 = vmatpush.bf16.msra.mxu0 %v2303
      %2629 = vmatmul.bf16.gmra.mxu0 %v1781
      %v2630 = vpop.f32.mrf.mxu0
      %v2631 = vadd.f32 %v2602, %v2630
      %v2632 = vpop.f32.mrf.mxu0
      %v2633 = vadd.f32 %v2604, %v2632
      %2634 = vmatmul.bf16.gmra.mxu0 %v1793
      %v2635 = vpop.f32.mrf.mxu0
      %v2636 = vadd.f32 %v2607, %v2635
      %v2637 = vpop.f32.mrf.mxu0
      %v2638 = vadd.f32 %v2609, %v2637
      %2639 = vmatmul.bf16.gmra.mxu0 %v1805
      %v2640 = vpop.f32.mrf.mxu0
      %v2641 = vadd.f32 %v2612, %v2640
      %v2642 = vpop.f32.mrf.mxu0
      %v2643 = vadd.f32 %v2614, %v2642
      %2644 = vmatmul.bf16.gmra.mxu0 %v1817
      %v2645 = vpop.f32.mrf.mxu0
      %v2646 = vadd.f32 %v2617, %v2645
      %v2647 = vpop.f32.mrf.mxu0
      %v2648 = vadd.f32 %v2619, %v2647
      %2649 = vdwg.mxu0
      %2650 = vmatpush.bf16.msra.mxu0 %v2318
      %2651 = vmatpush.bf16.msra.mxu0 %v2317
      %2652 = vmatpush.bf16.msra.mxu0 %v2316
      %2653 = vmatpush.bf16.msra.mxu0 %v2315
      %2654 = vmatpush.bf16.msra.mxu0 %v2314
      %2655 = vmatpush.bf16.msra.mxu0 %v2313
      %2656 = vmatpush.bf16.msra.mxu0 %v2312
      %2657 = vmatpush.bf16.msra.mxu0 %v2311
      %2658 = vmatmul.bf16.gmra.mxu0 %v1782
      %v2659 = vpop.f32.mrf.mxu0
      %v2660 = vadd.f32 %v2631, %v2659
      %v2661 = vpop.f32.mrf.mxu0
      %v2662 = vadd.f32 %v2633, %v2661
      %2663 = vmatmul.bf16.gmra.mxu0 %v1794
      %v2664 = vpop.f32.mrf.mxu0
      %v2665 = vadd.f32 %v2636, %v2664
      %v2666 = vpop.f32.mrf.mxu0
      %v2667 = vadd.f32 %v2638, %v2666
      %2668 = vmatmul.bf16.gmra.mxu0 %v1806
      %v2669 = vpop.f32.mrf.mxu0
      %v2670 = vadd.f32 %v2641, %v2669
      %v2671 = vpop.f32.mrf.mxu0
      %v2672 = vadd.f32 %v2643, %v2671
      %2673 = vmatmul.bf16.gmra.mxu0 %v1818
      %v2674 = vpop.f32.mrf.mxu0
      %v2675 = vadd.f32 %v2646, %v2674
      %v2676 = vpop.f32.mrf.mxu0
      %v2677 = vadd.f32 %v2648, %v2676
      %2678 = vdwg.mxu0
      %2679 = vmatpush.bf16.msra.mxu0 %v2326
      %2680 = vmatpush.bf16.msra.mxu0 %v2325
      %2681 = vmatpush.bf16.msra.mxu0 %v2324
      %2682 = vmatpush.bf16.msra.mxu0 %v2323
      %2683 = vmatpush.bf16.msra.mxu0 %v2322
      %2684 = vmatpush.bf16.msra.mxu0 %v2321
      %2685 = vmatpush.bf16.msra.mxu0 %v2320
      %2686 = vmatpush.bf16.msra.mxu0 %v2319
      %2687 = vmatmul.bf16.gmra.mxu0 %v1783
      %v2688 = vpop.f32.mrf.mxu0
      %v2689 = vadd.f32 %v2660, %v2688
      %v2690 = vpop.f32.mrf.mxu0
      %v2691 = vadd.f32 %v2662, %v2690
      %2692 = vmatmul.bf16.gmra.mxu0 %v1795
      %v2693 = vpop.f32.mrf.mxu0
      %v2694 = vadd.f32 %v2665, %v2693
      %v2695 = vpop.f32.mrf.mxu0
      %v2696 = vadd.f32 %v2667, %v2695
      %2697 = vmatmul.bf16.gmra.mxu0 %v1807
      %v2698 = vpop.f32.mrf.mxu0
      %v2699 = vadd.f32 %v2670, %v2698
      %v2700 = vpop.f32.mrf.mxu0
      %v2701 = vadd.f32 %v2672, %v2700
      %2702 = vmatmul.bf16.gmra.mxu0 %v1819
      %v2703 = vpop.f32.mrf.mxu0
      %v2704 = vadd.f32 %v2675, %v2703
      %v2705 = vpop.f32.mrf.mxu0
      %v2706 = vadd.f32 %v2677, %v2705
      %2707 = vdwg.mxu0
      %2708 = vmatpush.bf16.msra.mxu0 %v2334
      %2709 = vmatpush.bf16.msra.mxu0 %v2333
      %2710 = vmatpush.bf16.msra.mxu0 %v2332
      %2711 = vmatpush.bf16.msra.mxu0 %v2331
      %2712 = vmatpush.bf16.msra.mxu0 %v2330
      %2713 = vmatpush.bf16.msra.mxu0 %v2329
      %2714 = vmatpush.bf16.msra.mxu0 %v2328
      %2715 = vmatpush.bf16.msra.mxu0 %v2327
      %2716 = vmatmul.bf16.gmra.mxu0 %v1784
      %v2717 = vpop.f32.mrf.mxu0
      %v2718 = vadd.f32 %v2689, %v2717
      %v2719 = vpop.f32.mrf.mxu0
      %v2720 = vadd.f32 %v2691, %v2719
      %2721 = vmatmul.bf16.gmra.mxu0 %v1796
      %v2722 = vpop.f32.mrf.mxu0
      %v2723 = vadd.f32 %v2694, %v2722
      %v2724 = vpop.f32.mrf.mxu0
      %v2725 = vadd.f32 %v2696, %v2724
      %2726 = vmatmul.bf16.gmra.mxu0 %v1808
      %v2727 = vpop.f32.mrf.mxu0
      %v2728 = vadd.f32 %v2699, %v2727
      %v2729 = vpop.f32.mrf.mxu0
      %v2730 = vadd.f32 %v2701, %v2729
      %2731 = vmatmul.bf16.gmra.mxu0 %v1820
      %v2732 = vpop.f32.mrf.mxu0
      %v2733 = vadd.f32 %v2704, %v2732
      %v2734 = vpop.f32.mrf.mxu0
      %v2735 = vadd.f32 %v2706, %v2734
      %2736 = vdwg.mxu0
      %2737 = vmatpush.bf16.msra.mxu0 %v2342
      %2738 = vmatpush.bf16.msra.mxu0 %v2341
      %2739 = vmatpush.bf16.msra.mxu0 %v2340
      %2740 = vmatpush.bf16.msra.mxu0 %v2339
      %2741 = vmatpush.bf16.msra.mxu0 %v2338
      %2742 = vmatpush.bf16.msra.mxu0 %v2337
      %2743 = vmatpush.bf16.msra.mxu0 %v2336
      %2744 = vmatpush.bf16.msra.mxu0 %v2335
      %2745 = vmatmul.bf16.gmra.mxu0 %v1785
      %v2746 = vpop.f32.mrf.mxu0
      %v2747 = vadd.f32 %v2718, %v2746
      %v2748 = vpop.f32.mrf.mxu0
      %v2749 = vadd.f32 %v2720, %v2748
      %2750 = vmatmul.bf16.gmra.mxu0 %v1797
      %v2751 = vpop.f32.mrf.mxu0
      %v2752 = vadd.f32 %v2723, %v2751
      %v2753 = vpop.f32.mrf.mxu0
      %v2754 = vadd.f32 %v2725, %v2753
      %2755 = vmatmul.bf16.gmra.mxu0 %v1809
      %v2756 = vpop.f32.mrf.mxu0
      %v2757 = vadd.f32 %v2728, %v2756
      %v2758 = vpop.f32.mrf.mxu0
      %v2759 = vadd.f32 %v2730, %v2758
      %2760 = vmatmul.bf16.gmra.mxu0 %v1821
      %v2761 = vpop.f32.mrf.mxu0
      %v2762 = vadd.f32 %v2733, %v2761
      %v2763 = vpop.f32.mrf.mxu0
      %v2764 = vadd.f32 %v2735, %v2763
      %2765 = vdwg.mxu0
      %2766 = vmatpush.bf16.msra.mxu0 %v2350
      %2767 = vmatpush.bf16.msra.mxu0 %v2349
      %2768 = vmatpush.bf16.msra.mxu0 %v2348
      %2769 = vmatpush.bf16.msra.mxu0 %v2347
      %2770 = vmatpush.bf16.msra.mxu0 %v2346
      %2771 = vmatpush.bf16.msra.mxu0 %v2345
      %2772 = vmatpush.bf16.msra.mxu0 %v2344
      %2773 = vmatpush.bf16.msra.mxu0 %v2343
      %2774 = vmatmul.bf16.gmra.mxu0 %v1786
      %v2775 = vpop.f32.mrf.mxu0
      %v2776 = vadd.f32 %v2747, %v2775
      %v2777 = vpop.f32.mrf.mxu0
      %v2778 = vadd.f32 %v2749, %v2777
      %2779 = vmatmul.bf16.gmra.mxu0 %v1798
      %v2780 = vpop.f32.mrf.mxu0
      %v2781 = vadd.f32 %v2752, %v2780
      %v2782 = vpop.f32.mrf.mxu0
      %v2783 = vadd.f32 %v2754, %v2782
      %2784 = vmatmul.bf16.gmra.mxu0 %v1810
      %v2785 = vpop.f32.mrf.mxu0
      %v2786 = vadd.f32 %v2757, %v2785
      %v2787 = vpop.f32.mrf.mxu0
      %v2788 = vadd.f32 %v2759, %v2787
      %2789 = vmatmul.bf16.gmra.mxu0 %v1822
      %v2790 = vpop.f32.mrf.mxu0
      %v2791 = vadd.f32 %v2762, %v2790
      %v2792 = vpop.f32.mrf.mxu0
      %v2793 = vadd.f32 %v2764, %v2792
      %2794 = vdwg.mxu0
      %v2795 = vpack.c.b16 %v906, %v902
      %v2796 = vpack.c.b16 %v907, %v903
      %v2797 = vpack.c.b16 %v908, %v904
      %v2798 = vpack.c.b16 %v909, %v905
      %v2799 = vpack.c.b16 %v1278, %v1270
      %v2800 = vpack.c.b16 %v1279, %v1271
      %v2801 = vpack.c.b16 %v1280, %v1272
      %v2802 = vpack.c.b16 %v1281, %v1273
      %v2803 = vpack.c.b16 %v1282, %v1274
      %v2804 = vpack.c.b16 %v1283, %v1275
      %v2805 = vpack.c.b16 %v1284, %v1276
      %v2806 = vpack.c.b16 %v1285, %v1277
      %v2807 = vpack.c.b16 %v914, %v910
      %v2808 = vpack.c.b16 %v915, %v911
      %v2809 = vpack.c.b16 %v916, %v912
      %v2810 = vpack.c.b16 %v917, %v913
      %v2811 = vpack.c.b16 %v1294, %v1286
      %v2812 = vpack.c.b16 %v1295, %v1287
      %v2813 = vpack.c.b16 %v1296, %v1288
      %v2814 = vpack.c.b16 %v1297, %v1289
      %v2815 = vpack.c.b16 %v1298, %v1290
      %v2816 = vpack.c.b16 %v1299, %v1291
      %v2817 = vpack.c.b16 %v1300, %v1292
      %v2818 = vpack.c.b16 %v1301, %v1293
      %v2819 = vpack.c.b16 %v922, %v918
      %v2820 = vpack.c.b16 %v923, %v919
      %v2821 = vpack.c.b16 %v924, %v920
      %v2822 = vpack.c.b16 %v925, %v921
      %v2823 = vpack.c.b16 %v1310, %v1302
      %v2824 = vpack.c.b16 %v1311, %v1303
      %v2825 = vpack.c.b16 %v1312, %v1304
      %v2826 = vpack.c.b16 %v1313, %v1305
      %v2827 = vpack.c.b16 %v1314, %v1306
      %v2828 = vpack.c.b16 %v1315, %v1307
      %v2829 = vpack.c.b16 %v1316, %v1308
      %v2830 = vpack.c.b16 %v1317, %v1309
      %v2831 = vpack.c.b16 %v930, %v926
      %v2832 = vpack.c.b16 %v931, %v927
      %v2833 = vpack.c.b16 %v932, %v928
      %v2834 = vpack.c.b16 %v933, %v929
      %v2835 = vpack.c.b16 %v1326, %v1318
      %v2836 = vpack.c.b16 %v1327, %v1319
      %v2837 = vpack.c.b16 %v1328, %v1320
      %v2838 = vpack.c.b16 %v1329, %v1321
      %v2839 = vpack.c.b16 %v1330, %v1322
      %v2840 = vpack.c.b16 %v1331, %v1323
      %v2841 = vpack.c.b16 %v1332, %v1324
      %v2842 = vpack.c.b16 %v1333, %v1325
      %v3083 = vunpack.c.l.b16 %v1334
      %v3084 = vunpack.c.l.b16 %v1335
      %v3085 = vunpack.c.l.b16 %v1336
      %v3086 = vunpack.c.l.b16 %v1337
      %v3087 = vunpack.c.l.b16 %v1338
      %v3088 = vunpack.c.l.b16 %v1339
      %v3089 = vunpack.c.l.b16 %v1340
      %v3090 = vunpack.c.l.b16 %v1341
      %v3091 = vunpack.c.l.b16 %v1342
      %v3092 = vunpack.c.l.b16 %v1343
      %v3093 = vunpack.c.l.b16 %v1344
      %v3094 = vunpack.c.l.b16 %v1345
      %v3095 = vunpack.c.l.b16 %v1346
      %v3096 = vunpack.c.l.b16 %v1347
      %v3097 = vunpack.c.l.b16 %v1348
      %v3098 = vunpack.c.l.b16 %v1349
      %v3099 = vunpack.c.l.b16 %v1350
      %v3100 = vunpack.c.l.b16 %v1351
      %v3101 = vunpack.c.l.b16 %v1352
      %v3102 = vunpack.c.l.b16 %v1353
      %v3103 = vunpack.c.l.b16 %v1354
      %v3104 = vunpack.c.l.b16 %v1355
      %v3105 = vunpack.c.l.b16 %v1356
      %v3106 = vunpack.c.l.b16 %v1357
      %v3107 = vunpack.c.l.b16 %v1358
      %v3108 = vunpack.c.l.b16 %v1359
      %v3109 = vunpack.c.l.b16 %v1360
      %v3110 = vunpack.c.l.b16 %v1361
      %v3111 = vunpack.c.l.b16 %v1362
      %v3112 = vunpack.c.l.b16 %v1363
      %v3113 = vunpack.c.l.b16 %v1364
      %v3114 = vunpack.c.l.b16 %v1365
      %v3115 = vunpack.c.l.b16 %v1366
      %v3116 = vunpack.c.l.b16 %v1367
      %v3117 = vunpack.c.l.b16 %v1368
      %v3118 = vunpack.c.l.b16 %v1369
      %v3119 = vunpack.c.l.b16 %v1370
      %v3120 = vunpack.c.l.b16 %v1371
      %v3121 = vunpack.c.l.b16 %v1372
      %v3122 = vunpack.c.l.b16 %v1373
      %v3123 = vunpack.c.l.b16 %v1374
      %v3124 = vunpack.c.l.b16 %v1375
      %v3125 = vunpack.c.l.b16 %v1376
      %v3126 = vunpack.c.l.b16 %v1377
      %v3127 = vunpack.c.l.b16 %v1378
      %v3128 = vunpack.c.l.b16 %v1379
      %v3129 = vunpack.c.l.b16 %v1380
      %v3130 = vunpack.c.l.b16 %v1381
      %v3131 = vunpack.c.l.b16 %v1382
      %v3132 = vunpack.c.l.b16 %v1383
      %v3133 = vunpack.c.l.b16 %v1384
      %v3134 = vunpack.c.l.b16 %v1385
      %v3135 = vunpack.c.l.b16 %v1386
      %v3136 = vunpack.c.l.b16 %v1387
      %v3137 = vunpack.c.l.b16 %v1388
      %v3138 = vunpack.c.l.b16 %v1389
      %v3139 = vunpack.c.l.b16 %v1390
      %v3140 = vunpack.c.l.b16 %v1391
      %v3141 = vunpack.c.l.b16 %v1392
      %v3142 = vunpack.c.l.b16 %v1393
      %v3143 = vunpack.c.l.b16 %v1394
      %v3144 = vunpack.c.l.b16 %v1395
      %v3145 = vunpack.c.l.b16 %v1396
      %v3146 = vunpack.c.l.b16 %v1397
      %v3147 = vunpack.c.l.b16 %v1398
      %v3148 = vunpack.c.l.b16 %v1399
      %v3149 = vunpack.c.l.b16 %v1400
      %v3150 = vunpack.c.l.b16 %v1401
      %v3151 = vunpack.c.l.b16 %v1402
      %v3152 = vunpack.c.l.b16 %v1403
      %v3153 = vunpack.c.l.b16 %v1404
      %v3154 = vunpack.c.l.b16 %v1405
      %v3155 = vunpack.c.l.b16 %v1406
      %v3156 = vunpack.c.l.b16 %v1407
      %v3157 = vunpack.c.l.b16 %v1408
      %v3158 = vunpack.c.l.b16 %v1409
      %v3159 = vunpack.c.l.b16 %v1410
      %v3160 = vunpack.c.l.b16 %v1411
      %v3161 = vunpack.c.l.b16 %v1412
      %v3162 = vunpack.c.l.b16 %v1413
      %v3163 = vunpack.c.l.b16 %v1414
      %v3164 = vunpack.c.l.b16 %v1415
      %v3165 = vunpack.c.l.b16 %v1416
      %v3166 = vunpack.c.l.b16 %v1417
      %v3167 = vunpack.c.l.b16 %v1418
      %v3168 = vunpack.c.l.b16 %v1419
      %v3169 = vunpack.c.l.b16 %v1420
      %v3170 = vunpack.c.l.b16 %v1421
      %v3171 = vunpack.c.l.b16 %v1422
      %v3172 = vunpack.c.l.b16 %v1423
      %v3173 = vunpack.c.l.b16 %v1424
      %v3174 = vunpack.c.l.b16 %v1425
      %v3175 = vunpack.c.l.b16 %v1426
      %v3176 = vunpack.c.l.b16 %v1427
      %v3177 = vunpack.c.l.b16 %v1428
      %v3178 = vunpack.c.l.b16 %v1429
      %v3179 = vunpack.c.l.b16 %v1430
      %v3180 = vunpack.c.l.b16 %v1431
      %v3181 = vunpack.c.l.b16 %v1432
      %v3182 = vunpack.c.l.b16 %v1433
      %v3183 = vunpack.c.l.b16 %v1434
      %v3184 = vunpack.c.l.b16 %v1435
      %v3185 = vunpack.c.l.b16 %v1436
      %v3186 = vunpack.c.l.b16 %v1437
      %v3187 = vunpack.c.l.b16 %v1438
      %v3188 = vunpack.c.l.b16 %v1439
      %v3189 = vunpack.c.l.b16 %v1440
      %v3190 = vunpack.c.l.b16 %v1441
      %v3191 = vunpack.c.l.b16 %v1442
      %v3192 = vunpack.c.l.b16 %v1443
      %v3193 = vunpack.c.l.b16 %v1444
      %v3194 = vunpack.c.l.b16 %v1445
      %v3195 = vunpack.c.l.b16 %v1446
      %v3196 = vunpack.c.l.b16 %v1447
      %v3197 = vunpack.c.l.b16 %v1448
      %v3198 = vunpack.c.l.b16 %v1449
      %v3199 = vunpack.c.l.b16 %v1450
      %v3200 = vunpack.c.l.b16 %v1451
      %v3201 = vunpack.c.l.b16 %v1452
      %v3202 = vunpack.c.l.b16 %v1453
      %v3203 = vunpack.c.l.b16 %v1454
      %v3204 = vunpack.c.l.b16 %v1455
      %v3205 = vunpack.c.l.b16 %v1456
      %v3206 = vunpack.c.l.b16 %v1457
      %v3207 = vunpack.c.l.b16 %v1458
      %v3208 = vunpack.c.l.b16 %v1459
      %v3209 = vunpack.c.l.b16 %v1460
      %v3210 = vunpack.c.l.b16 %v1461
      %v3211 = vunpack.c.l.b16 %v1462
      %v3212 = vunpack.c.l.b16 %v1463
      %v3213 = vunpack.c.l.b16 %v1464
      %v3214 = vunpack.c.l.b16 %v1465
      %v3215 = vunpack.c.l.b16 %v1466
      %v3216 = vunpack.c.l.b16 %v1467
      %v3217 = vunpack.c.l.b16 %v1468
      %v3218 = vunpack.c.l.b16 %v1469
      %v3219 = vunpack.c.l.b16 %v1470
      %v3220 = vunpack.c.l.b16 %v1471
      %v3221 = vunpack.c.l.b16 %v1472
      %v3222 = vunpack.c.l.b16 %v1473
      %v3223 = vunpack.c.l.b16 %v1474
      %v3224 = vunpack.c.l.b16 %v1475
      %v3225 = vunpack.c.l.b16 %v1476
      %v3226 = vunpack.c.l.b16 %v1477
      %v3227 = vunpack.c.l.b16 %v1478
      %v3228 = vunpack.c.l.b16 %v1479
      %v3229 = vunpack.c.l.b16 %v1480
      %v3230 = vunpack.c.l.b16 %v1481
      %v3231 = vunpack.c.l.b16 %v1482
      %v3232 = vunpack.c.l.b16 %v1483
      %v3233 = vunpack.c.l.b16 %v1484
      %v3234 = vunpack.c.l.b16 %v1485
      %v3235 = vunpack.c.l.b16 %v1486
      %v3236 = vunpack.c.l.b16 %v1487
      %v3237 = vunpack.c.l.b16 %v1488
      %v3238 = vunpack.c.l.b16 %v1489
      %v3239 = vunpack.c.l.b16 %v1490
      %v3240 = vunpack.c.l.b16 %v1491
      %v3241 = vunpack.c.l.b16 %v1492
      %v3242 = vunpack.c.l.b16 %v1493
      %v3243 = vunpack.c.l.b16 %v1494
      %v3244 = vunpack.c.l.b16 %v1495
      %v3245 = vunpack.c.l.b16 %v1496
      %v3246 = vunpack.c.l.b16 %v1497
      %v3247 = vunpack.c.l.b16 %v1498
      %v3248 = vunpack.c.l.b16 %v1499
      %v3249 = vunpack.c.l.b16 %v1500
      %v3250 = vunpack.c.l.b16 %v1501
      %v3251 = vunpack.c.l.b16 %v1502
      %v3252 = vunpack.c.l.b16 %v1503
      %v3253 = vunpack.c.l.b16 %v1504
      %v3254 = vunpack.c.l.b16 %v1505
      %v3255 = vunpack.c.l.b16 %v1506
      %v3256 = vunpack.c.l.b16 %v1507
      %v3257 = vunpack.c.l.b16 %v1508
      %v3258 = vunpack.c.l.b16 %v1509
      %v3259 = vunpack.c.l.b16 %v1510
      %v3260 = vunpack.c.l.b16 %v1511
      %v3261 = vunpack.c.l.b16 %v1512
      %v3262 = vunpack.c.l.b16 %v1513
      %v3263 = vunpack.c.l.b16 %v1514
      %v3264 = vunpack.c.l.b16 %v1515
      %v3265 = vunpack.c.l.b16 %v1516
      %v3266 = vunpack.c.l.b16 %v1517
      %v3267 = vunpack.c.l.b16 %v1518
      %v3268 = vunpack.c.l.b16 %v1519
      %v3269 = vunpack.c.l.b16 %v1520
      %v3270 = vunpack.c.l.b16 %v1521
      %v3271 = vunpack.c.l.b16 %v1522
      %v3272 = vunpack.c.l.b16 %v1523
      %v3273 = vunpack.c.l.b16 %v1524
      %v3274 = vunpack.c.l.b16 %v1525
      %v3275 = vpack.c.b16 %v3084, %v3083
      %v3276 = vpack.c.b16 %v3086, %v3085
      %v3277 = vpack.c.b16 %v3088, %v3087
      %v3278 = vpack.c.b16 %v3090, %v3089
      %v3279 = vpack.c.b16 %v3092, %v3091
      %v3280 = vpack.c.b16 %v3094, %v3093
      %v3281 = vpack.c.b16 %v3096, %v3095
      %v3282 = vpack.c.b16 %v3098, %v3097
      %v3283 = vpack.c.b16 %v3100, %v3099
      %v3284 = vpack.c.b16 %v3102, %v3101
      %v3285 = vpack.c.b16 %v3104, %v3103
      %v3286 = vpack.c.b16 %v3106, %v3105
      %v3287 = vpack.c.b16 %v3108, %v3107
      %v3288 = vpack.c.b16 %v3110, %v3109
      %v3289 = vpack.c.b16 %v3112, %v3111
      %v3290 = vpack.c.b16 %v3114, %v3113
      %v3291 = vpack.c.b16 %v3116, %v3115
      %v3292 = vpack.c.b16 %v3118, %v3117
      %v3293 = vpack.c.b16 %v3120, %v3119
      %v3294 = vpack.c.b16 %v3122, %v3121
      %v3295 = vpack.c.b16 %v3124, %v3123
      %v3296 = vpack.c.b16 %v3126, %v3125
      %v3297 = vpack.c.b16 %v3128, %v3127
      %v3298 = vpack.c.b16 %v3130, %v3129
      %v3299 = vpack.c.b16 %v3132, %v3131
      %v3300 = vpack.c.b16 %v3134, %v3133
      %v3301 = vpack.c.b16 %v3136, %v3135
      %v3302 = vpack.c.b16 %v3138, %v3137
      %v3303 = vpack.c.b16 %v3140, %v3139
      %v3304 = vpack.c.b16 %v3142, %v3141
      %v3305 = vpack.c.b16 %v3144, %v3143
      %v3306 = vpack.c.b16 %v3146, %v3145
      %v3307 = vpack.c.b16 %v3148, %v3147
      %v3308 = vpack.c.b16 %v3150, %v3149
      %v3309 = vpack.c.b16 %v3152, %v3151
      %v3310 = vpack.c.b16 %v3154, %v3153
      %v3311 = vpack.c.b16 %v3156, %v3155
      %v3312 = vpack.c.b16 %v3158, %v3157
      %v3313 = vpack.c.b16 %v3160, %v3159
      %v3314 = vpack.c.b16 %v3162, %v3161
      %v3315 = vpack.c.b16 %v3164, %v3163
      %v3316 = vpack.c.b16 %v3166, %v3165
      %v3317 = vpack.c.b16 %v3168, %v3167
      %v3318 = vpack.c.b16 %v3170, %v3169
      %v3319 = vpack.c.b16 %v3172, %v3171
      %v3320 = vpack.c.b16 %v3174, %v3173
      %v3321 = vpack.c.b16 %v3176, %v3175
      %v3322 = vpack.c.b16 %v3178, %v3177
      %v3323 = vpack.c.b16 %v3180, %v3179
      %v3324 = vpack.c.b16 %v3182, %v3181
      %v3325 = vpack.c.b16 %v3184, %v3183
      %v3326 = vpack.c.b16 %v3186, %v3185
      %v3327 = vpack.c.b16 %v3188, %v3187
      %v3328 = vpack.c.b16 %v3190, %v3189
      %v3329 = vpack.c.b16 %v3192, %v3191
      %v3330 = vpack.c.b16 %v3194, %v3193
      %v3331 = vpack.c.b16 %v3196, %v3195
      %v3332 = vpack.c.b16 %v3198, %v3197
      %v3333 = vpack.c.b16 %v3200, %v3199
      %v3334 = vpack.c.b16 %v3202, %v3201
      %v3335 = vpack.c.b16 %v3204, %v3203
      %v3336 = vpack.c.b16 %v3206, %v3205
      %v3337 = vpack.c.b16 %v3208, %v3207
      %v3338 = vpack.c.b16 %v3210, %v3209
      %v3339 = vpack.c.b16 %v3212, %v3211
      %v3340 = vpack.c.b16 %v3214, %v3213
      %v3341 = vpack.c.b16 %v3216, %v3215
      %v3342 = vpack.c.b16 %v3218, %v3217
      %v3343 = vpack.c.b16 %v3220, %v3219
      %v3344 = vpack.c.b16 %v3222, %v3221
      %v3345 = vpack.c.b16 %v3224, %v3223
      %v3346 = vpack.c.b16 %v3226, %v3225
      %v3347 = vpack.c.b16 %v3228, %v3227
      %v3348 = vpack.c.b16 %v3230, %v3229
      %v3349 = vpack.c.b16 %v3232, %v3231
      %v3350 = vpack.c.b16 %v3234, %v3233
      %v3351 = vpack.c.b16 %v3236, %v3235
      %v3352 = vpack.c.b16 %v3238, %v3237
      %v3353 = vpack.c.b16 %v3240, %v3239
      %v3354 = vpack.c.b16 %v3242, %v3241
      %v3355 = vpack.c.b16 %v3244, %v3243
      %v3356 = vpack.c.b16 %v3246, %v3245
      %v3357 = vpack.c.b16 %v3248, %v3247
      %v3358 = vpack.c.b16 %v3250, %v3249
      %v3359 = vpack.c.b16 %v3252, %v3251
      %v3360 = vpack.c.b16 %v3254, %v3253
      %v3361 = vpack.c.b16 %v3256, %v3255
      %v3362 = vpack.c.b16 %v3258, %v3257
      %v3363 = vpack.c.b16 %v3260, %v3259
      %v3364 = vpack.c.b16 %v3262, %v3261
      %v3365 = vpack.c.b16 %v3264, %v3263
      %v3366 = vpack.c.b16 %v3266, %v3265
      %v3367 = vpack.c.b16 %v3268, %v3267
      %v3368 = vpack.c.b16 %v3270, %v3269
      %v3369 = vpack.c.b16 %v3272, %v3271
      %v3370 = vpack.c.b16 %v3274, %v3273
      %3467 = vmatpush.bf16.msra.mxu0 %v3282
      %3468 = vmatpush.bf16.msra.mxu0 %v3281
      %3469 = vmatpush.bf16.msra.mxu0 %v3280
      %3470 = vmatpush.bf16.msra.mxu0 %v3279
      %3471 = vmatpush.bf16.msra.mxu0 %v3278
      %3472 = vmatpush.bf16.msra.mxu0 %v3277
      %3473 = vmatpush.bf16.msra.mxu0 %v3276
      %3474 = vmatpush.bf16.msra.mxu0 %v3275
      %3475 = vmatmul.bf16.gmra.mxu0 %v2795
      %v3476 = vpop.f32.mrf.mxu0
      %v3477 = vadd.f32 %v2776, %v3476
      %v3478 = vpop.f32.mrf.mxu0
      %v3479 = vadd.f32 %v2778, %v3478
      %3480 = vmatmul.bf16.gmra.mxu0 %v2807
      %v3481 = vpop.f32.mrf.mxu0
      %v3482 = vadd.f32 %v2781, %v3481
      %v3483 = vpop.f32.mrf.mxu0
      %v3484 = vadd.f32 %v2783, %v3483
      %3485 = vmatmul.bf16.gmra.mxu0 %v2819
      %v3486 = vpop.f32.mrf.mxu0
      %v3487 = vadd.f32 %v2786, %v3486
      %v3488 = vpop.f32.mrf.mxu0
      %v3489 = vadd.f32 %v2788, %v3488
      %3490 = vmatmul.bf16.gmra.mxu0 %v2831
      %v3491 = vpop.f32.mrf.mxu0
      %v3492 = vadd.f32 %v2791, %v3491
      %v3493 = vpop.f32.mrf.mxu0
      %v3494 = vadd.f32 %v2793, %v3493
      %3495 = vdwg.mxu0
      %3496 = vmatpush.bf16.msra.mxu0 %v3290
      %3497 = vmatpush.bf16.msra.mxu0 %v3289
      %3498 = vmatpush.bf16.msra.mxu0 %v3288
      %3499 = vmatpush.bf16.msra.mxu0 %v3287
      %3500 = vmatpush.bf16.msra.mxu0 %v3286
      %3501 = vmatpush.bf16.msra.mxu0 %v3285
      %3502 = vmatpush.bf16.msra.mxu0 %v3284
      %3503 = vmatpush.bf16.msra.mxu0 %v3283
      %3504 = vmatmul.bf16.gmra.mxu0 %v2796
      %v3505 = vpop.f32.mrf.mxu0
      %v3506 = vadd.f32 %v3477, %v3505
      %v3507 = vpop.f32.mrf.mxu0
      %v3508 = vadd.f32 %v3479, %v3507
      %3509 = vmatmul.bf16.gmra.mxu0 %v2808
      %v3510 = vpop.f32.mrf.mxu0
      %v3511 = vadd.f32 %v3482, %v3510
      %v3512 = vpop.f32.mrf.mxu0
      %v3513 = vadd.f32 %v3484, %v3512
      %3514 = vmatmul.bf16.gmra.mxu0 %v2820
      %v3515 = vpop.f32.mrf.mxu0
      %v3516 = vadd.f32 %v3487, %v3515
      %v3517 = vpop.f32.mrf.mxu0
      %v3518 = vadd.f32 %v3489, %v3517
      %3519 = vmatmul.bf16.gmra.mxu0 %v2832
      %v3520 = vpop.f32.mrf.mxu0
      %v3521 = vadd.f32 %v3492, %v3520
      %v3522 = vpop.f32.mrf.mxu0
      %v3523 = vadd.f32 %v3494, %v3522
      %3524 = vdwg.mxu0
      %3525 = vmatpush.bf16.msra.mxu0 %v3298
      %3526 = vmatpush.bf16.msra.mxu0 %v3297
      %3527 = vmatpush.bf16.msra.mxu0 %v3296
      %3528 = vmatpush.bf16.msra.mxu0 %v3295
      %3529 = vmatpush.bf16.msra.mxu0 %v3294
      %3530 = vmatpush.bf16.msra.mxu0 %v3293
      %3531 = vmatpush.bf16.msra.mxu0 %v3292
      %3532 = vmatpush.bf16.msra.mxu0 %v3291
      %3533 = vmatmul.bf16.gmra.mxu0 %v2797
      %v3534 = vpop.f32.mrf.mxu0
      %v3535 = vadd.f32 %v3506, %v3534
      %v3536 = vpop.f32.mrf.mxu0
      %v3537 = vadd.f32 %v3508, %v3536
      %3538 = vmatmul.bf16.gmra.mxu0 %v2809
      %v3539 = vpop.f32.mrf.mxu0
      %v3540 = vadd.f32 %v3511, %v3539
      %v3541 = vpop.f32.mrf.mxu0
      %v3542 = vadd.f32 %v3513, %v3541
      %3543 = vmatmul.bf16.gmra.mxu0 %v2821
      %v3544 = vpop.f32.mrf.mxu0
      %v3545 = vadd.f32 %v3516, %v3544
      %v3546 = vpop.f32.mrf.mxu0
      %v3547 = vadd.f32 %v3518, %v3546
      %3548 = vmatmul.bf16.gmra.mxu0 %v2833
      %v3549 = vpop.f32.mrf.mxu0
      %v3550 = vadd.f32 %v3521, %v3549
      %v3551 = vpop.f32.mrf.mxu0
      %v3552 = vadd.f32 %v3523, %v3551
      %3553 = vdwg.mxu0
      %3554 = vmatpush.bf16.msra.mxu0 %v3306
      %3555 = vmatpush.bf16.msra.mxu0 %v3305
      %3556 = vmatpush.bf16.msra.mxu0 %v3304
      %3557 = vmatpush.bf16.msra.mxu0 %v3303
      %3558 = vmatpush.bf16.msra.mxu0 %v3302
      %3559 = vmatpush.bf16.msra.mxu0 %v3301
      %3560 = vmatpush.bf16.msra.mxu0 %v3300
      %3561 = vmatpush.bf16.msra.mxu0 %v3299
      %3562 = vmatmul.bf16.gmra.mxu0 %v2798
      %v3563 = vpop.f32.mrf.mxu0
      %v3564 = vadd.f32 %v3535, %v3563
      %v3565 = vpop.f32.mrf.mxu0
      %v3566 = vadd.f32 %v3537, %v3565
      %3567 = vmatmul.bf16.gmra.mxu0 %v2810
      %v3568 = vpop.f32.mrf.mxu0
      %v3569 = vadd.f32 %v3540, %v3568
      %v3570 = vpop.f32.mrf.mxu0
      %v3571 = vadd.f32 %v3542, %v3570
      %3572 = vmatmul.bf16.gmra.mxu0 %v2822
      %v3573 = vpop.f32.mrf.mxu0
      %v3574 = vadd.f32 %v3545, %v3573
      %v3575 = vpop.f32.mrf.mxu0
      %v3576 = vadd.f32 %v3547, %v3575
      %3577 = vmatmul.bf16.gmra.mxu0 %v2834
      %v3578 = vpop.f32.mrf.mxu0
      %v3579 = vadd.f32 %v3550, %v3578
      %v3580 = vpop.f32.mrf.mxu0
      %v3581 = vadd.f32 %v3552, %v3580
      %3582 = vdwg.mxu0
      %3583 = vmatpush.bf16.msra.mxu0 %v3314
      %3584 = vmatpush.bf16.msra.mxu0 %v3313
      %3585 = vmatpush.bf16.msra.mxu0 %v3312
      %3586 = vmatpush.bf16.msra.mxu0 %v3311
      %3587 = vmatpush.bf16.msra.mxu0 %v3310
      %3588 = vmatpush.bf16.msra.mxu0 %v3309
      %3589 = vmatpush.bf16.msra.mxu0 %v3308
      %3590 = vmatpush.bf16.msra.mxu0 %v3307
      %3591 = vmatmul.bf16.gmra.mxu0 %v2799
      %v3592 = vpop.f32.mrf.mxu0
      %v3593 = vadd.f32 %v3564, %v3592
      %v3594 = vpop.f32.mrf.mxu0
      %v3595 = vadd.f32 %v3566, %v3594
      %3596 = vmatmul.bf16.gmra.mxu0 %v2811
      %v3597 = vpop.f32.mrf.mxu0
      %v3598 = vadd.f32 %v3569, %v3597
      %v3599 = vpop.f32.mrf.mxu0
      %v3600 = vadd.f32 %v3571, %v3599
      %3601 = vmatmul.bf16.gmra.mxu0 %v2823
      %v3602 = vpop.f32.mrf.mxu0
      %v3603 = vadd.f32 %v3574, %v3602
      %v3604 = vpop.f32.mrf.mxu0
      %v3605 = vadd.f32 %v3576, %v3604
      %3606 = vmatmul.bf16.gmra.mxu0 %v2835
      %v3607 = vpop.f32.mrf.mxu0
      %v3608 = vadd.f32 %v3579, %v3607
      %v3609 = vpop.f32.mrf.mxu0
      %v3610 = vadd.f32 %v3581, %v3609
      %3611 = vdwg.mxu0
      %3612 = vmatpush.bf16.msra.mxu0 %v3322
      %3613 = vmatpush.bf16.msra.mxu0 %v3321
      %3614 = vmatpush.bf16.msra.mxu0 %v3320
      %3615 = vmatpush.bf16.msra.mxu0 %v3319
      %3616 = vmatpush.bf16.msra.mxu0 %v3318
      %3617 = vmatpush.bf16.msra.mxu0 %v3317
      %3618 = vmatpush.bf16.msra.mxu0 %v3316
      %3619 = vmatpush.bf16.msra.mxu0 %v3315
      %3620 = vmatmul.bf16.gmra.mxu0 %v2800
      %v3621 = vpop.f32.mrf.mxu0
      %v3622 = vadd.f32 %v3593, %v3621
      %v3623 = vpop.f32.mrf.mxu0
      %v3624 = vadd.f32 %v3595, %v3623
      %3625 = vmatmul.bf16.gmra.mxu0 %v2812
      %v3626 = vpop.f32.mrf.mxu0
      %v3627 = vadd.f32 %v3598, %v3626
      %v3628 = vpop.f32.mrf.mxu0
      %v3629 = vadd.f32 %v3600, %v3628
      %3630 = vmatmul.bf16.gmra.mxu0 %v2824
      %v3631 = vpop.f32.mrf.mxu0
      %v3632 = vadd.f32 %v3603, %v3631
      %v3633 = vpop.f32.mrf.mxu0
      %v3634 = vadd.f32 %v3605, %v3633
      %3635 = vmatmul.bf16.gmra.mxu0 %v2836
      %v3636 = vpop.f32.mrf.mxu0
      %v3637 = vadd.f32 %v3608, %v3636
      %v3638 = vpop.f32.mrf.mxu0
      %v3639 = vadd.f32 %v3610, %v3638
      %3640 = vdwg.mxu0
      %3641 = vmatpush.bf16.msra.mxu0 %v3330
      %3642 = vmatpush.bf16.msra.mxu0 %v3329
      %3643 = vmatpush.bf16.msra.mxu0 %v3328
      %3644 = vmatpush.bf16.msra.mxu0 %v3327
      %3645 = vmatpush.bf16.msra.mxu0 %v3326
      %3646 = vmatpush.bf16.msra.mxu0 %v3325
      %3647 = vmatpush.bf16.msra.mxu0 %v3324
      %3648 = vmatpush.bf16.msra.mxu0 %v3323
      %3649 = vmatmul.bf16.gmra.mxu0 %v2801
      %v3650 = vpop.f32.mrf.mxu0
      %v3651 = vadd.f32 %v3622, %v3650
      %v3652 = vpop.f32.mrf.mxu0
      %v3653 = vadd.f32 %v3624, %v3652
      %3654 = vmatmul.bf16.gmra.mxu0 %v2813
      %v3655 = vpop.f32.mrf.mxu0
      %v3656 = vadd.f32 %v3627, %v3655
      %v3657 = vpop.f32.mrf.mxu0
      %v3658 = vadd.f32 %v3629, %v3657
      %3659 = vmatmul.bf16.gmra.mxu0 %v2825
      %v3660 = vpop.f32.mrf.mxu0
      %v3661 = vadd.f32 %v3632, %v3660
      %v3662 = vpop.f32.mrf.mxu0
      %v3663 = vadd.f32 %v3634, %v3662
      %3664 = vmatmul.bf16.gmra.mxu0 %v2837
      %v3665 = vpop.f32.mrf.mxu0
      %v3666 = vadd.f32 %v3637, %v3665
      %v3667 = vpop.f32.mrf.mxu0
      %v3668 = vadd.f32 %v3639, %v3667
      %3669 = vdwg.mxu0
      %3670 = vmatpush.bf16.msra.mxu0 %v3338
      %3671 = vmatpush.bf16.msra.mxu0 %v3337
      %3672 = vmatpush.bf16.msra.mxu0 %v3336
      %3673 = vmatpush.bf16.msra.mxu0 %v3335
      %3674 = vmatpush.bf16.msra.mxu0 %v3334
      %3675 = vmatpush.bf16.msra.mxu0 %v3333
      %3676 = vmatpush.bf16.msra.mxu0 %v3332
      %3677 = vmatpush.bf16.msra.mxu0 %v3331
      %3678 = vmatmul.bf16.gmra.mxu0 %v2802
      %v3679 = vpop.f32.mrf.mxu0
      %v3680 = vadd.f32 %v3651, %v3679
      %v3681 = vpop.f32.mrf.mxu0
      %v3682 = vadd.f32 %v3653, %v3681
      %3683 = vmatmul.bf16.gmra.mxu0 %v2814
      %v3684 = vpop.f32.mrf.mxu0
      %v3685 = vadd.f32 %v3656, %v3684
      %v3686 = vpop.f32.mrf.mxu0
      %v3687 = vadd.f32 %v3658, %v3686
      %3688 = vmatmul.bf16.gmra.mxu0 %v2826
      %v3689 = vpop.f32.mrf.mxu0
      %v3690 = vadd.f32 %v3661, %v3689
      %v3691 = vpop.f32.mrf.mxu0
      %v3692 = vadd.f32 %v3663, %v3691
      %3693 = vmatmul.bf16.gmra.mxu0 %v2838
      %v3694 = vpop.f32.mrf.mxu0
      %v3695 = vadd.f32 %v3666, %v3694
      %v3696 = vpop.f32.mrf.mxu0
      %v3697 = vadd.f32 %v3668, %v3696
      %3698 = vdwg.mxu0
      %3699 = vmatpush.bf16.msra.mxu0 %v3346
      %3700 = vmatpush.bf16.msra.mxu0 %v3345
      %3701 = vmatpush.bf16.msra.mxu0 %v3344
      %3702 = vmatpush.bf16.msra.mxu0 %v3343
      %3703 = vmatpush.bf16.msra.mxu0 %v3342
      %3704 = vmatpush.bf16.msra.mxu0 %v3341
      %3705 = vmatpush.bf16.msra.mxu0 %v3340
      %3706 = vmatpush.bf16.msra.mxu0 %v3339
      %3707 = vmatmul.bf16.gmra.mxu0 %v2803
      %v3708 = vpop.f32.mrf.mxu0
      %v3709 = vadd.f32 %v3680, %v3708
      %v3710 = vpop.f32.mrf.mxu0
      %v3711 = vadd.f32 %v3682, %v3710
      %3712 = vmatmul.bf16.gmra.mxu0 %v2815
      %v3713 = vpop.f32.mrf.mxu0
      %v3714 = vadd.f32 %v3685, %v3713
      %v3715 = vpop.f32.mrf.mxu0
      %v3716 = vadd.f32 %v3687, %v3715
      %3717 = vmatmul.bf16.gmra.mxu0 %v2827
      %v3718 = vpop.f32.mrf.mxu0
      %v3719 = vadd.f32 %v3690, %v3718
      %v3720 = vpop.f32.mrf.mxu0
      %v3721 = vadd.f32 %v3692, %v3720
      %3722 = vmatmul.bf16.gmra.mxu0 %v2839
      %v3723 = vpop.f32.mrf.mxu0
      %v3724 = vadd.f32 %v3695, %v3723
      %v3725 = vpop.f32.mrf.mxu0
      %v3726 = vadd.f32 %v3697, %v3725
      %3727 = vdwg.mxu0
      %3728 = vmatpush.bf16.msra.mxu0 %v3354
      %3729 = vmatpush.bf16.msra.mxu0 %v3353
      %3730 = vmatpush.bf16.msra.mxu0 %v3352
      %3731 = vmatpush.bf16.msra.mxu0 %v3351
      %3732 = vmatpush.bf16.msra.mxu0 %v3350
      %3733 = vmatpush.bf16.msra.mxu0 %v3349
      %3734 = vmatpush.bf16.msra.mxu0 %v3348
      %3735 = vmatpush.bf16.msra.mxu0 %v3347
      %3736 = vmatmul.bf16.gmra.mxu0 %v2804
      %v3737 = vpop.f32.mrf.mxu0
      %v3738 = vadd.f32 %v3709, %v3737
      %v3739 = vpop.f32.mrf.mxu0
      %v3740 = vadd.f32 %v3711, %v3739
      %3741 = vmatmul.bf16.gmra.mxu0 %v2816
      %v3742 = vpop.f32.mrf.mxu0
      %v3743 = vadd.f32 %v3714, %v3742
      %v3744 = vpop.f32.mrf.mxu0
      %v3745 = vadd.f32 %v3716, %v3744
      %3746 = vmatmul.bf16.gmra.mxu0 %v2828
      %v3747 = vpop.f32.mrf.mxu0
      %v3748 = vadd.f32 %v3719, %v3747
      %v3749 = vpop.f32.mrf.mxu0
      %v3750 = vadd.f32 %v3721, %v3749
      %3751 = vmatmul.bf16.gmra.mxu0 %v2840
      %v3752 = vpop.f32.mrf.mxu0
      %v3753 = vadd.f32 %v3724, %v3752
      %v3754 = vpop.f32.mrf.mxu0
      %v3755 = vadd.f32 %v3726, %v3754
      %3756 = vdwg.mxu0
      %3757 = vmatpush.bf16.msra.mxu0 %v3362
      %3758 = vmatpush.bf16.msra.mxu0 %v3361
      %3759 = vmatpush.bf16.msra.mxu0 %v3360
      %3760 = vmatpush.bf16.msra.mxu0 %v3359
      %3761 = vmatpush.bf16.msra.mxu0 %v3358
      %3762 = vmatpush.bf16.msra.mxu0 %v3357
      %3763 = vmatpush.bf16.msra.mxu0 %v3356
      %3764 = vmatpush.bf16.msra.mxu0 %v3355
      %3765 = vmatmul.bf16.gmra.mxu0 %v2805
      %v3766 = vpop.f32.mrf.mxu0
      %v3767 = vadd.f32 %v3738, %v3766
      %v3768 = vpop.f32.mrf.mxu0
      %v3769 = vadd.f32 %v3740, %v3768
      %3770 = vmatmul.bf16.gmra.mxu0 %v2817
      %v3771 = vpop.f32.mrf.mxu0
      %v3772 = vadd.f32 %v3743, %v3771
      %v3773 = vpop.f32.mrf.mxu0
      %v3774 = vadd.f32 %v3745, %v3773
      %3775 = vmatmul.bf16.gmra.mxu0 %v2829
      %v3776 = vpop.f32.mrf.mxu0
      %v3777 = vadd.f32 %v3748, %v3776
      %v3778 = vpop.f32.mrf.mxu0
      %v3779 = vadd.f32 %v3750, %v3778
      %3780 = vmatmul.bf16.gmra.mxu0 %v2841
      %v3781 = vpop.f32.mrf.mxu0
      %v3782 = vadd.f32 %v3753, %v3781
      %v3783 = vpop.f32.mrf.mxu0
      %v3784 = vadd.f32 %v3755, %v3783
      %3785 = vdwg.mxu0
      %3786 = vmatpush.bf16.msra.mxu0 %v3370
      %3787 = vmatpush.bf16.msra.mxu0 %v3369
      %3788 = vmatpush.bf16.msra.mxu0 %v3368
      %3789 = vmatpush.bf16.msra.mxu0 %v3367
      %3790 = vmatpush.bf16.msra.mxu0 %v3366
      %3791 = vmatpush.bf16.msra.mxu0 %v3365
      %3792 = vmatpush.bf16.msra.mxu0 %v3364
      %3793 = vmatpush.bf16.msra.mxu0 %v3363
      %3794 = vmatmul.bf16.gmra.mxu0 %v2806
      %v3795 = vpop.f32.mrf.mxu0
      %v3796 = vadd.f32 %v3767, %v3795
      %v3797 = vpop.f32.mrf.mxu0
      %v3798 = vadd.f32 %v3769, %v3797
      %3799 = vmatmul.bf16.gmra.mxu0 %v2818
      %v3800 = vpop.f32.mrf.mxu0
      %v3801 = vadd.f32 %v3772, %v3800
      %v3802 = vpop.f32.mrf.mxu0
      %v3803 = vadd.f32 %v3774, %v3802
      %3804 = vmatmul.bf16.gmra.mxu0 %v2830
      %v3805 = vpop.f32.mrf.mxu0
      %v3806 = vadd.f32 %v3777, %v3805
      %v3807 = vpop.f32.mrf.mxu0
      %v3808 = vadd.f32 %v3779, %v3807
      %3809 = vmatmul.bf16.gmra.mxu0 %v2842
      %v3810 = vpop.f32.mrf.mxu0
      %v3811 = vadd.f32 %v3782, %v3810
      %v3812 = vpop.f32.mrf.mxu0
      %v3813 = vadd.f32 %v3784, %v3812
      %3814 = vdwg.mxu0
      %v3817 = vunpack.c.l.b16 %v882
      %v3818 = vunpack.c.h.b16 %v882
      %v3819 = vunpack.c.l.b16 %v883
      %v3820 = vunpack.c.h.b16 %v883
      %v3823 = vunpack.c.l.b16 %v884
      %v3824 = vunpack.c.h.b16 %v884
      %v3825 = vunpack.c.l.b16 %v885
      %v3826 = vunpack.c.h.b16 %v885
      %v3827 = vpack.c.b16 %v3823, %v3817
      %v3828 = vpack.c.b16 %v3824, %v3818
      %v3829 = vpack.c.b16 %v3825, %v3819
      %v3830 = vpack.c.b16 %v3826, %v3820
      %v3832 = vshrl.u32 %v3827, 16
      %v3834 = vshll.u32 %v3827, 16
      %v3836 = vrot.slane %v3834, 1
      %v3837 = vor.u32 %v3832, %v3836
      %v3839 = vshrl.u32 %v3828, 16
      %v3841 = vshll.u32 %v3828, 16
      %v3843 = vrot.slane %v3841, 1
      %v3844 = vor.u32 %v3839, %v3843
      %v3846 = vshrl.u32 %v3829, 16
      %v3848 = vshll.u32 %v3829, 16
      %v3850 = vrot.slane %v3848, 1
      %v3851 = vor.u32 %v3846, %v3850
      %v3853 = vshrl.u32 %v3830, 16
      %v3855 = vshll.u32 %v3830, 16
      %v3857 = vrot.slane %v3855, 1
      %v3858 = vor.u32 %v3853, %v3857
      %v3859 = vrot.slane %v3827, 1
      %v3860 = vrot.slane %v3828, 1
      %v3861 = vrot.slane %v3829, 1
      %v3862 = vrot.slane %v3830, 1
      %v3863 = vunpack.c.l.b16 %v3837
      %v3864 = vunpack.c.l.b16 %v3844
      %v3865 = vunpack.c.l.b16 %v3851
      %v3866 = vunpack.c.l.b16 %v3858
      %v3867 = vunpack.c.l.b16 %v3859
      %v3868 = vunpack.c.l.b16 %v3860
      %v3869 = vunpack.c.l.b16 %v3861
      %v3870 = vunpack.c.l.b16 %v3862
      %s3871 = scalar_lea.vmem %s3, 1536
      %v3872 = vld [vmem:[%s3871] sm:$0xf]
      %v3873 = vld [vmem:[%s3871 + $0x4] sm:$0xf]
      %v3874 = vld [vmem:[%s3871 + $0x8] sm:$0xf]
      %v3875 = vld [vmem:[%s3871 + $0xc] sm:$0xf]
      %v3876 = vld [vmem:[%s3871 + $0x10] sm:$0xf]
      %v3877 = vld [vmem:[%s3871 + $0x14] sm:$0xf]
      %v3878 = vld [vmem:[%s3871 + $0x18] sm:$0xf]
      %v3879 = vld [vmem:[%s3871 + $0x1c] sm:$0xf]
      %v3880 = vld [vmem:[%s3871 + $0x20] sm:$0xf]
      %v3881 = vld [vmem:[%s3871 + $0x24] sm:$0xf]
      %v3882 = vld [vmem:[%s3871 + $0x28] sm:$0xf]
      %v3883 = vld [vmem:[%s3871 + $0x2c] sm:$0xf]
      %v3884 = vld [vmem:[%s3871 + $0x30] sm:$0xf]
      %v3885 = vld [vmem:[%s3871 + $0x34] sm:$0xf]
      %v3886 = vld [vmem:[%s3871 + $0x38] sm:$0xf]
      %v3887 = vld [vmem:[%s3871 + $0x3c] sm:$0xf]
      %v3888 = vld [vmem:[%s3871 + $0x40] sm:$0xf]
      %v3889 = vld [vmem:[%s3871 + $0x44] sm:$0xf]
      %v3890 = vld [vmem:[%s3871 + $0x48] sm:$0xf]
      %v3891 = vld [vmem:[%s3871 + $0x4c] sm:$0xf]
      %v3892 = vld [vmem:[%s3871 + $0x50] sm:$0xf]
      %v3893 = vld [vmem:[%s3871 + $0x54] sm:$0xf]
      %v3894 = vld [vmem:[%s3871 + $0x58] sm:$0xf]
      %v3895 = vld [vmem:[%s3871 + $0x5c] sm:$0xf]
      %v3896 = vld [vmem:[%s3871 + $0x60] sm:$0xf]
      %v3897 = vld [vmem:[%s3871 + $0x64] sm:$0xf]
      %v3898 = vld [vmem:[%s3871 + $0x68] sm:$0xf]
      %v3899 = vld [vmem:[%s3871 + $0x6c] sm:$0xf]
      %v3900 = vld [vmem:[%s3871 + $0x70] sm:$0xf]
      %v3901 = vld [vmem:[%s3871 + $0x74] sm:$0xf]
      %v3902 = vld [vmem:[%s3871 + $0x78] sm:$0xf]
      %v3903 = vld [vmem:[%s3871 + $0x7c] sm:$0xf]
      %v3904 = vld [vmem:[%s3871 + $0x80] sm:$0xf]
      %v3905 = vld [vmem:[%s3871 + $0x84] sm:$0xf]
      %v3906 = vld [vmem:[%s3871 + $0x88] sm:$0xf]
      %v3907 = vld [vmem:[%s3871 + $0x8c] sm:$0xf]
      %v3908 = vld [vmem:[%s3871 + $0x90] sm:$0xf]
      %v3909 = vld [vmem:[%s3871 + $0x94] sm:$0xf]
      %v3910 = vld [vmem:[%s3871 + $0x98] sm:$0xf]
      %v3911 = vld [vmem:[%s3871 + $0x9c] sm:$0xf]
      %v3912 = vld [vmem:[%s3871 + $0xa0] sm:$0xf]
      %v3913 = vld [vmem:[%s3871 + $0xa4] sm:$0xf]
      %v3914 = vld [vmem:[%s3871 + $0xa8] sm:$0xf]
      %v3915 = vld [vmem:[%s3871 + $0xac] sm:$0xf]
      %v3916 = vld [vmem:[%s3871 + $0xb0] sm:$0xf]
      %v3917 = vld [vmem:[%s3871 + $0xb4] sm:$0xf]
      %v3918 = vld [vmem:[%s3871 + $0xb8] sm:$0xf]
      %v3919 = vld [vmem:[%s3871 + $0xbc] sm:$0xf]
      %v3920 = vld [vmem:[%s3871 + $0xc0] sm:$0xf]
      %v3921 = vld [vmem:[%s3871 + $0xc4] sm:$0xf]
      %v3922 = vld [vmem:[%s3871 + $0xc8] sm:$0xf]
      %v3923 = vld [vmem:[%s3871 + $0xcc] sm:$0xf]
      %v3924 = vld [vmem:[%s3871 + $0xd0] sm:$0xf]
      %v3925 = vld [vmem:[%s3871 + $0xd4] sm:$0xf]
      %v3926 = vld [vmem:[%s3871 + $0xd8] sm:$0xf]
      %v3927 = vld [vmem:[%s3871 + $0xdc] sm:$0xf]
      %v3928 = vld [vmem:[%s3871 + $0xe0] sm:$0xf]
      %v3929 = vld [vmem:[%s3871 + $0xe4] sm:$0xf]
      %v3930 = vld [vmem:[%s3871 + $0xe8] sm:$0xf]
      %v3931 = vld [vmem:[%s3871 + $0xec] sm:$0xf]
      %v3932 = vld [vmem:[%s3871 + $0xf0] sm:$0xf]
      %v3933 = vld [vmem:[%s3871 + $0xf4] sm:$0xf]
      %v3934 = vld [vmem:[%s3871 + $0xf8] sm:$0xf]
      %v3935 = vld [vmem:[%s3871 + $0xfc] sm:$0xf]
      %v3936 = vld [vmem:[%s3871 + $0x100] sm:$0xf]
      %v3937 = vld [vmem:[%s3871 + $0x104] sm:$0xf]
      %v3938 = vld [vmem:[%s3871 + $0x108] sm:$0xf]
      %v3939 = vld [vmem:[%s3871 + $0x10c] sm:$0xf]
      %v3940 = vld [vmem:[%s3871 + $0x110] sm:$0xf]
      %v3941 = vld [vmem:[%s3871 + $0x114] sm:$0xf]
      %v3942 = vld [vmem:[%s3871 + $0x118] sm:$0xf]
      %v3943 = vld [vmem:[%s3871 + $0x11c] sm:$0xf]
      %v3944 = vld [vmem:[%s3871 + $0x120] sm:$0xf]
      %v3945 = vld [vmem:[%s3871 + $0x124] sm:$0xf]
      %v3946 = vld [vmem:[%s3871 + $0x128] sm:$0xf]
      %v3947 = vld [vmem:[%s3871 + $0x12c] sm:$0xf]
      %v3948 = vld [vmem:[%s3871 + $0x130] sm:$0xf]
      %v3949 = vld [vmem:[%s3871 + $0x134] sm:$0xf]
      %v3950 = vld [vmem:[%s3871 + $0x138] sm:$0xf]
      %v3951 = vld [vmem:[%s3871 + $0x13c] sm:$0xf]
      %v3952 = vld [vmem:[%s3871 + $0x140] sm:$0xf]
      %v3953 = vld [vmem:[%s3871 + $0x144] sm:$0xf]
      %v3954 = vld [vmem:[%s3871 + $0x148] sm:$0xf]
      %v3955 = vld [vmem:[%s3871 + $0x14c] sm:$0xf]
      %v3956 = vld [vmem:[%s3871 + $0x150] sm:$0xf]
      %v3957 = vld [vmem:[%s3871 + $0x154] sm:$0xf]
      %v3958 = vld [vmem:[%s3871 + $0x158] sm:$0xf]
      %v3959 = vld [vmem:[%s3871 + $0x15c] sm:$0xf]
      %v3960 = vld [vmem:[%s3871 + $0x160] sm:$0xf]
      %v3961 = vld [vmem:[%s3871 + $0x164] sm:$0xf]
      %v3962 = vld [vmem:[%s3871 + $0x168] sm:$0xf]
      %v3963 = vld [vmem:[%s3871 + $0x16c] sm:$0xf]
      %v3964 = vld [vmem:[%s3871 + $0x170] sm:$0xf]
      %v3965 = vld [vmem:[%s3871 + $0x174] sm:$0xf]
      %v3966 = vld [vmem:[%s3871 + $0x178] sm:$0xf]
      %v3967 = vld [vmem:[%s3871 + $0x17c] sm:$0xf]
      %v3968 = vld [vmem:[%s3871 + $0x180] sm:$0xf]
      %v3969 = vld [vmem:[%s3871 + $0x184] sm:$0xf]
      %v3970 = vld [vmem:[%s3871 + $0x188] sm:$0xf]
      %v3971 = vld [vmem:[%s3871 + $0x18c] sm:$0xf]
      %v3972 = vld [vmem:[%s3871 + $0x190] sm:$0xf]
      %v3973 = vld [vmem:[%s3871 + $0x194] sm:$0xf]
      %v3974 = vld [vmem:[%s3871 + $0x198] sm:$0xf]
      %v3975 = vld [vmem:[%s3871 + $0x19c] sm:$0xf]
      %v3976 = vld [vmem:[%s3871 + $0x1a0] sm:$0xf]
      %v3977 = vld [vmem:[%s3871 + $0x1a4] sm:$0xf]
      %v3978 = vld [vmem:[%s3871 + $0x1a8] sm:$0xf]
      %v3979 = vld [vmem:[%s3871 + $0x1ac] sm:$0xf]
      %v3980 = vld [vmem:[%s3871 + $0x1b0] sm:$0xf]
      %v3981 = vld [vmem:[%s3871 + $0x1b4] sm:$0xf]
      %v3982 = vld [vmem:[%s3871 + $0x1b8] sm:$0xf]
      %v3983 = vld [vmem:[%s3871 + $0x1bc] sm:$0xf]
      %v3984 = vld [vmem:[%s3871 + $0x1c0] sm:$0xf]
      %v3985 = vld [vmem:[%s3871 + $0x1c4] sm:$0xf]
      %v3986 = vld [vmem:[%s3871 + $0x1c8] sm:$0xf]
      %v3987 = vld [vmem:[%s3871 + $0x1cc] sm:$0xf]
      %v3988 = vld [vmem:[%s3871 + $0x1d0] sm:$0xf]
      %v3989 = vld [vmem:[%s3871 + $0x1d4] sm:$0xf]
      %v3990 = vld [vmem:[%s3871 + $0x1d8] sm:$0xf]
      %v3991 = vld [vmem:[%s3871 + $0x1dc] sm:$0xf]
      %v3992 = vld [vmem:[%s3871 + $0x1e0] sm:$0xf]
      %v3993 = vld [vmem:[%s3871 + $0x1e4] sm:$0xf]
      %v3994 = vld [vmem:[%s3871 + $0x1e8] sm:$0xf]
      %v3995 = vld [vmem:[%s3871 + $0x1ec] sm:$0xf]
      %v3996 = vld [vmem:[%s3871 + $0x1f0] sm:$0xf]
      %v3997 = vld [vmem:[%s3871 + $0x1f4] sm:$0xf]
      %v3998 = vld [vmem:[%s3871 + $0x1f8] sm:$0xf]
      %v3999 = vld [vmem:[%s3871 + $0x1fc] sm:$0xf]
      %v4000 = vld [vmem:[%s3871 + $0x200] sm:$0xf]
      %v4001 = vld [vmem:[%s3871 + $0x204] sm:$0xf]
      %v4002 = vld [vmem:[%s3871 + $0x208] sm:$0xf]
      %v4003 = vld [vmem:[%s3871 + $0x20c] sm:$0xf]
      %v4004 = vld [vmem:[%s3871 + $0x210] sm:$0xf]
      %v4005 = vld [vmem:[%s3871 + $0x214] sm:$0xf]
      %v4006 = vld [vmem:[%s3871 + $0x218] sm:$0xf]
      %v4007 = vld [vmem:[%s3871 + $0x21c] sm:$0xf]
      %v4008 = vld [vmem:[%s3871 + $0x220] sm:$0xf]
      %v4009 = vld [vmem:[%s3871 + $0x224] sm:$0xf]
      %v4010 = vld [vmem:[%s3871 + $0x228] sm:$0xf]
      %v4011 = vld [vmem:[%s3871 + $0x22c] sm:$0xf]
      %v4012 = vld [vmem:[%s3871 + $0x230] sm:$0xf]
      %v4013 = vld [vmem:[%s3871 + $0x234] sm:$0xf]
      %v4014 = vld [vmem:[%s3871 + $0x238] sm:$0xf]
      %v4015 = vld [vmem:[%s3871 + $0x23c] sm:$0xf]
      %v4016 = vld [vmem:[%s3871 + $0x240] sm:$0xf]
      %v4017 = vld [vmem:[%s3871 + $0x244] sm:$0xf]
      %v4018 = vld [vmem:[%s3871 + $0x248] sm:$0xf]
      %v4019 = vld [vmem:[%s3871 + $0x24c] sm:$0xf]
      %v4020 = vld [vmem:[%s3871 + $0x250] sm:$0xf]
      %v4021 = vld [vmem:[%s3871 + $0x254] sm:$0xf]
      %v4022 = vld [vmem:[%s3871 + $0x258] sm:$0xf]
      %v4023 = vld [vmem:[%s3871 + $0x25c] sm:$0xf]
      %v4024 = vld [vmem:[%s3871 + $0x260] sm:$0xf]
      %v4025 = vld [vmem:[%s3871 + $0x264] sm:$0xf]
      %v4026 = vld [vmem:[%s3871 + $0x268] sm:$0xf]
      %v4027 = vld [vmem:[%s3871 + $0x26c] sm:$0xf]
      %v4028 = vld [vmem:[%s3871 + $0x270] sm:$0xf]
      %v4029 = vld [vmem:[%s3871 + $0x274] sm:$0xf]
      %v4030 = vld [vmem:[%s3871 + $0x278] sm:$0xf]
      %v4031 = vld [vmem:[%s3871 + $0x27c] sm:$0xf]
      %v4032 = vld [vmem:[%s3871 + $0x280] sm:$0xf]
      %v4033 = vld [vmem:[%s3871 + $0x284] sm:$0xf]
      %v4034 = vld [vmem:[%s3871 + $0x288] sm:$0xf]
      %v4035 = vld [vmem:[%s3871 + $0x28c] sm:$0xf]
      %v4036 = vld [vmem:[%s3871 + $0x290] sm:$0xf]
      %v4037 = vld [vmem:[%s3871 + $0x294] sm:$0xf]
      %v4038 = vld [vmem:[%s3871 + $0x298] sm:$0xf]
      %v4039 = vld [vmem:[%s3871 + $0x29c] sm:$0xf]
      %v4040 = vld [vmem:[%s3871 + $0x2a0] sm:$0xf]
      %v4041 = vld [vmem:[%s3871 + $0x2a4] sm:$0xf]
      %v4042 = vld [vmem:[%s3871 + $0x2a8] sm:$0xf]
      %v4043 = vld [vmem:[%s3871 + $0x2ac] sm:$0xf]
      %v4044 = vld [vmem:[%s3871 + $0x2b0] sm:$0xf]
      %v4045 = vld [vmem:[%s3871 + $0x2b4] sm:$0xf]
      %v4046 = vld [vmem:[%s3871 + $0x2b8] sm:$0xf]
      %v4047 = vld [vmem:[%s3871 + $0x2bc] sm:$0xf]
      %v4048 = vld [vmem:[%s3871 + $0x2c0] sm:$0xf]
      %v4049 = vld [vmem:[%s3871 + $0x2c4] sm:$0xf]
      %v4050 = vld [vmem:[%s3871 + $0x2c8] sm:$0xf]
      %v4051 = vld [vmem:[%s3871 + $0x2cc] sm:$0xf]
      %v4052 = vld [vmem:[%s3871 + $0x2d0] sm:$0xf]
      %v4053 = vld [vmem:[%s3871 + $0x2d4] sm:$0xf]
      %v4054 = vld [vmem:[%s3871 + $0x2d8] sm:$0xf]
      %v4055 = vld [vmem:[%s3871 + $0x2dc] sm:$0xf]
      %v4056 = vld [vmem:[%s3871 + $0x2e0] sm:$0xf]
      %v4057 = vld [vmem:[%s3871 + $0x2e4] sm:$0xf]
      %v4058 = vld [vmem:[%s3871 + $0x2e8] sm:$0xf]
      %v4059 = vld [vmem:[%s3871 + $0x2ec] sm:$0xf]
      %v4060 = vld [vmem:[%s3871 + $0x2f0] sm:$0xf]
      %v4061 = vld [vmem:[%s3871 + $0x2f4] sm:$0xf]
      %v4062 = vld [vmem:[%s3871 + $0x2f8] sm:$0xf]
      %v4063 = vld [vmem:[%s3871 + $0x2fc] sm:$0xf]
      %v4064 = vpack.c.b16 %v3817, %v1528
      %v4065 = vpack.c.b16 %v3818, %v1529
      %v4066 = vpack.c.b16 %v3819, %v1530
      %v4067 = vpack.c.b16 %v3820, %v1531
      %v4068 = vpack.c.b16 %v3863, %v1574
      %v4069 = vpack.c.b16 %v3864, %v1575
      %v4070 = vpack.c.b16 %v3865, %v1576
      %v4071 = vpack.c.b16 %v3866, %v1577
      %v4072 = vpack.c.b16 %v3867, %v1578
      %v4073 = vpack.c.b16 %v3868, %v1579
      %v4074 = vpack.c.b16 %v3869, %v1580
      %v4075 = vpack.c.b16 %v3870, %v1581
      %v4280 = vunpack.c.l.b16 %v3872
      %v4281 = vunpack.c.l.b16 %v3873
      %v4282 = vunpack.c.l.b16 %v3874
      %v4283 = vunpack.c.l.b16 %v3875
      %v4284 = vunpack.c.l.b16 %v3876
      %v4285 = vunpack.c.l.b16 %v3877
      %v4286 = vunpack.c.l.b16 %v3878
      %v4287 = vunpack.c.l.b16 %v3879
      %v4288 = vunpack.c.l.b16 %v3880
      %v4289 = vunpack.c.l.b16 %v3881
      %v4290 = vunpack.c.l.b16 %v3882
      %v4291 = vunpack.c.l.b16 %v3883
      %v4292 = vunpack.c.l.b16 %v3884
      %v4293 = vunpack.c.l.b16 %v3885
      %v4294 = vunpack.c.l.b16 %v3886
      %v4295 = vunpack.c.l.b16 %v3887
      %v4296 = vunpack.c.l.b16 %v3888
      %v4297 = vunpack.c.l.b16 %v3889
      %v4298 = vunpack.c.l.b16 %v3890
      %v4299 = vunpack.c.l.b16 %v3891
      %v4300 = vunpack.c.l.b16 %v3892
      %v4301 = vunpack.c.l.b16 %v3893
      %v4302 = vunpack.c.l.b16 %v3894
      %v4303 = vunpack.c.l.b16 %v3895
      %v4304 = vunpack.c.l.b16 %v3896
      %v4305 = vunpack.c.l.b16 %v3897
      %v4306 = vunpack.c.l.b16 %v3898
      %v4307 = vunpack.c.l.b16 %v3899
      %v4308 = vunpack.c.l.b16 %v3900
      %v4309 = vunpack.c.l.b16 %v3901
      %v4310 = vunpack.c.l.b16 %v3902
      %v4311 = vunpack.c.l.b16 %v3903
      %v4312 = vunpack.c.l.b16 %v3904
      %v4313 = vunpack.c.l.b16 %v3905
      %v4314 = vunpack.c.l.b16 %v3906
      %v4315 = vunpack.c.l.b16 %v3907
      %v4316 = vunpack.c.l.b16 %v3908
      %v4317 = vunpack.c.l.b16 %v3909
      %v4318 = vunpack.c.l.b16 %v3910
      %v4319 = vunpack.c.l.b16 %v3911
      %v4320 = vunpack.c.l.b16 %v3912
      %v4321 = vunpack.c.l.b16 %v3913
      %v4322 = vunpack.c.l.b16 %v3914
      %v4323 = vunpack.c.l.b16 %v3915
      %v4324 = vunpack.c.l.b16 %v3916
      %v4325 = vunpack.c.l.b16 %v3917
      %v4326 = vunpack.c.l.b16 %v3918
      %v4327 = vunpack.c.l.b16 %v3919
      %v4328 = vunpack.c.l.b16 %v3920
      %v4329 = vunpack.c.l.b16 %v3921
      %v4330 = vunpack.c.l.b16 %v3922
      %v4331 = vunpack.c.l.b16 %v3923
      %v4332 = vunpack.c.l.b16 %v3924
      %v4333 = vunpack.c.l.b16 %v3925
      %v4334 = vunpack.c.l.b16 %v3926
      %v4335 = vunpack.c.l.b16 %v3927
      %v4336 = vunpack.c.l.b16 %v3928
      %v4337 = vunpack.c.l.b16 %v3929
      %v4338 = vunpack.c.l.b16 %v3930
      %v4339 = vunpack.c.l.b16 %v3931
      %v4340 = vunpack.c.l.b16 %v3932
      %v4341 = vunpack.c.l.b16 %v3933
      %v4342 = vunpack.c.l.b16 %v3934
      %v4343 = vunpack.c.l.b16 %v3935
      %v4344 = vunpack.c.l.b16 %v3936
      %v4345 = vunpack.c.l.b16 %v3937
      %v4346 = vunpack.c.l.b16 %v3938
      %v4347 = vunpack.c.l.b16 %v3939
      %v4348 = vunpack.c.l.b16 %v3940
      %v4349 = vunpack.c.l.b16 %v3941
      %v4350 = vunpack.c.l.b16 %v3942
      %v4351 = vunpack.c.l.b16 %v3943
      %v4352 = vunpack.c.l.b16 %v3944
      %v4353 = vunpack.c.l.b16 %v3945
      %v4354 = vunpack.c.l.b16 %v3946
      %v4355 = vunpack.c.l.b16 %v3947
      %v4356 = vunpack.c.l.b16 %v3948
      %v4357 = vunpack.c.l.b16 %v3949
      %v4358 = vunpack.c.l.b16 %v3950
      %v4359 = vunpack.c.l.b16 %v3951
      %v4360 = vunpack.c.l.b16 %v3952
      %v4361 = vunpack.c.l.b16 %v3953
      %v4362 = vunpack.c.l.b16 %v3954
      %v4363 = vunpack.c.l.b16 %v3955
      %v4364 = vunpack.c.l.b16 %v3956
      %v4365 = vunpack.c.l.b16 %v3957
      %v4366 = vunpack.c.l.b16 %v3958
      %v4367 = vunpack.c.l.b16 %v3959
      %v4368 = vunpack.c.l.b16 %v3960
      %v4369 = vunpack.c.l.b16 %v3961
      %v4370 = vunpack.c.l.b16 %v3962
      %v4371 = vunpack.c.l.b16 %v3963
      %v4372 = vunpack.c.l.b16 %v3964
      %v4373 = vunpack.c.l.b16 %v3965
      %v4374 = vunpack.c.l.b16 %v3966
      %v4375 = vunpack.c.l.b16 %v3967
      %v4376 = vunpack.c.l.b16 %v3968
      %v4377 = vunpack.c.l.b16 %v3969
      %v4378 = vunpack.c.l.b16 %v3970
      %v4379 = vunpack.c.l.b16 %v3971
      %v4380 = vunpack.c.l.b16 %v3972
      %v4381 = vunpack.c.l.b16 %v3973
      %v4382 = vunpack.c.l.b16 %v3974
      %v4383 = vunpack.c.l.b16 %v3975
      %v4384 = vunpack.c.l.b16 %v3976
      %v4385 = vunpack.c.l.b16 %v3977
      %v4386 = vunpack.c.l.b16 %v3978
      %v4387 = vunpack.c.l.b16 %v3979
      %v4388 = vunpack.c.l.b16 %v3980
      %v4389 = vunpack.c.l.b16 %v3981
      %v4390 = vunpack.c.l.b16 %v3982
      %v4391 = vunpack.c.l.b16 %v3983
      %v4392 = vunpack.c.l.b16 %v3984
      %v4393 = vunpack.c.l.b16 %v3985
      %v4394 = vunpack.c.l.b16 %v3986
      %v4395 = vunpack.c.l.b16 %v3987
      %v4396 = vunpack.c.l.b16 %v3988
      %v4397 = vunpack.c.l.b16 %v3989
      %v4398 = vunpack.c.l.b16 %v3990
      %v4399 = vunpack.c.l.b16 %v3991
      %v4400 = vunpack.c.l.b16 %v3992
      %v4401 = vunpack.c.l.b16 %v3993
      %v4402 = vunpack.c.l.b16 %v3994
      %v4403 = vunpack.c.l.b16 %v3995
      %v4404 = vunpack.c.l.b16 %v3996
      %v4405 = vunpack.c.l.b16 %v3997
      %v4406 = vunpack.c.l.b16 %v3998
      %v4407 = vunpack.c.l.b16 %v3999
      %v4408 = vunpack.c.l.b16 %v4000
      %v4409 = vunpack.c.l.b16 %v4001
      %v4410 = vunpack.c.l.b16 %v4002
      %v4411 = vunpack.c.l.b16 %v4003
      %v4412 = vunpack.c.l.b16 %v4004
      %v4413 = vunpack.c.l.b16 %v4005
      %v4414 = vunpack.c.l.b16 %v4006
      %v4415 = vunpack.c.l.b16 %v4007
      %v4416 = vunpack.c.l.b16 %v4008
      %v4417 = vunpack.c.l.b16 %v4009
      %v4418 = vunpack.c.l.b16 %v4010
      %v4419 = vunpack.c.l.b16 %v4011
      %v4420 = vunpack.c.l.b16 %v4012
      %v4421 = vunpack.c.l.b16 %v4013
      %v4422 = vunpack.c.l.b16 %v4014
      %v4423 = vunpack.c.l.b16 %v4015
      %v4424 = vunpack.c.l.b16 %v4016
      %v4425 = vunpack.c.l.b16 %v4017
      %v4426 = vunpack.c.l.b16 %v4018
      %v4427 = vunpack.c.l.b16 %v4019
      %v4428 = vunpack.c.l.b16 %v4020
      %v4429 = vunpack.c.l.b16 %v4021
      %v4430 = vunpack.c.l.b16 %v4022
      %v4431 = vunpack.c.l.b16 %v4023
      %v4432 = vunpack.c.l.b16 %v4024
      %v4433 = vunpack.c.l.b16 %v4025
      %v4434 = vunpack.c.l.b16 %v4026
      %v4435 = vunpack.c.l.b16 %v4027
      %v4436 = vunpack.c.l.b16 %v4028
      %v4437 = vunpack.c.l.b16 %v4029
      %v4438 = vunpack.c.l.b16 %v4030
      %v4439 = vunpack.c.l.b16 %v4031
      %v4440 = vunpack.c.l.b16 %v4032
      %v4441 = vunpack.c.l.b16 %v4033
      %v4442 = vunpack.c.l.b16 %v4034
      %v4443 = vunpack.c.l.b16 %v4035
      %v4444 = vunpack.c.l.b16 %v4036
      %v4445 = vunpack.c.l.b16 %v4037
      %v4446 = vunpack.c.l.b16 %v4038
      %v4447 = vunpack.c.l.b16 %v4039
      %v4448 = vunpack.c.l.b16 %v4040
      %v4449 = vunpack.c.l.b16 %v4041
      %v4450 = vunpack.c.l.b16 %v4042
      %v4451 = vunpack.c.l.b16 %v4043
      %v4452 = vunpack.c.l.b16 %v4044
      %v4453 = vunpack.c.l.b16 %v4045
      %v4454 = vunpack.c.l.b16 %v4046
      %v4455 = vunpack.c.l.b16 %v4047
      %v4456 = vunpack.c.l.b16 %v4048
      %v4457 = vunpack.c.l.b16 %v4049
      %v4458 = vunpack.c.l.b16 %v4050
      %v4459 = vunpack.c.l.b16 %v4051
      %v4460 = vunpack.c.l.b16 %v4052
      %v4461 = vunpack.c.l.b16 %v4053
      %v4462 = vunpack.c.l.b16 %v4054
      %v4463 = vunpack.c.l.b16 %v4055
      %v4464 = vunpack.c.l.b16 %v4056
      %v4465 = vunpack.c.l.b16 %v4057
      %v4466 = vunpack.c.l.b16 %v4058
      %v4467 = vunpack.c.l.b16 %v4059
      %v4468 = vunpack.c.l.b16 %v4060
      %v4469 = vunpack.c.l.b16 %v4061
      %v4470 = vunpack.c.l.b16 %v4062
      %v4471 = vunpack.c.l.b16 %v4063
      %v4472 = vpack.c.b16 %v4281, %v4280
      %v4473 = vpack.c.b16 %v4283, %v4282
      %v4474 = vpack.c.b16 %v4285, %v4284
      %v4475 = vpack.c.b16 %v4287, %v4286
      %v4476 = vpack.c.b16 %v4289, %v4288
      %v4477 = vpack.c.b16 %v4291, %v4290
      %v4478 = vpack.c.b16 %v4293, %v4292
      %v4479 = vpack.c.b16 %v4295, %v4294
      %v4480 = vpack.c.b16 %v4297, %v4296
      %v4481 = vpack.c.b16 %v4299, %v4298
      %v4482 = vpack.c.b16 %v4301, %v4300
      %v4483 = vpack.c.b16 %v4303, %v4302
      %v4484 = vpack.c.b16 %v4305, %v4304
      %v4485 = vpack.c.b16 %v4307, %v4306
      %v4486 = vpack.c.b16 %v4309, %v4308
      %v4487 = vpack.c.b16 %v4311, %v4310
      %v4488 = vpack.c.b16 %v4313, %v4312
      %v4489 = vpack.c.b16 %v4315, %v4314
      %v4490 = vpack.c.b16 %v4317, %v4316
      %v4491 = vpack.c.b16 %v4319, %v4318
      %v4492 = vpack.c.b16 %v4321, %v4320
      %v4493 = vpack.c.b16 %v4323, %v4322
      %v4494 = vpack.c.b16 %v4325, %v4324
      %v4495 = vpack.c.b16 %v4327, %v4326
      %v4496 = vpack.c.b16 %v4329, %v4328
      %v4497 = vpack.c.b16 %v4331, %v4330
      %v4498 = vpack.c.b16 %v4333, %v4332
      %v4499 = vpack.c.b16 %v4335, %v4334
      %v4500 = vpack.c.b16 %v4337, %v4336
      %v4501 = vpack.c.b16 %v4339, %v4338
      %v4502 = vpack.c.b16 %v4341, %v4340
      %v4503 = vpack.c.b16 %v4343, %v4342
      %v4504 = vpack.c.b16 %v4345, %v4344
      %v4505 = vpack.c.b16 %v4347, %v4346
      %v4506 = vpack.c.b16 %v4349, %v4348
      %v4507 = vpack.c.b16 %v4351, %v4350
      %v4508 = vpack.c.b16 %v4353, %v4352
      %v4509 = vpack.c.b16 %v4355, %v4354
      %v4510 = vpack.c.b16 %v4357, %v4356
      %v4511 = vpack.c.b16 %v4359, %v4358
      %v4512 = vpack.c.b16 %v4361, %v4360
      %v4513 = vpack.c.b16 %v4363, %v4362
      %v4514 = vpack.c.b16 %v4365, %v4364
      %v4515 = vpack.c.b16 %v4367, %v4366
      %v4516 = vpack.c.b16 %v4369, %v4368
      %v4517 = vpack.c.b16 %v4371, %v4370
      %v4518 = vpack.c.b16 %v4373, %v4372
      %v4519 = vpack.c.b16 %v4375, %v4374
      %v4520 = vpack.c.b16 %v4377, %v4376
      %v4521 = vpack.c.b16 %v4379, %v4378
      %v4522 = vpack.c.b16 %v4381, %v4380
      %v4523 = vpack.c.b16 %v4383, %v4382
      %v4524 = vpack.c.b16 %v4385, %v4384
      %v4525 = vpack.c.b16 %v4387, %v4386
      %v4526 = vpack.c.b16 %v4389, %v4388
      %v4527 = vpack.c.b16 %v4391, %v4390
      %v4528 = vpack.c.b16 %v4393, %v4392
      %v4529 = vpack.c.b16 %v4395, %v4394
      %v4530 = vpack.c.b16 %v4397, %v4396
      %v4531 = vpack.c.b16 %v4399, %v4398
      %v4532 = vpack.c.b16 %v4401, %v4400
      %v4533 = vpack.c.b16 %v4403, %v4402
      %v4534 = vpack.c.b16 %v4405, %v4404
      %v4535 = vpack.c.b16 %v4407, %v4406
      %v4536 = vpack.c.b16 %v4409, %v4408
      %v4537 = vpack.c.b16 %v4411, %v4410
      %v4538 = vpack.c.b16 %v4413, %v4412
      %v4539 = vpack.c.b16 %v4415, %v4414
      %v4540 = vpack.c.b16 %v4417, %v4416
      %v4541 = vpack.c.b16 %v4419, %v4418
      %v4542 = vpack.c.b16 %v4421, %v4420
      %v4543 = vpack.c.b16 %v4423, %v4422
      %v4544 = vpack.c.b16 %v4425, %v4424
      %v4545 = vpack.c.b16 %v4427, %v4426
      %v4546 = vpack.c.b16 %v4429, %v4428
      %v4547 = vpack.c.b16 %v4431, %v4430
      %v4548 = vpack.c.b16 %v4433, %v4432
      %v4549 = vpack.c.b16 %v4435, %v4434
      %v4550 = vpack.c.b16 %v4437, %v4436
      %v4551 = vpack.c.b16 %v4439, %v4438
      %v4552 = vpack.c.b16 %v4441, %v4440
      %v4553 = vpack.c.b16 %v4443, %v4442
      %v4554 = vpack.c.b16 %v4445, %v4444
      %v4555 = vpack.c.b16 %v4447, %v4446
      %v4556 = vpack.c.b16 %v4449, %v4448
      %v4557 = vpack.c.b16 %v4451, %v4450
      %v4558 = vpack.c.b16 %v4453, %v4452
      %v4559 = vpack.c.b16 %v4455, %v4454
      %v4560 = vpack.c.b16 %v4457, %v4456
      %v4561 = vpack.c.b16 %v4459, %v4458
      %v4562 = vpack.c.b16 %v4461, %v4460
      %v4563 = vpack.c.b16 %v4463, %v4462
      %v4564 = vpack.c.b16 %v4465, %v4464
      %v4565 = vpack.c.b16 %v4467, %v4466
      %v4566 = vpack.c.b16 %v4469, %v4468
      %v4567 = vpack.c.b16 %v4471, %v4470
      %4664 = vmatpush.bf16.msra.mxu0 %v4479
      %4665 = vmatpush.bf16.msra.mxu0 %v4478
      %4666 = vmatpush.bf16.msra.mxu0 %v4477
      %4667 = vmatpush.bf16.msra.mxu0 %v4476
      %4668 = vmatpush.bf16.msra.mxu0 %v4475
      %4669 = vmatpush.bf16.msra.mxu0 %v4474
      %4670 = vmatpush.bf16.msra.mxu0 %v4473
      %4671 = vmatpush.bf16.msra.mxu0 %v4472
      %4672 = vmatmul.bf16.gmra.mxu0 %v2807
      %v4673 = vpop.f32.mrf.mxu0
      %v4674 = vadd.f32 0.0, %v4673
      %v4675 = vpop.f32.mrf.mxu0
      %v4676 = vadd.f32 0.0, %v4675
      %4677 = vmatmul.bf16.gmra.mxu0 %v2819
      %v4678 = vpop.f32.mrf.mxu0
      %v4679 = vadd.f32 0.0, %v4678
      %v4680 = vpop.f32.mrf.mxu0
      %v4681 = vadd.f32 0.0, %v4680
      %4682 = vmatmul.bf16.gmra.mxu0 %v2831
      %v4683 = vpop.f32.mrf.mxu0
      %v4684 = vadd.f32 0.0, %v4683
      %v4685 = vpop.f32.mrf.mxu0
      %v4686 = vadd.f32 0.0, %v4685
      %4687 = vmatmul.bf16.gmra.mxu0 %v4064
      %v4688 = vpop.f32.mrf.mxu0
      %v4689 = vadd.f32 0.0, %v4688
      %v4690 = vpop.f32.mrf.mxu0
      %v4691 = vadd.f32 0.0, %v4690
      %4692 = vdwg.mxu0
      %4693 = vmatpush.bf16.msra.mxu0 %v4487
      %4694 = vmatpush.bf16.msra.mxu0 %v4486
      %4695 = vmatpush.bf16.msra.mxu0 %v4485
      %4696 = vmatpush.bf16.msra.mxu0 %v4484
      %4697 = vmatpush.bf16.msra.mxu0 %v4483
      %4698 = vmatpush.bf16.msra.mxu0 %v4482
      %4699 = vmatpush.bf16.msra.mxu0 %v4481
      %4700 = vmatpush.bf16.msra.mxu0 %v4480
      %4701 = vmatmul.bf16.gmra.mxu0 %v2808
      %v4702 = vpop.f32.mrf.mxu0
      %v4703 = vadd.f32 %v4674, %v4702
      %v4704 = vpop.f32.mrf.mxu0
      %v4705 = vadd.f32 %v4676, %v4704
      %4706 = vmatmul.bf16.gmra.mxu0 %v2820
      %v4707 = vpop.f32.mrf.mxu0
      %v4708 = vadd.f32 %v4679, %v4707
      %v4709 = vpop.f32.mrf.mxu0
      %v4710 = vadd.f32 %v4681, %v4709
      %4711 = vmatmul.bf16.gmra.mxu0 %v2832
      %v4712 = vpop.f32.mrf.mxu0
      %v4713 = vadd.f32 %v4684, %v4712
      %v4714 = vpop.f32.mrf.mxu0
      %v4715 = vadd.f32 %v4686, %v4714
      %4716 = vmatmul.bf16.gmra.mxu0 %v4065
      %v4717 = vpop.f32.mrf.mxu0
      %v4718 = vadd.f32 %v4689, %v4717
      %v4719 = vpop.f32.mrf.mxu0
      %v4720 = vadd.f32 %v4691, %v4719
      %4721 = vdwg.mxu0
      %4722 = vmatpush.bf16.msra.mxu0 %v4495
      %4723 = vmatpush.bf16.msra.mxu0 %v4494
      %4724 = vmatpush.bf16.msra.mxu0 %v4493
      %4725 = vmatpush.bf16.msra.mxu0 %v4492
      %4726 = vmatpush.bf16.msra.mxu0 %v4491
      %4727 = vmatpush.bf16.msra.mxu0 %v4490
      %4728 = vmatpush.bf16.msra.mxu0 %v4489
      %4729 = vmatpush.bf16.msra.mxu0 %v4488
      %4730 = vmatmul.bf16.gmra.mxu0 %v2809
      %v4731 = vpop.f32.mrf.mxu0
      %v4732 = vadd.f32 %v4703, %v4731
      %v4733 = vpop.f32.mrf.mxu0
      %v4734 = vadd.f32 %v4705, %v4733
      %4735 = vmatmul.bf16.gmra.mxu0 %v2821
      %v4736 = vpop.f32.mrf.mxu0
      %v4737 = vadd.f32 %v4708, %v4736
      %v4738 = vpop.f32.mrf.mxu0
      %v4739 = vadd.f32 %v4710, %v4738
      %4740 = vmatmul.bf16.gmra.mxu0 %v2833
      %v4741 = vpop.f32.mrf.mxu0
      %v4742 = vadd.f32 %v4713, %v4741
      %v4743 = vpop.f32.mrf.mxu0
      %v4744 = vadd.f32 %v4715, %v4743
      %4745 = vmatmul.bf16.gmra.mxu0 %v4066
      %v4746 = vpop.f32.mrf.mxu0
      %v4747 = vadd.f32 %v4718, %v4746
      %v4748 = vpop.f32.mrf.mxu0
      %v4749 = vadd.f32 %v4720, %v4748
      %4750 = vdwg.mxu0
      %4751 = vmatpush.bf16.msra.mxu0 %v4503
      %4752 = vmatpush.bf16.msra.mxu0 %v4502
      %4753 = vmatpush.bf16.msra.mxu0 %v4501
      %4754 = vmatpush.bf16.msra.mxu0 %v4500
      %4755 = vmatpush.bf16.msra.mxu0 %v4499
      %4756 = vmatpush.bf16.msra.mxu0 %v4498
      %4757 = vmatpush.bf16.msra.mxu0 %v4497
      %4758 = vmatpush.bf16.msra.mxu0 %v4496
      %4759 = vmatmul.bf16.gmra.mxu0 %v2810
      %v4760 = vpop.f32.mrf.mxu0
      %v4761 = vadd.f32 %v4732, %v4760
      %v4762 = vpop.f32.mrf.mxu0
      %v4763 = vadd.f32 %v4734, %v4762
      %4764 = vmatmul.bf16.gmra.mxu0 %v2822
      %v4765 = vpop.f32.mrf.mxu0
      %v4766 = vadd.f32 %v4737, %v4765
      %v4767 = vpop.f32.mrf.mxu0
      %v4768 = vadd.f32 %v4739, %v4767
      %4769 = vmatmul.bf16.gmra.mxu0 %v2834
      %v4770 = vpop.f32.mrf.mxu0
      %v4771 = vadd.f32 %v4742, %v4770
      %v4772 = vpop.f32.mrf.mxu0
      %v4773 = vadd.f32 %v4744, %v4772
      %4774 = vmatmul.bf16.gmra.mxu0 %v4067
      %v4775 = vpop.f32.mrf.mxu0
      %v4776 = vadd.f32 %v4747, %v4775
      %v4777 = vpop.f32.mrf.mxu0
      %v4778 = vadd.f32 %v4749, %v4777
      %4779 = vdwg.mxu0
      %4780 = vmatpush.bf16.msra.mxu0 %v4511
      %4781 = vmatpush.bf16.msra.mxu0 %v4510
      %4782 = vmatpush.bf16.msra.mxu0 %v4509
      %4783 = vmatpush.bf16.msra.mxu0 %v4508
      %4784 = vmatpush.bf16.msra.mxu0 %v4507
      %4785 = vmatpush.bf16.msra.mxu0 %v4506
      %4786 = vmatpush.bf16.msra.mxu0 %v4505
      %4787 = vmatpush.bf16.msra.mxu0 %v4504
      %4788 = vmatmul.bf16.gmra.mxu0 %v2811
      %v4789 = vpop.f32.mrf.mxu0
      %v4790 = vadd.f32 %v4761, %v4789
      %v4791 = vpop.f32.mrf.mxu0
      %v4792 = vadd.f32 %v4763, %v4791
      %4793 = vmatmul.bf16.gmra.mxu0 %v2823
      %v4794 = vpop.f32.mrf.mxu0
      %v4795 = vadd.f32 %v4766, %v4794
      %v4796 = vpop.f32.mrf.mxu0
      %v4797 = vadd.f32 %v4768, %v4796
      %4798 = vmatmul.bf16.gmra.mxu0 %v2835
      %v4799 = vpop.f32.mrf.mxu0
      %v4800 = vadd.f32 %v4771, %v4799
      %v4801 = vpop.f32.mrf.mxu0
      %v4802 = vadd.f32 %v4773, %v4801
      %4803 = vmatmul.bf16.gmra.mxu0 %v4068
      %v4804 = vpop.f32.mrf.mxu0
      %v4805 = vadd.f32 %v4776, %v4804
      %v4806 = vpop.f32.mrf.mxu0
      %v4807 = vadd.f32 %v4778, %v4806
      %4808 = vdwg.mxu0
      %4809 = vmatpush.bf16.msra.mxu0 %v4519
      %4810 = vmatpush.bf16.msra.mxu0 %v4518
      %4811 = vmatpush.bf16.msra.mxu0 %v4517
      %4812 = vmatpush.bf16.msra.mxu0 %v4516
      %4813 = vmatpush.bf16.msra.mxu0 %v4515
      %4814 = vmatpush.bf16.msra.mxu0 %v4514
      %4815 = vmatpush.bf16.msra.mxu0 %v4513
      %4816 = vmatpush.bf16.msra.mxu0 %v4512
      %4817 = vmatmul.bf16.gmra.mxu0 %v2812
      %v4818 = vpop.f32.mrf.mxu0
      %v4819 = vadd.f32 %v4790, %v4818
      %v4820 = vpop.f32.mrf.mxu0
      %v4821 = vadd.f32 %v4792, %v4820
      %4822 = vmatmul.bf16.gmra.mxu0 %v2824
      %v4823 = vpop.f32.mrf.mxu0
      %v4824 = vadd.f32 %v4795, %v4823
      %v4825 = vpop.f32.mrf.mxu0
      %v4826 = vadd.f32 %v4797, %v4825
      %4827 = vmatmul.bf16.gmra.mxu0 %v2836
      %v4828 = vpop.f32.mrf.mxu0
      %v4829 = vadd.f32 %v4800, %v4828
      %v4830 = vpop.f32.mrf.mxu0
      %v4831 = vadd.f32 %v4802, %v4830
      %4832 = vmatmul.bf16.gmra.mxu0 %v4069
      %v4833 = vpop.f32.mrf.mxu0
      %v4834 = vadd.f32 %v4805, %v4833
      %v4835 = vpop.f32.mrf.mxu0
      %v4836 = vadd.f32 %v4807, %v4835
      %4837 = vdwg.mxu0
      %4838 = vmatpush.bf16.msra.mxu0 %v4527
      %4839 = vmatpush.bf16.msra.mxu0 %v4526
      %4840 = vmatpush.bf16.msra.mxu0 %v4525
      %4841 = vmatpush.bf16.msra.mxu0 %v4524
      %4842 = vmatpush.bf16.msra.mxu0 %v4523
      %4843 = vmatpush.bf16.msra.mxu0 %v4522
      %4844 = vmatpush.bf16.msra.mxu0 %v4521
      %4845 = vmatpush.bf16.msra.mxu0 %v4520
      %4846 = vmatmul.bf16.gmra.mxu0 %v2813
      %v4847 = vpop.f32.mrf.mxu0
      %v4848 = vadd.f32 %v4819, %v4847
      %v4849 = vpop.f32.mrf.mxu0
      %v4850 = vadd.f32 %v4821, %v4849
      %4851 = vmatmul.bf16.gmra.mxu0 %v2825
      %v4852 = vpop.f32.mrf.mxu0
      %v4853 = vadd.f32 %v4824, %v4852
      %v4854 = vpop.f32.mrf.mxu0
      %v4855 = vadd.f32 %v4826, %v4854
      %4856 = vmatmul.bf16.gmra.mxu0 %v2837
      %v4857 = vpop.f32.mrf.mxu0
      %v4858 = vadd.f32 %v4829, %v4857
      %v4859 = vpop.f32.mrf.mxu0
      %v4860 = vadd.f32 %v4831, %v4859
      %4861 = vmatmul.bf16.gmra.mxu0 %v4070
      %v4862 = vpop.f32.mrf.mxu0
      %v4863 = vadd.f32 %v4834, %v4862
      %v4864 = vpop.f32.mrf.mxu0
      %v4865 = vadd.f32 %v4836, %v4864
      %4866 = vdwg.mxu0
      %4867 = vmatpush.bf16.msra.mxu0 %v4535
      %4868 = vmatpush.bf16.msra.mxu0 %v4534
      %4869 = vmatpush.bf16.msra.mxu0 %v4533
      %4870 = vmatpush.bf16.msra.mxu0 %v4532
      %4871 = vmatpush.bf16.msra.mxu0 %v4531
      %4872 = vmatpush.bf16.msra.mxu0 %v4530
      %4873 = vmatpush.bf16.msra.mxu0 %v4529
      %4874 = vmatpush.bf16.msra.mxu0 %v4528
      %4875 = vmatmul.bf16.gmra.mxu0 %v2814
      %v4876 = vpop.f32.mrf.mxu0
      %v4877 = vadd.f32 %v4848, %v4876
      %v4878 = vpop.f32.mrf.mxu0
      %v4879 = vadd.f32 %v4850, %v4878
      %4880 = vmatmul.bf16.gmra.mxu0 %v2826
      %v4881 = vpop.f32.mrf.mxu0
      %v4882 = vadd.f32 %v4853, %v4881
      %v4883 = vpop.f32.mrf.mxu0
      %v4884 = vadd.f32 %v4855, %v4883
      %4885 = vmatmul.bf16.gmra.mxu0 %v2838
      %v4886 = vpop.f32.mrf.mxu0
      %v4887 = vadd.f32 %v4858, %v4886
      %v4888 = vpop.f32.mrf.mxu0
      %v4889 = vadd.f32 %v4860, %v4888
      %4890 = vmatmul.bf16.gmra.mxu0 %v4071
      %v4891 = vpop.f32.mrf.mxu0
      %v4892 = vadd.f32 %v4863, %v4891
      %v4893 = vpop.f32.mrf.mxu0
      %v4894 = vadd.f32 %v4865, %v4893
      %4895 = vdwg.mxu0
      %4896 = vmatpush.bf16.msra.mxu0 %v4543
      %4897 = vmatpush.bf16.msra.mxu0 %v4542
      %4898 = vmatpush.bf16.msra.mxu0 %v4541
      %4899 = vmatpush.bf16.msra.mxu0 %v4540
      %4900 = vmatpush.bf16.msra.mxu0 %v4539
      %4901 = vmatpush.bf16.msra.mxu0 %v4538
      %4902 = vmatpush.bf16.msra.mxu0 %v4537
      %4903 = vmatpush.bf16.msra.mxu0 %v4536
      %4904 = vmatmul.bf16.gmra.mxu0 %v2815
      %v4905 = vpop.f32.mrf.mxu0
      %v4906 = vadd.f32 %v4877, %v4905
      %v4907 = vpop.f32.mrf.mxu0
      %v4908 = vadd.f32 %v4879, %v4907
      %4909 = vmatmul.bf16.gmra.mxu0 %v2827
      %v4910 = vpop.f32.mrf.mxu0
      %v4911 = vadd.f32 %v4882, %v4910
      %v4912 = vpop.f32.mrf.mxu0
      %v4913 = vadd.f32 %v4884, %v4912
      %4914 = vmatmul.bf16.gmra.mxu0 %v2839
      %v4915 = vpop.f32.mrf.mxu0
      %v4916 = vadd.f32 %v4887, %v4915
      %v4917 = vpop.f32.mrf.mxu0
      %v4918 = vadd.f32 %v4889, %v4917
      %4919 = vmatmul.bf16.gmra.mxu0 %v4072
      %v4920 = vpop.f32.mrf.mxu0
      %v4921 = vadd.f32 %v4892, %v4920
      %v4922 = vpop.f32.mrf.mxu0
      %v4923 = vadd.f32 %v4894, %v4922
      %4924 = vdwg.mxu0
      %4925 = vmatpush.bf16.msra.mxu0 %v4551
      %4926 = vmatpush.bf16.msra.mxu0 %v4550
      %4927 = vmatpush.bf16.msra.mxu0 %v4549
      %4928 = vmatpush.bf16.msra.mxu0 %v4548
      %4929 = vmatpush.bf16.msra.mxu0 %v4547
      %4930 = vmatpush.bf16.msra.mxu0 %v4546
      %4931 = vmatpush.bf16.msra.mxu0 %v4545
      %4932 = vmatpush.bf16.msra.mxu0 %v4544
      %4933 = vmatmul.bf16.gmra.mxu0 %v2816
      %v4934 = vpop.f32.mrf.mxu0
      %v4935 = vadd.f32 %v4906, %v4934
      %v4936 = vpop.f32.mrf.mxu0
      %v4937 = vadd.f32 %v4908, %v4936
      %4938 = vmatmul.bf16.gmra.mxu0 %v2828
      %v4939 = vpop.f32.mrf.mxu0
      %v4940 = vadd.f32 %v4911, %v4939
      %v4941 = vpop.f32.mrf.mxu0
      %v4942 = vadd.f32 %v4913, %v4941
      %4943 = vmatmul.bf16.gmra.mxu0 %v2840
      %v4944 = vpop.f32.mrf.mxu0
      %v4945 = vadd.f32 %v4916, %v4944
      %v4946 = vpop.f32.mrf.mxu0
      %v4947 = vadd.f32 %v4918, %v4946
      %4948 = vmatmul.bf16.gmra.mxu0 %v4073
      %v4949 = vpop.f32.mrf.mxu0
      %v4950 = vadd.f32 %v4921, %v4949
      %v4951 = vpop.f32.mrf.mxu0
      %v4952 = vadd.f32 %v4923, %v4951
      %4953 = vdwg.mxu0
      %4954 = vmatpush.bf16.msra.mxu0 %v4559
      %4955 = vmatpush.bf16.msra.mxu0 %v4558
      %4956 = vmatpush.bf16.msra.mxu0 %v4557
      %4957 = vmatpush.bf16.msra.mxu0 %v4556
      %4958 = vmatpush.bf16.msra.mxu0 %v4555
      %4959 = vmatpush.bf16.msra.mxu0 %v4554
      %4960 = vmatpush.bf16.msra.mxu0 %v4553
      %4961 = vmatpush.bf16.msra.mxu0 %v4552
      %4962 = vmatmul.bf16.gmra.mxu0 %v2817
      %v4963 = vpop.f32.mrf.mxu0
      %v4964 = vadd.f32 %v4935, %v4963
      %v4965 = vpop.f32.mrf.mxu0
      %v4966 = vadd.f32 %v4937, %v4965
      %4967 = vmatmul.bf16.gmra.mxu0 %v2829
      %v4968 = vpop.f32.mrf.mxu0
      %v4969 = vadd.f32 %v4940, %v4968
      %v4970 = vpop.f32.mrf.mxu0
      %v4971 = vadd.f32 %v4942, %v4970
      %4972 = vmatmul.bf16.gmra.mxu0 %v2841
      %v4973 = vpop.f32.mrf.mxu0
      %v4974 = vadd.f32 %v4945, %v4973
      %v4975 = vpop.f32.mrf.mxu0
      %v4976 = vadd.f32 %v4947, %v4975
      %4977 = vmatmul.bf16.gmra.mxu0 %v4074
      %v4978 = vpop.f32.mrf.mxu0
      %v4979 = vadd.f32 %v4950, %v4978
      %v4980 = vpop.f32.mrf.mxu0
      %v4981 = vadd.f32 %v4952, %v4980
      %4982 = vdwg.mxu0
      %4983 = vmatpush.bf16.msra.mxu0 %v4567
      %4984 = vmatpush.bf16.msra.mxu0 %v4566
      %4985 = vmatpush.bf16.msra.mxu0 %v4565
      %4986 = vmatpush.bf16.msra.mxu0 %v4564
      %4987 = vmatpush.bf16.msra.mxu0 %v4563
      %4988 = vmatpush.bf16.msra.mxu0 %v4562
      %4989 = vmatpush.bf16.msra.mxu0 %v4561
      %4990 = vmatpush.bf16.msra.mxu0 %v4560
      %4991 = vmatmul.bf16.gmra.mxu0 %v2818
      %v4992 = vpop.f32.mrf.mxu0
      %v4993 = vadd.f32 %v4964, %v4992
      %v4994 = vpop.f32.mrf.mxu0
      %v4995 = vadd.f32 %v4966, %v4994
      %4996 = vmatmul.bf16.gmra.mxu0 %v2830
      %v4997 = vpop.f32.mrf.mxu0
      %v4998 = vadd.f32 %v4969, %v4997
      %v4999 = vpop.f32.mrf.mxu0
      %v5000 = vadd.f32 %v4971, %v4999
      %5001 = vmatmul.bf16.gmra.mxu0 %v2842
      %v5002 = vpop.f32.mrf.mxu0
      %v5003 = vadd.f32 %v4974, %v5002
      %v5004 = vpop.f32.mrf.mxu0
      %v5005 = vadd.f32 %v4976, %v5004
      %5006 = vmatmul.bf16.gmra.mxu0 %v4075
      %v5007 = vpop.f32.mrf.mxu0
      %v5008 = vadd.f32 %v4979, %v5007
      %v5009 = vpop.f32.mrf.mxu0
      %v5010 = vadd.f32 %v4981, %v5009
      %5011 = vdwg.mxu0
      %v5012 = vadd.f32 %v3796, %v4993
      %v5013 = vadd.f32 %v3798, %v4995
      %v5014 = vadd.f32 %v3801, %v4998
      %v5015 = vadd.f32 %v3803, %v5000
      %v5016 = vadd.f32 %v3806, %v5003
      %v5017 = vadd.f32 %v3808, %v5005
      %v5018 = vadd.f32 %v3811, %v5008
      %v5019 = vadd.f32 %v3813, %v5010
      %v5020 = vld [vmem:[%s4] sm:$0x1]
      %v5022 = vperm.slane %v5020, 0
      %v5024 = vadd.f32 %v5012, %v5022
      %v5025 = vadd.f32 %v5013, %v5022
      %v5026 = vadd.f32 %v5014, %v5022
      %v5027 = vadd.f32 %v5015, %v5022
      %v5028 = vadd.f32 %v5016, %v5022
      %v5029 = vadd.f32 %v5017, %v5022
      %v5030 = vadd.f32 %v5018, %v5022
      %v5031 = vadd.f32 %v5019, %v5022
      %v5032 = vpack.c.bf16 %v5024, %v5024
      %v5033 = vpack.c.bf16 %v5025, %v5025
      %v5034 = vpack.c.bf16 %v5026, %v5026
      %v5035 = vpack.c.bf16 %v5027, %v5027
      %v5036 = vpack.c.bf16 %v5028, %v5028
      %v5037 = vpack.c.bf16 %v5029, %v5029
      %v5038 = vpack.c.bf16 %v5030, %v5030
      %v5039 = vpack.c.bf16 %v5031, %v5031
      %5040 = vst [vmem:[%s260] sm:$0xf] %v5032
      %5041 = vst [vmem:[%s260 + $0x4] sm:$0xf] %v5033
      %5042 = vst [vmem:[%s260 + $0x8] sm:$0xf] %v5034
      %5043 = vst [vmem:[%s260 + $0xc] sm:$0xf] %v5035
      %5044 = vst [vmem:[%s260 + $0x10] sm:$0xf] %v5036
      %5045 = vst [vmem:[%s260 + $0x14] sm:$0xf] %v5037
      %5046 = vst [vmem:[%s260 + $0x18] sm:$0xf] %v5038
      %5047 = vst [vmem:[%s260 + $0x1c] sm:$0xf] %v5039
      %s5048 = smul.u32 8, %s21
      %p5049 = scmp.lt.s32.totalorder %s20, 1
      %s5050 = scalar_select %p5049, %s20, 1
      %p5051 = scmp.lt.s32.totalorder %s5048, 7
      %s5052 = scalar_select %p5051, %s5048, 7
      %s5053 = smul.addr %s5050, 8
      %s5054 = sadd.s32 %s5052, %s5053
      %s5055 = smul.addr %s5054, 4
      %s5056 = scalar_lea.vmem %s5, %s5055
      // Predicated region
      $region41: #{feature_extractor_forward.2} parent=39 // pred_check
        %p5057 = pneg %p160
      $region42: #{feature_extractor_forward.2} parent=39 // pred_check_branch
        %5059 = sbr.rel (%p5057) target = $region44
      $region43: #{feature_extractor_forward.2} parent=39 // pred_region
        %s5060 = smul.u32 8, %s21
      $region44: #{feature_extractor_forward.2} parent=39 // pred_fallthru
        _
    $region40: #{feature_extractor_forward.2} parent=5 // pred_fallthru
      _
    %p5061 = scmp.le.s32.totalorder 2, %s11
    // Predicated region
    $region45: #{feature_extractor_forward.2} parent=5 // pred_check
      %p5062 = pneg %p5061
    $region46: #{feature_extractor_forward.2} parent=5 // pred_check_branch
      %5064 = sbr.rel (%p5062) target = $region48
    $region47: #{feature_extractor_forward.2} parent=5 // pred_region
      %s5065 = ssub.s32 %s11, 2
      // Predicated region
      $region49: #{feature_extractor_forward.2} parent=47 // pred_check
        %p5066 = pneg %p166
      $region50: #{feature_extractor_forward.2} parent=47 // pred_check_branch
        %5068 = sbr.rel (%p5066) target = $region52
      $region51: #{feature_extractor_forward.2} parent=47 // pred_region
        %s5069 = smul.u32 8, %s23
        %p5070 = scmp.lt.s32.totalorder %s22, 1
        %s5071 = scalar_select %p5070, %s22, 1
        %p5072 = scmp.lt.s32.totalorder %s5069, 7
        %s5073 = scalar_select %p5072, %s5069, 7
        %s5074 = smul.addr %s5071, 8
        %s5075 = sadd.s32 %s5073, %s5074
        %s5076 = smul.addr %s5075, 4
        %s5077 = scalar_lea.vmem %s5, %s5076
      $region52: #{feature_extractor_forward.2} parent=47 // pred_fallthru
        _
    $region48: #{feature_extractor_forward.2} parent=5 // pred_fallthru
      _
  $region6: #{feature_extractor_forward.2} parent=0 // loop_footer
    %s15 = sadd.s32 1, %s11
  $region7: #{feature_extractor_forward.2} parent=0 // loop_footer_branch
    %10 = sbr.rel target = $region3
  $region8: #{feature_extractor_forward.2} parent=0 // loop_exit
    _

</llo_original>
